<compile_context>
chip_gen: v7x
topology: tpu7x:2x2x1
jax: 0.10.0
libtpu: 0.0.40
codegen_flags: <defaults>
</compile_context>

<pallas_src>
import jax
import jax.numpy as jnp
from jax.experimental import pallas as pl
from jax.experimental.pallas import tpu as pltpu

IMG_SIZE = 64
LATENT = 100
LATENT_PAD = 128           # zero-padded latent dim for lane alignment
H1, H2, H3 = 256, 512, 1024
OUT = IMG_SIZE * IMG_SIZE  # 4096
TN = 2048                  # layer-4 output-column tile width (OUT // TN == 2)


def _leaky_relu(x, slope=0.2):
    return jnp.where(x > 0, x, slope * x)


# ----------------------------------------------------------------------------
# Kernel A: layers 1-3 (tiny, runs once, no grid).  bf16 MXU inputs, f32 acc.
# ----------------------------------------------------------------------------
def hidden_kernel(x_ref, w1_ref, b1_ref, w2_ref, b2_ref, w3_ref, b3_ref,
                  h3_ref):
    x = x_ref[...]                                            # (B, 128) bf16

    h = jnp.dot(x, w1_ref[...], preferred_element_type=jnp.float32) + b1_ref[...]
    h = _leaky_relu(h).astype(jnp.bfloat16)

    h = jnp.dot(h, w2_ref[...], preferred_element_type=jnp.float32) + b2_ref[...]
    h = _leaky_relu(h).astype(jnp.bfloat16)

    h = jnp.dot(h, w3_ref[...], preferred_element_type=jnp.float32) + b3_ref[...]
    h3_ref[...] = _leaky_relu(h).astype(jnp.bfloat16)         # (B, 1024) bf16


# ----------------------------------------------------------------------------
# Kernel B: layer 4, streams int8 w4 column tiles (grid over output columns).
# ----------------------------------------------------------------------------
def output_kernel(h3_ref, w4q_ref, s4_ref, b4_ref, out_ref):
    h3 = h3_ref[...]                                          # (B, 1024) bf16

    # Dequant = plain integer->bf16 cast (values in [-127,127] are exact in
    # bf16); the per-column scale is folded in AFTER the f32 accumulate so the
    # big per-element multiply never happens.  Two-step cast keeps lowering
    # on the well-trodden int8 -> f32 -> bf16 path.
    wq = w4q_ref[...].astype(jnp.float32).astype(jnp.bfloat16)  # (1024, TN)

    acc = jnp.dot(h3, wq, preferred_element_type=jnp.float32)   # (B, TN) f32
    y = acc * s4_ref[...] + b4_ref[...]
    out_ref[...] = jnp.tanh(y)


# ----------------------------------------------------------------------------
# Parameter init / packing
# ----------------------------------------------------------------------------
def init_params(key):
    """f32 params mimicking torch.nn.Linear default init (U[-1/sqrt(fan_in), +])."""
    dims = [(LATENT, H1), (H1, H2), (H2, H3), (H3, OUT)]
    params = []
    for (fan_in, fan_out) in dims:
        key, kw, kb = jax.random.split(key, 3)
        bound = 1.0 / jnp.sqrt(jnp.float32(fan_in))
        w = jax.random.uniform(kw, (fan_in, fan_out), jnp.float32, -bound, bound)
        b = jax.random.uniform(kb, (1, fan_out), jnp.float32, -bound, bound)
        params.append((w, b))
    return params


def prepare_params(params_f32):
    """One-time conversion:
       * w1 fan-in padded 100 -> 128 (zero rows), w1..w3 cast to bf16
       * w4 quantized to int8 with per-output-column f32 scales
       * biases stay f32 (added post-accumulation, negligible bytes)."""
    (w1, b1), (w2, b2), (w3, b3), (w4, b4) = params_f32
    w1p = jnp.pad(w1, ((0, LATENT_PAD - LATENT), (0, 0)))

    absmax = jnp.maximum(jnp.max(jnp.abs(w4), axis=0, keepdims=True), 1e-12)
    s4 = (absmax / 127.0).astype(jnp.float32)                       # (1, OUT)
    w4q = jnp.clip(jnp.round(w4 / s4), -127.0, 127.0).astype(jnp.int8)

    return dict(
        w1=w1p.astype(jnp.bfloat16), b1=b1,
        w2=w2.astype(jnp.bfloat16), b2=b2,
        w3=w3.astype(jnp.bfloat16), b3=b3,
        w4q=w4q, s4=s4, b4=b4,
    )


# ----------------------------------------------------------------------------
# Forward
# ----------------------------------------------------------------------------
@jax.jit
def generator_forward(x, p):
    """x: [B, 100] float32 -> [B, 4096] float32."""
    B = x.shape[0]

    # Single tiny fused op: zero-pad latent 100 -> 128 and cast to bf16.
    x_p = jnp.pad(x, ((0, 0), (0, LATENT_PAD - LATENT))).astype(jnp.bfloat16)

    # Layers 1-3: one gridless call, everything resident in VMEM (~1.4 MB).
    h3 = pl.pallas_call(
        hidden_kernel,
        out_shape=jax.ShapeDtypeStruct((B, H3), jnp.bfloat16),
    )(x_p, p["w1"], p["b1"], p["w2"], p["b2"], p["w3"], p["b3"])

    # Layer 4: stream int8 w4 column tiles; h3 (16 KB) stays resident.
    return pl.pallas_call(
        output_kernel,
        out_shape=jax.ShapeDtypeStruct((B, OUT), jnp.float32),
        grid=(OUT // TN,),                                    # = 2 (even -> v7x balanced)
        in_specs=[
            pl.BlockSpec((B, H3), lambda j: (0, 0)),          # h3, resident
            pl.BlockSpec((H3, TN), lambda j: (0, j)),         # int8 w4 column tiles
            pl.BlockSpec((1, TN), lambda j: (0, j)),          # per-column scales
            pl.BlockSpec((1, TN), lambda j: (0, j)),          # bias
        ],
        out_specs=pl.BlockSpec((B, TN), lambda j: (0, j)),
        compiler_params=pltpu.CompilerParams(
            # No cross-iteration state -> safe to shard across v7x's 2 TCs.
            dimension_semantics=("parallel",),
            # ~17 MB actual peak (2x2MB int8 bufs + f32/bf16 dequant tiles).
            vmem_limit_bytes=32 * 1024 * 1024,
        ),
    )(h3, p["w4q"], p["s4"], p["b4"])


def reference_forward(x, params_f32):
    """Pure-f32 reference matching the PyTorch module semantics."""
    h = x
    for i, (w, b) in enumerate(params_f32):
        h = h @ w + b
        if i < 3:
            h = jnp.where(h > 0, h, 0.2 * h)
        else:
            h = jnp.tanh(h)
    return h


if __name__ == "__main__":
    key = jax.random.PRNGKey(0)
    key, kx = jax.random.split(key)

    batch = 8
    x = jax.random.normal(kx, (batch, LATENT), jnp.float32)

    params_f32 = init_params(key)
    params = prepare_params(params_f32)

    out = generator_forward(x, params)
    out = jax.block_until_ready(out)

    ref = reference_forward(x, params_f32)
    assert out.shape == (batch, OUT), out.shape
    # bf16 weight streaming + int8 (per-column-scaled) w4 -> relaxed tolerance
    # vs. the f32 reference; output is tanh-bounded so 2e-2 abs is meaningful.
    assert jnp.allclose(out, ref, atol=2e-2, rtol=2e-2), "mismatch vs reference"

    print("KERNEL_OK")
</pallas_src>

<mosaic_0001>
module attributes {stable_mosaic.version = 11 : i64} {
  func.func @output_kernel(%arg0: i32, %arg1: memref<8x1024xbf16, #tpu.memory_space<vmem>>, %arg2: memref<1024x2048xi8, #tpu.memory_space<vmem>>, %arg3: memref<1x2048xf32, #tpu.memory_space<vmem>>, %arg4: memref<1x2048xf32, #tpu.memory_space<vmem>>, %arg5: memref<8x2048xf32, #tpu.memory_space<vmem>>) attributes {dimension_semantics = [#tpu.dimension_semantics<parallel>], iteration_bounds = array<i64: 2>, scalar_prefetch = 0 : i64, scratch_operands = 0 : i64, tpu.core_type = #tpu.core_type<tc>, window_params = [{pipeline_mode = #tpu.pipeline_mode<synchronous>, transform_indices = @transform_0, window_bounds = array<i64: 8, 1024>}, {transform_indices = @transform_1, window_bounds = array<i64: 1024, 2048>}, {transform_indices = @transform_2, window_bounds = array<i64: 1, 2048>}, {transform_indices = @transform_3, window_bounds = array<i64: 1, 2048>}, {transform_indices = @transform_4, window_bounds = array<i64: 8, 2048>}]} {
    %c0 = arith.constant 0 : index
    %c0_0 = arith.constant 0 : index
    %0 = vector.load %arg1[%c0, %c0_0] : memref<8x1024xbf16, #tpu.memory_space<vmem>>, vector<8x1024xbf16>
    %c0_1 = arith.constant 0 : index
    %c0_2 = arith.constant 0 : index
    %1 = vector.load %arg2[%c0_1, %c0_2] : memref<1024x2048xi8, #tpu.memory_space<vmem>>, vector<1024x2048xi8>
    %2 = arith.sitofp %1 : vector<1024x2048xi8> to vector<1024x2048xf32>
    %3 = arith.truncf %2 : vector<1024x2048xf32> to vector<1024x2048xbf16>
    %cst = arith.constant dense<0.000000e+00> : vector<8x2048xf32>
    %4 = tpu.matmul %0, %3, %cst {dimension_numbers = #tpu.dot_dimension_numbers<[1], [0], [0], [1], [0, 0, 1, 1], [], []>} : vector<8x1024xbf16>, vector<1024x2048xbf16>, vector<8x2048xf32> -> vector<8x2048xf32>
    %c0_3 = arith.constant 0 : index
    %c0_4 = arith.constant 0 : index
    %5 = vector.load %arg3[%c0_3, %c0_4] : memref<1x2048xf32, #tpu.memory_space<vmem>>, vector<1x2048xf32>
    %6 = vector.broadcast %5 : vector<1x2048xf32> to vector<8x2048xf32>
    %7 = arith.mulf %4, %6 : vector<8x2048xf32>
    %c0_5 = arith.constant 0 : index
    %c0_6 = arith.constant 0 : index
    %8 = vector.load %arg4[%c0_5, %c0_6] : memref<1x2048xf32, #tpu.memory_space<vmem>>, vector<1x2048xf32>
    %9 = vector.broadcast %8 : vector<1x2048xf32> to vector<8x2048xf32>
    %10 = arith.addf %7, %9 : vector<8x2048xf32>
    %11 = math.tanh %10 : vector<8x2048xf32>
    %c0_7 = arith.constant 0 : index
    %c0_8 = arith.constant 0 : index
    %12 = vector.load %arg5[%c0_7, %c0_8] : memref<8x2048xf32, #tpu.memory_space<vmem>>, vector<8x2048xf32>
    tpu.vector_store %arg5[%c0_7, %c0_8], %11 {strides = array<i32>} : memref<8x2048xf32, #tpu.memory_space<vmem>>, vector<8x2048xf32>,
    return
  }
  func.func @transform_0(%arg0: i32) -> (i32, i32) {
    %c0_i32 = arith.constant 0 : i32
    %c0_i32_0 = arith.constant 0 : i32
    %c0_i32_1 = arith.constant 0 : i32
    return %c0_i32, %c0_i32_0 : i32, i32
  }
  func.func @transform_1(%arg0: i32) -> (i32, i32) {
    %c0_i32 = arith.constant 0 : i32
    %c0_i32_0 = arith.constant 0 : i32
    return %c0_i32, %arg0 : i32, i32
  }
  func.func @transform_2(%arg0: i32) -> (i32, i32) {
    %c0_i32 = arith.constant 0 : i32
    %c0_i32_0 = arith.constant 0 : i32
    return %c0_i32, %arg0 : i32, i32
  }
  func.func @transform_3(%arg0: i32) -> (i32, i32) {
    %c0_i32 = arith.constant 0 : i32
    %c0_i32_0 = arith.constant 0 : i32
    return %c0_i32, %arg0 : i32, i32
  }
  func.func @transform_4(%arg0: i32) -> (i32, i32) {
    %c0_i32 = arith.constant 0 : i32
    %c0_i32_0 = arith.constant 0 : i32
    return %c0_i32, %arg0 : i32, i32
  }
}

module attributes {stable_mosaic.version = 11 : i64} {
  func.func @hidden_kernel(%arg0: memref<8x128xbf16, #tpu.memory_space<vmem>>, %arg1: memref<128x256xbf16, #tpu.memory_space<vmem>>, %arg2: memref<1x256xf32, #tpu.memory_space<vmem>>, %arg3: memref<256x512xbf16, #tpu.memory_space<vmem>>, %arg4: memref<1x512xf32, #tpu.memory_space<vmem>>, %arg5: memref<512x1024xbf16, #tpu.memory_space<vmem>>, %arg6: memref<1x1024xf32, #tpu.memory_space<vmem>>, %arg7: memref<8x1024xbf16, #tpu.memory_space<vmem>>) attributes {dimension_semantics = [], scalar_prefetch = 0 : i64, scratch_operands = 0 : i64, tpu.core_type = #tpu.core_type<tc>} {
    %c0 = arith.constant 0 : index
    %c0_0 = arith.constant 0 : index
    %0 = vector.load %arg0[%c0, %c0_0] : memref<8x128xbf16, #tpu.memory_space<vmem>>, vector<8x128xbf16>
    %c0_1 = arith.constant 0 : index
    %c0_2 = arith.constant 0 : index
    %1 = vector.load %arg1[%c0_1, %c0_2] : memref<128x256xbf16, #tpu.memory_space<vmem>>, vector<128x256xbf16>
    %cst = arith.constant dense<0.000000e+00> : vector<8x256xf32>
    %2 = tpu.matmul %0, %1, %cst {dimension_numbers = #tpu.dot_dimension_numbers<[1], [0], [0], [1], [0, 0, 1, 1], [], []>} : vector<8x128xbf16>, vector<128x256xbf16>, vector<8x256xf32> -> vector<8x256xf32>
    %c0_3 = arith.constant 0 : index
    %c0_4 = arith.constant 0 : index
    %3 = vector.load %arg2[%c0_3, %c0_4] : memref<1x256xf32, #tpu.memory_space<vmem>>, vector<1x256xf32>
    %4 = vector.broadcast %3 : vector<1x256xf32> to vector<8x256xf32>
    %5 = arith.addf %2, %4 : vector<8x256xf32>
    %cst_5 = arith.constant 0.000000e+00 : f32
    %6 = vector.broadcast %cst_5 : f32 to vector<8x256xf32>
    %7 = arith.cmpf ogt, %5, %6 : vector<8x256xf32>
    %cst_6 = arith.constant 2.000000e-01 : f32
    %8 = vector.broadcast %cst_6 : f32 to vector<8x256xf32>
    %9 = arith.mulf %8, %5 : vector<8x256xf32>
    %10 = arith.select %7, %5, %9 : vector<8x256xi1>, vector<8x256xf32>
    %11 = arith.truncf %10 : vector<8x256xf32> to vector<8x256xbf16>
    %c0_7 = arith.constant 0 : index
    %c0_8 = arith.constant 0 : index
    %12 = vector.load %arg3[%c0_7, %c0_8] : memref<256x512xbf16, #tpu.memory_space<vmem>>, vector<256x512xbf16>
    %cst_9 = arith.constant dense<0.000000e+00> : vector<8x512xf32>
    %13 = tpu.matmul %11, %12, %cst_9 {dimension_numbers = #tpu.dot_dimension_numbers<[1], [0], [0], [1], [0, 0, 1, 1], [], []>} : vector<8x256xbf16>, vector<256x512xbf16>, vector<8x512xf32> -> vector<8x512xf32>
    %c0_10 = arith.constant 0 : index
    %c0_11 = arith.constant 0 : index
    %14 = vector.load %arg4[%c0_10, %c0_11] : memref<1x512xf32, #tpu.memory_space<vmem>>, vector<1x512xf32>
    %15 = vector.broadcast %14 : vector<1x512xf32> to vector<8x512xf32>
    %16 = arith.addf %13, %15 : vector<8x512xf32>
    %cst_12 = arith.constant 0.000000e+00 : f32
    %17 = vector.broadcast %cst_12 : f32 to vector<8x512xf32>
    %18 = arith.cmpf ogt, %16, %17 : vector<8x512xf32>
    %cst_13 = arith.constant 2.000000e-01 : f32
    %19 = vector.broadcast %cst_13 : f32 to vector<8x512xf32>
    %20 = arith.mulf %19, %16 : vector<8x512xf32>
    %21 = arith.select %18, %16, %20 : vector<8x512xi1>, vector<8x512xf32>
    %22 = arith.truncf %21 : vector<8x512xf32> to vector<8x512xbf16>
    %c0_14 = arith.constant 0 : index
    %c0_15 = arith.constant 0 : index
    %23 = vector.load %arg5[%c0_14, %c0_15] : memref<512x1024xbf16, #tpu.memory_space<vmem>>, vector<512x1024xbf16>
    %cst_16 = arith.constant dense<0.000000e+00> : vector<8x1024xf32>
    %24 = tpu.matmul %22, %23, %cst_16 {dimension_numbers = #tpu.dot_dimension_numbers<[1], [0], [0], [1], [0, 0, 1, 1], [], []>} : vector<8x512xbf16>, vector<512x1024xbf16>, vector<8x1024xf32> -> vector<8x1024xf32>
    %c0_17 = arith.constant 0 : index
    %c0_18 = arith.constant 0 : index
    %25 = vector.load %arg6[%c0_17, %c0_18] : memref<1x1024xf32, #tpu.memory_space<vmem>>, vector<1x1024xf32>
    %26 = vector.broadcast %25 : vector<1x1024xf32> to vector<8x1024xf32>
    %27 = arith.addf %24, %26 : vector<8x1024xf32>
    %cst_19 = arith.constant 0.000000e+00 : f32
    %28 = vector.broadcast %cst_19 : f32 to vector<8x1024xf32>
    %29 = arith.cmpf ogt, %27, %28 : vector<8x1024xf32>
    %cst_20 = arith.constant 2.000000e-01 : f32
    %30 = vector.broadcast %cst_20 : f32 to vector<8x1024xf32>
    %31 = arith.mulf %30, %27 : vector<8x1024xf32>
    %32 = arith.select %29, %27, %31 : vector<8x1024xi1>, vector<8x1024xf32>
    %33 = arith.truncf %32 : vector<8x1024xf32> to vector<8x1024xbf16>
    %c0_21 = arith.constant 0 : index
    %c0_22 = arith.constant 0 : index
    %34 = vector.load %arg7[%c0_21, %c0_22] : memref<8x1024xbf16, #tpu.memory_space<vmem>>, vector<8x1024xbf16>
    tpu.vector_store %arg7[%c0_21, %c0_22], %33 {strides = array<i32>} : memref<8x1024xbf16, #tpu.memory_space<vmem>>, vector<8x1024xbf16>,
    return
  }
}

</mosaic_0001>

<llo_original>
// kernel: generator_forward.3
$region0: #{generator_forward.3}
  #allocation0 [shape = 'u32[]', space=smem, size = 0x4, offset = 0x4, fixed_abs, tag = 'smem constant byte address 0x4 - core index']
  #allocation1 [shape = 'u32[144,128]{1,0:T(1,128)}', space=vmem, size = 0x12000, scoped, tag = 'internal scratch']
  %s0 = inlined_call_operand.vmem [shape: bf16[8,1024], index: 0, kind: input, shape index: {}]
  %s1 = inlined_call_operand.hbm [shape: s8[1024,4096], index: 1, kind: input, shape index: {}]
  %s2 = inlined_call_operand.hbm [shape: f32[1,4096], index: 2, kind: input, shape index: {}]
  %s3 = inlined_call_operand.hbm [shape: f32[1,4096], index: 3, kind: input, shape index: {}]
  %s4 = inlined_call_operand.hbm [shape: f32[8,4096], index: 4, kind: output, shape index: {}]
  %s5 = sld [smem:[#allocation0]]
  $region61: #{generator_forward.3} parent=0
    _
  %s7 = ssub.s32 1, %s5
  %s8 = scalar_select 0, %s7, %s5
  $region1: #{generator_forward.3} parent=0
    #allocation2 [shape = 'u8[4194304]{0}', space=vmem, size = 0x400000, scoped, tag = 'input window, operand 1']
    #allocation3 [shape = 's32[2]{0}', space=sflag, size = 0x8, scoped, tag = 'scoped memory for generator_forward.3']
    #allocation4 [shape = 's32[2]{0}', space=sflag, size = 0x8, scoped, tag = 'scoped memory for generator_forward.3']
    #allocation5 [shape = 'u8[16384]{0}', space=vmem, size = 0x4000, scoped, tag = 'input window, operand 2']
    #allocation6 [shape = 's32[2]{0}', space=sflag, size = 0x8, scoped, tag = 'scoped memory for generator_forward.3']
    #allocation7 [shape = 'u8[16384]{0}', space=vmem, size = 0x4000, scoped, tag = 'input window, operand 3']
    #allocation8 [shape = 'u8[131072]{0}', space=vmem, size = 0x20000, scoped, tag = 'output window, operand 0']
    %9 = vsyncpa [#allocation3], 0
    %s10 = scalar_lea.sflag [#allocation3], 1
    %11 = vsyncpa %s10, 0
    %12 = vsyncpa [#allocation6], 0
    %s13 = scalar_lea.sflag [#allocation6], 1
    %14 = vsyncpa %s13, 0
    %15 = vsyncpa [#allocation4], 0
    %s16 = scalar_lea.sflag [#allocation4], 1
    %17 = vsyncpa %s16, 0
    loop: start=0, step=1, limit=4
    $region2: #{generator_forward.3} parent=1 // loop_pre_header
      _
    $region3: #{generator_forward.3} parent=1 // loop_header
      %s19 = sphi 0, %s23
      %p20 = scmp.ge.s32.totalorder %s19, 4
      %s27 = sphi 0, %s27
      %s29 = sphi 0, %s27
      %s30 = sphi 0, %s29
      %s44 = sphi 0, %s30
      %s50 = sphi 0, %s52
      %s53 = sphi 0, %s50
      %s54 = sphi 0, %s53
      %s70 = sphi 0, %s54
      %s76 = sphi 0, %s78
      %s79 = sphi 0, %s76
      %s80 = sphi 0, %s79
      %s96 = sphi 0, %s80
      %s102 = sphi 0, %s104
      %s105 = sphi 0, %s102
      %s106 = sphi 0, %s105
      %s122 = sphi 0, %s106
      %s128 = sphi 0, %s130
      %s131 = sphi 0, %s128
      %s132 = sphi 0, %s131
      %s148 = sphi 0, %s132
    $region4: #{generator_forward.3} parent=1 // loop_header_branch
      %22 = sbr.rel (%p20) target = $region8
    $region5: #{generator_forward.3} parent=1 // loop_body
      %s24 = ssub.s32 %s19, 1
      %s25 = ssub.s32 %s19, 2
      %s26 = sadd.s32 %s19, 1
      %s28 = sadd.s32 %s27, 1
      %p31 = scmp.eq.s32.totalorder %s19, 1
      %p32 = scmp.ne.s32.totalorder %s27, %s29
      %p33 = scmp.eq.s32.totalorder %s19, 0
      %p34 = por %p32, %p33
      %p35 = scmp.ne.s32.totalorder %s27, %s29
      %p36 = scmp.eq.s32.totalorder %s24, 1
      %p37 = por %p35, %p36
      %p38 = scmp.ne.s32.totalorder %s29, %s30
      %p39 = scmp.eq.s32.totalorder %s24, 0
      %p40 = por %p38, %p39
      %p41 = scmp.ne.s32.totalorder %s29, %s30
      %p42 = scmp.eq.s32.totalorder %s25, 1
      %p43 = por %p41, %p42
      %p45 = scmp.ne.s32.totalorder %s30, %s44
      %p46 = scmp.eq.s32.totalorder %s25, 0
      %p47 = por %p45, %p46
      %s48 = ssub.s32 %s19, %s26
      %p49 = scmp.eq.s32.totalorder %s48, 0
      %s51 = sadd.s32 %s50, 1
      %s52 = scalar_select %p49, %s50, %s51
      %p55 = pneg %p49
      %p56 = scmp.eq.s32.totalorder %s19, 1
      %p57 = por %p55, %p56
      %p58 = scmp.ne.s32.totalorder %s50, %s53
      %p59 = scmp.eq.s32.totalorder %s19, 0
      %p60 = por %p58, %p59
      %p61 = scmp.ne.s32.totalorder %s50, %s53
      %p62 = scmp.eq.s32.totalorder %s24, 1
      %p63 = por %p61, %p62
      %p64 = scmp.ne.s32.totalorder %s53, %s54
      %p65 = scmp.eq.s32.totalorder %s24, 0
      %p66 = por %p64, %p65
      %p67 = scmp.ne.s32.totalorder %s53, %s54
      %p68 = scmp.eq.s32.totalorder %s25, 1
      %p69 = por %p67, %p68
      %p71 = scmp.ne.s32.totalorder %s54, %s70
      %p72 = scmp.eq.s32.totalorder %s25, 0
      %p73 = por %p71, %p72
      %s74 = ssub.s32 %s19, %s26
      %p75 = scmp.eq.s32.totalorder %s74, 0
      %s77 = sadd.s32 %s76, 1
      %s78 = scalar_select %p75, %s76, %s77
      %p81 = pneg %p75
      %p82 = scmp.eq.s32.totalorder %s19, 1
      %p83 = por %p81, %p82
      %p84 = scmp.ne.s32.totalorder %s76, %s79
      %p85 = scmp.eq.s32.totalorder %s19, 0
      %p86 = por %p84, %p85
      %p87 = scmp.ne.s32.totalorder %s76, %s79
      %p88 = scmp.eq.s32.totalorder %s24, 1
      %p89 = por %p87, %p88
      %p90 = scmp.ne.s32.totalorder %s79, %s80
      %p91 = scmp.eq.s32.totalorder %s24, 0
      %p92 = por %p90, %p91
      %p93 = scmp.ne.s32.totalorder %s79, %s80
      %p94 = scmp.eq.s32.totalorder %s25, 1
      %p95 = por %p93, %p94
      %p97 = scmp.ne.s32.totalorder %s80, %s96
      %p98 = scmp.eq.s32.totalorder %s25, 0
      %p99 = por %p97, %p98
      %s100 = ssub.s32 %s19, %s26
      %p101 = scmp.eq.s32.totalorder %s100, 0
      %s103 = sadd.s32 %s102, 1
      %s104 = scalar_select %p101, %s102, %s103
      %p107 = pneg %p101
      %p108 = scmp.eq.s32.totalorder %s19, 1
      %p109 = por %p107, %p108
      %p110 = scmp.ne.s32.totalorder %s102, %s105
      %p111 = scmp.eq.s32.totalorder %s19, 0
      %p112 = por %p110, %p111
      %p113 = scmp.ne.s32.totalorder %s102, %s105
      %p114 = scmp.eq.s32.totalorder %s24, 1
      %p115 = por %p113, %p114
      %p116 = scmp.ne.s32.totalorder %s105, %s106
      %p117 = scmp.eq.s32.totalorder %s24, 0
      %p118 = por %p116, %p117
      %p119 = scmp.ne.s32.totalorder %s105, %s106
      %p120 = scmp.eq.s32.totalorder %s25, 1
      %p121 = por %p119, %p120
      %p123 = scmp.ne.s32.totalorder %s106, %s122
      %p124 = scmp.eq.s32.totalorder %s25, 0
      %p125 = por %p123, %p124
      %s126 = ssub.s32 %s19, %s26
      %p127 = scmp.eq.s32.totalorder %s126, 0
      %s129 = sadd.s32 %s128, 1
      %s130 = scalar_select %p127, %s128, %s129
      %p133 = pneg %p127
      %p134 = scmp.eq.s32.totalorder %s19, 1
      %p135 = por %p133, %p134
      %p136 = scmp.ne.s32.totalorder %s128, %s131
      %p137 = scmp.eq.s32.totalorder %s19, 0
      %p138 = por %p136, %p137
      %p139 = scmp.ne.s32.totalorder %s128, %s131
      %p140 = scmp.eq.s32.totalorder %s24, 1
      %p141 = por %p139, %p140
      %p142 = scmp.ne.s32.totalorder %s131, %s132
      %p143 = scmp.eq.s32.totalorder %s24, 0
      %p144 = por %p142, %p143
      %p145 = scmp.ne.s32.totalorder %s131, %s132
      %p146 = scmp.eq.s32.totalorder %s25, 1
      %p147 = por %p145, %p146
      %p149 = scmp.ne.s32.totalorder %s132, %s148
      %p150 = scmp.eq.s32.totalorder %s25, 0
      %p151 = por %p149, %p150
      %p152 = scmp.le.s32.totalorder 1, %s19
      %p153 = scmp.lt.s32.totalorder %s19, 3
      %p154 = pnand %p152, %p153
      %p155 = pneg %p154
      // Predicated region
      $region9: #{generator_forward.3} parent=5 // pred_check
        _
      $region10: #{generator_forward.3} parent=5 // pred_check_branch
        %157 = sbr.rel (%p154) target = $region12
      $region11: #{generator_forward.3} parent=5 // pred_region
        %s158 = ssub.s32 %s19, 1
        // Predicated region
        $region13: #{generator_forward.3} parent=11 // pred_check
          %p159 = pneg %p40
        $region14: #{generator_forward.3} parent=11 // pred_check_branch
          %161 = sbr.rel (%p159) target = $region16
        $region15: #{generator_forward.3} parent=11 // pred_region
          _
        $region16: #{generator_forward.3} parent=11 // pred_fallthru
          _
      $region12: #{generator_forward.3} parent=5 // pred_fallthru
        _
      %p162 = scmp.lt.s32.totalorder %s19, 2
      // Predicated region
      $region17: #{generator_forward.3} parent=5 // pred_check
        %p163 = pneg %p162
      $region18: #{generator_forward.3} parent=5 // pred_check_branch
        %165 = sbr.rel (%p163) target = $region20
      $region19: #{generator_forward.3} parent=5 // pred_region
        // Predicated region
        $region21: #{generator_forward.3} parent=19 // pred_check
          %p166 = pneg %p60
        $region22: #{generator_forward.3} parent=19 // pred_check_branch
          %168 = sbr.rel (%p166) target = $region24
        $region23: #{generator_forward.3} parent=19 // pred_region
          %s169 = sand.u32 %s50, 1
          %s170 = scalar_lea.sflag [#allocation3], %s169
          %s171 = sand.u32 %s50, 1
          %s172 = smul.addr %s171, 4096
          %s173 = scalar_lea.vmem [#allocation2], %s172
          %s174 = smul.u32 16, %s19
          %s176 = ssub.s32 65536, 65536
          %177 = vsyncadd %s170, %s176
          %s178 = smul.addr %s174, 128
          %s179 = scalar_lea.hbm %s1, %s178
          %s180 = sshll.u32 %s173, 4
          %s181 = int_to_ptr.vmem [resolvable:$true] %s180
          %186 = dma.hbm_to_vmem [thread:$0]  %s179, 65536, %s181, %s170, 4096, 2048, 128
        $region24: #{generator_forward.3} parent=19 // pred_fallthru
          _
        // Predicated region
        $region25: #{generator_forward.3} parent=19 // pred_check
          %p187 = pneg %p86
        $region26: #{generator_forward.3} parent=19 // pred_check_branch
          %189 = sbr.rel (%p187) target = $region28
        $region27: #{generator_forward.3} parent=19 // pred_region
          %s190 = sand.u32 %s19, 1
          %s191 = scalar_lea.sflag [#allocation6], %s190
          %s192 = sand.u32 %s76, 1
          %s193 = smul.addr %s192, 16
          %s194 = scalar_lea.vmem [#allocation5], %s193
          %s195 = smul.u32 16, %s19
          %s197 = ssub.s32 256, 256
          %198 = vsyncadd %s191, %s197
          %s199 = smul.addr %s195, 16
          %s200 = scalar_lea.hbm %s2, %s199
          %s202 = sshll.u32 %s194, 4
          %s203 = int_to_ptr.vmem [resolvable:$true] %s202
          %205 = dma.hbm_to_vmem [thread:$0]  %s200, 256, %s203, %s191
        $region28: #{generator_forward.3} parent=19 // pred_fallthru
          _
        // Predicated region
        $region29: #{generator_forward.3} parent=19 // pred_check
          %p206 = pneg %p112
        $region30: #{generator_forward.3} parent=19 // pred_check_branch
          %208 = sbr.rel (%p206) target = $region32
        $region31: #{generator_forward.3} parent=19 // pred_region
          %s209 = sand.u32 %s19, 1
          %s210 = scalar_lea.sflag [#allocation6], %s209
          %s211 = sand.u32 %s102, 1
          %s212 = smul.addr %s211, 16
          %s213 = scalar_lea.vmem [#allocation7], %s212
          %s214 = smul.u32 16, %s19
          %s216 = ssub.s32 256, 256
          %217 = vsyncadd %s210, %s216
          %s218 = smul.addr %s214, 16
          %s219 = scalar_lea.hbm %s3, %s218
          %s221 = sshll.u32 %s213, 4
          %s222 = int_to_ptr.vmem [resolvable:$true] %s221
          %224 = dma.hbm_to_vmem [thread:$0]  %s219, 256, %s222, %s210
        $region32: #{generator_forward.3} parent=19 // pred_fallthru
          _
      $region20: #{generator_forward.3} parent=5 // pred_fallthru
        _
      %p225 = scmp.le.s32.totalorder 1, %s19
      %p226 = scmp.lt.s32.totalorder %s19, 3
      %p227 = pnand %p225, %p226
      %p228 = pneg %p227
      // Predicated region
      $region33: #{generator_forward.3} parent=5 // pred_check
        _
      $region34: #{generator_forward.3} parent=5 // pred_check_branch
        %230 = sbr.rel (%p227) target = $region36
      $region35: #{generator_forward.3} parent=5 // pred_region
        %s231 = ssub.s32 %s19, 1
        %s232 = sand.u32 %s53, 1
        %s233 = scalar_lea.sflag [#allocation3], %s232
        %s234 = sand.u32 %s53, 1
        %s235 = smul.addr %s234, 4096
        %s236 = scalar_lea.vmem [#allocation2], %s235
        // Predicated region
        $region37: #{generator_forward.3} parent=35 // pred_check
          %p237 = pneg %p66
        $region38: #{generator_forward.3} parent=35 // pred_check_branch
          %239 = sbr.rel (%p237) target = $region40
        $region39: #{generator_forward.3} parent=35 // pred_region
          %240 = dma.done %s233, 65536
        $region40: #{generator_forward.3} parent=35 // pred_fallthru
          _
        %s241 = sand.u32 %s24, 1
        %s242 = scalar_lea.sflag [#allocation6], %s241
        %s243 = sand.u32 %s79, 1
        %s244 = smul.addr %s243, 16
        %s245 = scalar_lea.vmem [#allocation5], %s244
        // Predicated region
        $region41: #{generator_forward.3} parent=35 // pred_check
          %p246 = pneg %p92
        $region42: #{generator_forward.3} parent=35 // pred_check_branch
          %248 = sbr.rel (%p246) target = $region44
        $region43: #{generator_forward.3} parent=35 // pred_region
          %249 = dma.done %s242, 256
        $region44: #{generator_forward.3} parent=35 // pred_fallthru
          _
        %s250 = sand.u32 %s24, 1
        %s251 = scalar_lea.sflag [#allocation6], %s250
        %s252 = sand.u32 %s105, 1
        %s253 = smul.addr %s252, 16
        %s254 = scalar_lea.vmem [#allocation7], %s253
        // Predicated region
        $region45: #{generator_forward.3} parent=35 // pred_check
          %p255 = pneg %p118
        $region46: #{generator_forward.3} parent=35 // pred_check_branch
          %257 = sbr.rel (%p255) target = $region48
        $region47: #{generator_forward.3} parent=35 // pred_region
          %258 = dma.done %s251, 256
        $region48: #{generator_forward.3} parent=35 // pred_fallthru
          _
        %p259 = pneg %p40
        %p260 = pneg %p37
        %s261 = sand.u32 %s53, 1
        %s262 = scalar_lea.sflag [#allocation3], %s261
        %s263 = sand.u32 %s53, 1
        %s264 = smul.addr %s263, 4096
        %s265 = scalar_lea.vmem [#allocation2], %s264
        %p266 = pneg %p66
        %p267 = pneg %p63
        %s268 = sand.u32 %s24, 1
        %s269 = scalar_lea.sflag [#allocation6], %s268
        %s270 = sand.u32 %s79, 1
        %s271 = smul.addr %s270, 16
        %s272 = scalar_lea.vmem [#allocation5], %s271
        %p273 = pneg %p92
        %p274 = pneg %p89
        %s275 = sand.u32 %s24, 1
        %s276 = scalar_lea.sflag [#allocation6], %s275
        %s277 = sand.u32 %s105, 1
        %s278 = smul.addr %s277, 16
        %s279 = scalar_lea.vmem [#allocation7], %s278
        %p280 = pneg %p118
        %p281 = pneg %p115
        %p282 = pneg %p144
        %p283 = pneg %p141
        %s284 = sand.u32 %s131, 1
        %s285 = scalar_lea.sflag [#allocation4], %s284
        %s286 = sand.u32 %s131, 1
        %s287 = smul.addr %s286, 128
        %s288 = scalar_lea.vmem [#allocation8], %s287
        %s289 = smul.u32 16, %s24
        %s290 = smul.u32 16, %s24
        %s291 = smul.u32 16, %s24
        %s292 = smul.u32 16, %s24
        %v293 = vld [vmem:[%s0] sm:$0xff]
        %v294 = vld [vmem:[%s0 + $0x8] sm:$0xff]
        %v295 = vld [vmem:[%s0 + $0x10] sm:$0xff]
        %v296 = vld [vmem:[%s0 + $0x18] sm:$0xff]
        %v297 = vld [vmem:[%s236] sm:$0xff]
        %v298 = vld [vmem:[%s236 + $0x8] sm:$0xff]
        %v299 = vld [vmem:[%s236 + $0x10] sm:$0xff]
        %v300 = vld [vmem:[%s236 + $0x18] sm:$0xff]
        %v301 = vld [vmem:[%s236 + $0x20] sm:$0xff]
        %v302 = vld [vmem:[%s236 + $0x28] sm:$0xff]
        %v303 = vld [vmem:[%s236 + $0x30] sm:$0xff]
        %v304 = vld [vmem:[%s236 + $0x38] sm:$0xff]
        %v305 = vld [vmem:[%s236 + $0x40] sm:$0xff]
        %v306 = vld [vmem:[%s236 + $0x48] sm:$0xff]
        %v307 = vld [vmem:[%s236 + $0x50] sm:$0xff]
        %v308 = vld [vmem:[%s236 + $0x58] sm:$0xff]
        %v309 = vld [vmem:[%s236 + $0x60] sm:$0xff]
        %v310 = vld [vmem:[%s236 + $0x68] sm:$0xff]
        %v311 = vld [vmem:[%s236 + $0x70] sm:$0xff]
        %v312 = vld [vmem:[%s236 + $0x78] sm:$0xff]
        %v313 = vld [vmem:[%s236 + $0x80] sm:$0xff]
        %v314 = vld [vmem:[%s236 + $0x88] sm:$0xff]
        %v315 = vld [vmem:[%s236 + $0x90] sm:$0xff]
        %v316 = vld [vmem:[%s236 + $0x98] sm:$0xff]
        %v317 = vld [vmem:[%s236 + $0xa0] sm:$0xff]
        %v318 = vld [vmem:[%s236 + $0xa8] sm:$0xff]
        %v319 = vld [vmem:[%s236 + $0xb0] sm:$0xff]
        %v320 = vld [vmem:[%s236 + $0xb8] sm:$0xff]
        %v321 = vld [vmem:[%s236 + $0xc0] sm:$0xff]
        %v322 = vld [vmem:[%s236 + $0xc8] sm:$0xff]
        %v323 = vld [vmem:[%s236 + $0xd0] sm:$0xff]
        %v324 = vld [vmem:[%s236 + $0xd8] sm:$0xff]
        %v325 = vld [vmem:[%s236 + $0xe0] sm:$0xff]
        %v326 = vld [vmem:[%s236 + $0xe8] sm:$0xff]
        %v327 = vld [vmem:[%s236 + $0xf0] sm:$0xff]
        %v328 = vld [vmem:[%s236 + $0xf8] sm:$0xff]
        %v329 = vld [vmem:[%s236 + $0x100] sm:$0xff]
        %v330 = vld [vmem:[%s236 + $0x108] sm:$0xff]
        %v331 = vld [vmem:[%s236 + $0x110] sm:$0xff]
        %v332 = vld [vmem:[%s236 + $0x118] sm:$0xff]
        %v333 = vld [vmem:[%s236 + $0x120] sm:$0xff]
        %v334 = vld [vmem:[%s236 + $0x128] sm:$0xff]
        %v335 = vld [vmem:[%s236 + $0x130] sm:$0xff]
        %v336 = vld [vmem:[%s236 + $0x138] sm:$0xff]
        %v337 = vld [vmem:[%s236 + $0x140] sm:$0xff]
        %v338 = vld [vmem:[%s236 + $0x148] sm:$0xff]
        %v339 = vld [vmem:[%s236 + $0x150] sm:$0xff]
        %v340 = vld [vmem:[%s236 + $0x158] sm:$0xff]
        %v341 = vld [vmem:[%s236 + $0x160] sm:$0xff]
        %v342 = vld [vmem:[%s236 + $0x168] sm:$0xff]
        %v343 = vld [vmem:[%s236 + $0x170] sm:$0xff]
        %v344 = vld [vmem:[%s236 + $0x178] sm:$0xff]
        %v345 = vld [vmem:[%s236 + $0x180] sm:$0xff]
        %v346 = vld [vmem:[%s236 + $0x188] sm:$0xff]
        %v347 = vld [vmem:[%s236 + $0x190] sm:$0xff]
        %v348 = vld [vmem:[%s236 + $0x198] sm:$0xff]
        %v349 = vld [vmem:[%s236 + $0x1a0] sm:$0xff]
        %v350 = vld [vmem:[%s236 + $0x1a8] sm:$0xff]
        %v351 = vld [vmem:[%s236 + $0x1b0] sm:$0xff]
        %v352 = vld [vmem:[%s236 + $0x1b8] sm:$0xff]
        %v353 = vld [vmem:[%s236 + $0x1c0] sm:$0xff]
        %v354 = vld [vmem:[%s236 + $0x1c8] sm:$0xff]
        %v355 = vld [vmem:[%s236 + $0x1d0] sm:$0xff]
        %v356 = vld [vmem:[%s236 + $0x1d8] sm:$0xff]
        %v357 = vld [vmem:[%s236 + $0x1e0] sm:$0xff]
        %v358 = vld [vmem:[%s236 + $0x1e8] sm:$0xff]
        %v359 = vld [vmem:[%s236 + $0x1f0] sm:$0xff]
        %v360 = vld [vmem:[%s236 + $0x1f8] sm:$0xff]
        %v361 = vld [vmem:[%s236 + $0x200] sm:$0xff]
        %v362 = vld [vmem:[%s236 + $0x208] sm:$0xff]
        %v363 = vld [vmem:[%s236 + $0x210] sm:$0xff]
        %v364 = vld [vmem:[%s236 + $0x218] sm:$0xff]
        %v365 = vld [vmem:[%s236 + $0x220] sm:$0xff]
        %v366 = vld [vmem:[%s236 + $0x228] sm:$0xff]
        %v367 = vld [vmem:[%s236 + $0x230] sm:$0xff]
        %v368 = vld [vmem:[%s236 + $0x238] sm:$0xff]
        %v369 = vld [vmem:[%s236 + $0x240] sm:$0xff]
        %v370 = vld [vmem:[%s236 + $0x248] sm:$0xff]
        %v371 = vld [vmem:[%s236 + $0x250] sm:$0xff]
        %v372 = vld [vmem:[%s236 + $0x258] sm:$0xff]
        %v373 = vld [vmem:[%s236 + $0x260] sm:$0xff]
        %v374 = vld [vmem:[%s236 + $0x268] sm:$0xff]
        %v375 = vld [vmem:[%s236 + $0x270] sm:$0xff]
        %v376 = vld [vmem:[%s236 + $0x278] sm:$0xff]
        %v377 = vld [vmem:[%s236 + $0x280] sm:$0xff]
        %v378 = vld [vmem:[%s236 + $0x288] sm:$0xff]
        %v379 = vld [vmem:[%s236 + $0x290] sm:$0xff]
        %v380 = vld [vmem:[%s236 + $0x298] sm:$0xff]
        %v381 = vld [vmem:[%s236 + $0x2a0] sm:$0xff]
        %v382 = vld [vmem:[%s236 + $0x2a8] sm:$0xff]
        %v383 = vld [vmem:[%s236 + $0x2b0] sm:$0xff]
        %v384 = vld [vmem:[%s236 + $0x2b8] sm:$0xff]
        %v385 = vld [vmem:[%s236 + $0x2c0] sm:$0xff]
        %v386 = vld [vmem:[%s236 + $0x2c8] sm:$0xff]
        %v387 = vld [vmem:[%s236 + $0x2d0] sm:$0xff]
        %v388 = vld [vmem:[%s236 + $0x2d8] sm:$0xff]
        %v389 = vld [vmem:[%s236 + $0x2e0] sm:$0xff]
        %v390 = vld [vmem:[%s236 + $0x2e8] sm:$0xff]
        %v391 = vld [vmem:[%s236 + $0x2f0] sm:$0xff]
        %v392 = vld [vmem:[%s236 + $0x2f8] sm:$0xff]
        %v393 = vld [vmem:[%s236 + $0x300] sm:$0xff]
        %v394 = vld [vmem:[%s236 + $0x308] sm:$0xff]
        %v395 = vld [vmem:[%s236 + $0x310] sm:$0xff]
        %v396 = vld [vmem:[%s236 + $0x318] sm:$0xff]
        %v397 = vld [vmem:[%s236 + $0x320] sm:$0xff]
        %v398 = vld [vmem:[%s236 + $0x328] sm:$0xff]
        %v399 = vld [vmem:[%s236 + $0x330] sm:$0xff]
        %v400 = vld [vmem:[%s236 + $0x338] sm:$0xff]
        %v401 = vld [vmem:[%s236 + $0x340] sm:$0xff]
        %v402 = vld [vmem:[%s236 + $0x348] sm:$0xff]
        %v403 = vld [vmem:[%s236 + $0x350] sm:$0xff]
        %v404 = vld [vmem:[%s236 + $0x358] sm:$0xff]
        %v405 = vld [vmem:[%s236 + $0x360] sm:$0xff]
        %v406 = vld [vmem:[%s236 + $0x368] sm:$0xff]
        %v407 = vld [vmem:[%s236 + $0x370] sm:$0xff]
        %v408 = vld [vmem:[%s236 + $0x378] sm:$0xff]
        %v409 = vld [vmem:[%s236 + $0x380] sm:$0xff]
        %v410 = vld [vmem:[%s236 + $0x388] sm:$0xff]
        %v411 = vld [vmem:[%s236 + $0x390] sm:$0xff]
        %v412 = vld [vmem:[%s236 + $0x398] sm:$0xff]
        %v413 = vld [vmem:[%s236 + $0x3a0] sm:$0xff]
        %v414 = vld [vmem:[%s236 + $0x3a8] sm:$0xff]
        %v415 = vld [vmem:[%s236 + $0x3b0] sm:$0xff]
        %v416 = vld [vmem:[%s236 + $0x3b8] sm:$0xff]
        %v417 = vld [vmem:[%s236 + $0x3c0] sm:$0xff]
        %v418 = vld [vmem:[%s236 + $0x3c8] sm:$0xff]
        %v419 = vld [vmem:[%s236 + $0x3d0] sm:$0xff]
        %v420 = vld [vmem:[%s236 + $0x3d8] sm:$0xff]
        %v421 = vld [vmem:[%s236 + $0x3e0] sm:$0xff]
        %v422 = vld [vmem:[%s236 + $0x3e8] sm:$0xff]
        %v423 = vld [vmem:[%s236 + $0x3f0] sm:$0xff]
        %v424 = vld [vmem:[%s236 + $0x3f8] sm:$0xff]
        %v425 = vld [vmem:[%s236 + $0x400] sm:$0xff]
        %v426 = vld [vmem:[%s236 + $0x408] sm:$0xff]
        %v427 = vld [vmem:[%s236 + $0x410] sm:$0xff]
        %v428 = vld [vmem:[%s236 + $0x418] sm:$0xff]
        %v429 = vld [vmem:[%s236 + $0x420] sm:$0xff]
        %v430 = vld [vmem:[%s236 + $0x428] sm:$0xff]
        %v431 = vld [vmem:[%s236 + $0x430] sm:$0xff]
        %v432 = vld [vmem:[%s236 + $0x438] sm:$0xff]
        %v433 = vld [vmem:[%s236 + $0x440] sm:$0xff]
        %v434 = vld [vmem:[%s236 + $0x448] sm:$0xff]
        %v435 = vld [vmem:[%s236 + $0x450] sm:$0xff]
        %v436 = vld [vmem:[%s236 + $0x458] sm:$0xff]
        %v437 = vld [vmem:[%s236 + $0x460] sm:$0xff]
        %v438 = vld [vmem:[%s236 + $0x468] sm:$0xff]
        %v439 = vld [vmem:[%s236 + $0x470] sm:$0xff]
        %v440 = vld [vmem:[%s236 + $0x478] sm:$0xff]
        %v441 = vld [vmem:[%s236 + $0x480] sm:$0xff]
        %v442 = vld [vmem:[%s236 + $0x488] sm:$0xff]
        %v443 = vld [vmem:[%s236 + $0x490] sm:$0xff]
        %v444 = vld [vmem:[%s236 + $0x498] sm:$0xff]
        %v445 = vld [vmem:[%s236 + $0x4a0] sm:$0xff]
        %v446 = vld [vmem:[%s236 + $0x4a8] sm:$0xff]
        %v447 = vld [vmem:[%s236 + $0x4b0] sm:$0xff]
        %v448 = vld [vmem:[%s236 + $0x4b8] sm:$0xff]
        %v449 = vld [vmem:[%s236 + $0x4c0] sm:$0xff]
        %v450 = vld [vmem:[%s236 + $0x4c8] sm:$0xff]
        %v451 = vld [vmem:[%s236 + $0x4d0] sm:$0xff]
        %v452 = vld [vmem:[%s236 + $0x4d8] sm:$0xff]
        %v453 = vld [vmem:[%s236 + $0x4e0] sm:$0xff]
        %v454 = vld [vmem:[%s236 + $0x4e8] sm:$0xff]
        %v455 = vld [vmem:[%s236 + $0x4f0] sm:$0xff]
        %v456 = vld [vmem:[%s236 + $0x4f8] sm:$0xff]
        %v457 = vld [vmem:[%s236 + $0x500] sm:$0xff]
        %v458 = vld [vmem:[%s236 + $0x508] sm:$0xff]
        %v459 = vld [vmem:[%s236 + $0x510] sm:$0xff]
        %v460 = vld [vmem:[%s236 + $0x518] sm:$0xff]
        %v461 = vld [vmem:[%s236 + $0x520] sm:$0xff]
        %v462 = vld [vmem:[%s236 + $0x528] sm:$0xff]
        %v463 = vld [vmem:[%s236 + $0x530] sm:$0xff]
        %v464 = vld [vmem:[%s236 + $0x538] sm:$0xff]
        %v465 = vld [vmem:[%s236 + $0x540] sm:$0xff]
        %v466 = vld [vmem:[%s236 + $0x548] sm:$0xff]
        %v467 = vld [vmem:[%s236 + $0x550] sm:$0xff]
        %v468 = vld [vmem:[%s236 + $0x558] sm:$0xff]
        %v469 = vld [vmem:[%s236 + $0x560] sm:$0xff]
        %v470 = vld [vmem:[%s236 + $0x568] sm:$0xff]
        %v471 = vld [vmem:[%s236 + $0x570] sm:$0xff]
        %v472 = vld [vmem:[%s236 + $0x578] sm:$0xff]
        %v473 = vld [vmem:[%s236 + $0x580] sm:$0xff]
        %v474 = vld [vmem:[%s236 + $0x588] sm:$0xff]
        %v475 = vld [vmem:[%s236 + $0x590] sm:$0xff]
        %v476 = vld [vmem:[%s236 + $0x598] sm:$0xff]
        %v477 = vld [vmem:[%s236 + $0x5a0] sm:$0xff]
        %v478 = vld [vmem:[%s236 + $0x5a8] sm:$0xff]
        %v479 = vld [vmem:[%s236 + $0x5b0] sm:$0xff]
        %v480 = vld [vmem:[%s236 + $0x5b8] sm:$0xff]
        %v481 = vld [vmem:[%s236 + $0x5c0] sm:$0xff]
        %v482 = vld [vmem:[%s236 + $0x5c8] sm:$0xff]
        %v483 = vld [vmem:[%s236 + $0x5d0] sm:$0xff]
        %v484 = vld [vmem:[%s236 + $0x5d8] sm:$0xff]
        %v485 = vld [vmem:[%s236 + $0x5e0] sm:$0xff]
        %v486 = vld [vmem:[%s236 + $0x5e8] sm:$0xff]
        %v487 = vld [vmem:[%s236 + $0x5f0] sm:$0xff]
        %v488 = vld [vmem:[%s236 + $0x5f8] sm:$0xff]
        %v489 = vld [vmem:[%s236 + $0x600] sm:$0xff]
        %v490 = vld [vmem:[%s236 + $0x608] sm:$0xff]
        %v491 = vld [vmem:[%s236 + $0x610] sm:$0xff]
        %v492 = vld [vmem:[%s236 + $0x618] sm:$0xff]
        %v493 = vld [vmem:[%s236 + $0x620] sm:$0xff]
        %v494 = vld [vmem:[%s236 + $0x628] sm:$0xff]
        %v495 = vld [vmem:[%s236 + $0x630] sm:$0xff]
        %v496 = vld [vmem:[%s236 + $0x638] sm:$0xff]
        %v497 = vld [vmem:[%s236 + $0x640] sm:$0xff]
        %v498 = vld [vmem:[%s236 + $0x648] sm:$0xff]
        %v499 = vld [vmem:[%s236 + $0x650] sm:$0xff]
        %v500 = vld [vmem:[%s236 + $0x658] sm:$0xff]
        %v501 = vld [vmem:[%s236 + $0x660] sm:$0xff]
        %v502 = vld [vmem:[%s236 + $0x668] sm:$0xff]
        %v503 = vld [vmem:[%s236 + $0x670] sm:$0xff]
        %v504 = vld [vmem:[%s236 + $0x678] sm:$0xff]
        %v505 = vld [vmem:[%s236 + $0x680] sm:$0xff]
        %v506 = vld [vmem:[%s236 + $0x688] sm:$0xff]
        %v507 = vld [vmem:[%s236 + $0x690] sm:$0xff]
        %v508 = vld [vmem:[%s236 + $0x698] sm:$0xff]
        %v509 = vld [vmem:[%s236 + $0x6a0] sm:$0xff]
        %v510 = vld [vmem:[%s236 + $0x6a8] sm:$0xff]
        %v511 = vld [vmem:[%s236 + $0x6b0] sm:$0xff]
        %v512 = vld [vmem:[%s236 + $0x6b8] sm:$0xff]
        %v513 = vld [vmem:[%s236 + $0x6c0] sm:$0xff]
        %v514 = vld [vmem:[%s236 + $0x6c8] sm:$0xff]
        %v515 = vld [vmem:[%s236 + $0x6d0] sm:$0xff]
        %v516 = vld [vmem:[%s236 + $0x6d8] sm:$0xff]
        %v517 = vld [vmem:[%s236 + $0x6e0] sm:$0xff]
        %v518 = vld [vmem:[%s236 + $0x6e8] sm:$0xff]
        %v519 = vld [vmem:[%s236 + $0x6f0] sm:$0xff]
        %v520 = vld [vmem:[%s236 + $0x6f8] sm:$0xff]
        %v521 = vld [vmem:[%s236 + $0x700] sm:$0xff]
        %v522 = vld [vmem:[%s236 + $0x708] sm:$0xff]
        %v523 = vld [vmem:[%s236 + $0x710] sm:$0xff]
        %v524 = vld [vmem:[%s236 + $0x718] sm:$0xff]
        %v525 = vld [vmem:[%s236 + $0x720] sm:$0xff]
        %v526 = vld [vmem:[%s236 + $0x728] sm:$0xff]
        %v527 = vld [vmem:[%s236 + $0x730] sm:$0xff]
        %v528 = vld [vmem:[%s236 + $0x738] sm:$0xff]
        %v529 = vld [vmem:[%s236 + $0x740] sm:$0xff]
        %v530 = vld [vmem:[%s236 + $0x748] sm:$0xff]
        %v531 = vld [vmem:[%s236 + $0x750] sm:$0xff]
        %v532 = vld [vmem:[%s236 + $0x758] sm:$0xff]
        %v533 = vld [vmem:[%s236 + $0x760] sm:$0xff]
        %v534 = vld [vmem:[%s236 + $0x768] sm:$0xff]
        %v535 = vld [vmem:[%s236 + $0x770] sm:$0xff]
        %v536 = vld [vmem:[%s236 + $0x778] sm:$0xff]
        %v537 = vld [vmem:[%s236 + $0x780] sm:$0xff]
        %v538 = vld [vmem:[%s236 + $0x788] sm:$0xff]
        %v539 = vld [vmem:[%s236 + $0x790] sm:$0xff]
        %v540 = vld [vmem:[%s236 + $0x798] sm:$0xff]
        %v541 = vld [vmem:[%s236 + $0x7a0] sm:$0xff]
        %v542 = vld [vmem:[%s236 + $0x7a8] sm:$0xff]
        %v543 = vld [vmem:[%s236 + $0x7b0] sm:$0xff]
        %v544 = vld [vmem:[%s236 + $0x7b8] sm:$0xff]
        %v545 = vld [vmem:[%s236 + $0x7c0] sm:$0xff]
        %v546 = vld [vmem:[%s236 + $0x7c8] sm:$0xff]
        %v547 = vld [vmem:[%s236 + $0x7d0] sm:$0xff]
        %v548 = vld [vmem:[%s236 + $0x7d8] sm:$0xff]
        %v549 = vld [vmem:[%s236 + $0x7e0] sm:$0xff]
        %v550 = vld [vmem:[%s236 + $0x7e8] sm:$0xff]
        %v551 = vld [vmem:[%s236 + $0x7f0] sm:$0xff]
        %v552 = vld [vmem:[%s236 + $0x7f8] sm:$0xff]
        %v553 = vld [vmem:[%s236 + $0x800] sm:$0xff]
        %v554 = vld [vmem:[%s236 + $0x808] sm:$0xff]
        %v555 = vld [vmem:[%s236 + $0x810] sm:$0xff]
        %v556 = vld [vmem:[%s236 + $0x818] sm:$0xff]
        %v557 = vld [vmem:[%s236 + $0x820] sm:$0xff]
        %v558 = vld [vmem:[%s236 + $0x828] sm:$0xff]
        %v559 = vld [vmem:[%s236 + $0x830] sm:$0xff]
        %v560 = vld [vmem:[%s236 + $0x838] sm:$0xff]
        %v561 = vld [vmem:[%s236 + $0x840] sm:$0xff]
        %v562 = vld [vmem:[%s236 + $0x848] sm:$0xff]
        %v563 = vld [vmem:[%s236 + $0x850] sm:$0xff]
        %v564 = vld [vmem:[%s236 + $0x858] sm:$0xff]
        %v565 = vld [vmem:[%s236 + $0x860] sm:$0xff]
        %v566 = vld [vmem:[%s236 + $0x868] sm:$0xff]
        %v567 = vld [vmem:[%s236 + $0x870] sm:$0xff]
        %v568 = vld [vmem:[%s236 + $0x878] sm:$0xff]
        %v569 = vld [vmem:[%s236 + $0x880] sm:$0xff]
        %v570 = vld [vmem:[%s236 + $0x888] sm:$0xff]
        %v571 = vld [vmem:[%s236 + $0x890] sm:$0xff]
        %v572 = vld [vmem:[%s236 + $0x898] sm:$0xff]
        %v573 = vld [vmem:[%s236 + $0x8a0] sm:$0xff]
        %v574 = vld [vmem:[%s236 + $0x8a8] sm:$0xff]
        %v575 = vld [vmem:[%s236 + $0x8b0] sm:$0xff]
        %v576 = vld [vmem:[%s236 + $0x8b8] sm:$0xff]
        %v577 = vld [vmem:[%s236 + $0x8c0] sm:$0xff]
        %v578 = vld [vmem:[%s236 + $0x8c8] sm:$0xff]
        %v579 = vld [vmem:[%s236 + $0x8d0] sm:$0xff]
        %v580 = vld [vmem:[%s236 + $0x8d8] sm:$0xff]
        %v581 = vld [vmem:[%s236 + $0x8e0] sm:$0xff]
        %v582 = vld [vmem:[%s236 + $0x8e8] sm:$0xff]
        %v583 = vld [vmem:[%s236 + $0x8f0] sm:$0xff]
        %v584 = vld [vmem:[%s236 + $0x8f8] sm:$0xff]
        %v585 = vld [vmem:[%s236 + $0x900] sm:$0xff]
        %v586 = vld [vmem:[%s236 + $0x908] sm:$0xff]
        %v587 = vld [vmem:[%s236 + $0x910] sm:$0xff]
        %v588 = vld [vmem:[%s236 + $0x918] sm:$0xff]
        %v589 = vld [vmem:[%s236 + $0x920] sm:$0xff]
        %v590 = vld [vmem:[%s236 + $0x928] sm:$0xff]
        %v591 = vld [vmem:[%s236 + $0x930] sm:$0xff]
        %v592 = vld [vmem:[%s236 + $0x938] sm:$0xff]
        %v593 = vld [vmem:[%s236 + $0x940] sm:$0xff]
        %v594 = vld [vmem:[%s236 + $0x948] sm:$0xff]
        %v595 = vld [vmem:[%s236 + $0x950] sm:$0xff]
        %v596 = vld [vmem:[%s236 + $0x958] sm:$0xff]
        %v597 = vld [vmem:[%s236 + $0x960] sm:$0xff]
        %v598 = vld [vmem:[%s236 + $0x968] sm:$0xff]
        %v599 = vld [vmem:[%s236 + $0x970] sm:$0xff]
        %v600 = vld [vmem:[%s236 + $0x978] sm:$0xff]
        %v601 = vld [vmem:[%s236 + $0x980] sm:$0xff]
        %v602 = vld [vmem:[%s236 + $0x988] sm:$0xff]
        %v603 = vld [vmem:[%s236 + $0x990] sm:$0xff]
        %v604 = vld [vmem:[%s236 + $0x998] sm:$0xff]
        %v605 = vld [vmem:[%s236 + $0x9a0] sm:$0xff]
        %v606 = vld [vmem:[%s236 + $0x9a8] sm:$0xff]
        %v607 = vld [vmem:[%s236 + $0x9b0] sm:$0xff]
        %v608 = vld [vmem:[%s236 + $0x9b8] sm:$0xff]
        %v609 = vld [vmem:[%s236 + $0x9c0] sm:$0xff]
        %v610 = vld [vmem:[%s236 + $0x9c8] sm:$0xff]
        %v611 = vld [vmem:[%s236 + $0x9d0] sm:$0xff]
        %v612 = vld [vmem:[%s236 + $0x9d8] sm:$0xff]
        %v613 = vld [vmem:[%s236 + $0x9e0] sm:$0xff]
        %v614 = vld [vmem:[%s236 + $0x9e8] sm:$0xff]
        %v615 = vld [vmem:[%s236 + $0x9f0] sm:$0xff]
        %v616 = vld [vmem:[%s236 + $0x9f8] sm:$0xff]
        %v617 = vld [vmem:[%s236 + $0xa00] sm:$0xff]
        %v618 = vld [vmem:[%s236 + $0xa08] sm:$0xff]
        %v619 = vld [vmem:[%s236 + $0xa10] sm:$0xff]
        %v620 = vld [vmem:[%s236 + $0xa18] sm:$0xff]
        %v621 = vld [vmem:[%s236 + $0xa20] sm:$0xff]
        %v622 = vld [vmem:[%s236 + $0xa28] sm:$0xff]
        %v623 = vld [vmem:[%s236 + $0xa30] sm:$0xff]
        %v624 = vld [vmem:[%s236 + $0xa38] sm:$0xff]
        %v625 = vld [vmem:[%s236 + $0xa40] sm:$0xff]
        %v626 = vld [vmem:[%s236 + $0xa48] sm:$0xff]
        %v627 = vld [vmem:[%s236 + $0xa50] sm:$0xff]
        %v628 = vld [vmem:[%s236 + $0xa58] sm:$0xff]
        %v629 = vld [vmem:[%s236 + $0xa60] sm:$0xff]
        %v630 = vld [vmem:[%s236 + $0xa68] sm:$0xff]
        %v631 = vld [vmem:[%s236 + $0xa70] sm:$0xff]
        %v632 = vld [vmem:[%s236 + $0xa78] sm:$0xff]
        %v633 = vld [vmem:[%s236 + $0xa80] sm:$0xff]
        %v634 = vld [vmem:[%s236 + $0xa88] sm:$0xff]
        %v635 = vld [vmem:[%s236 + $0xa90] sm:$0xff]
        %v636 = vld [vmem:[%s236 + $0xa98] sm:$0xff]
        %v637 = vld [vmem:[%s236 + $0xaa0] sm:$0xff]
        %v638 = vld [vmem:[%s236 + $0xaa8] sm:$0xff]
        %v639 = vld [vmem:[%s236 + $0xab0] sm:$0xff]
        %v640 = vld [vmem:[%s236 + $0xab8] sm:$0xff]
        %v641 = vld [vmem:[%s236 + $0xac0] sm:$0xff]
        %v642 = vld [vmem:[%s236 + $0xac8] sm:$0xff]
        %v643 = vld [vmem:[%s236 + $0xad0] sm:$0xff]
        %v644 = vld [vmem:[%s236 + $0xad8] sm:$0xff]
        %v645 = vld [vmem:[%s236 + $0xae0] sm:$0xff]
        %v646 = vld [vmem:[%s236 + $0xae8] sm:$0xff]
        %v647 = vld [vmem:[%s236 + $0xaf0] sm:$0xff]
        %v648 = vld [vmem:[%s236 + $0xaf8] sm:$0xff]
        %v649 = vld [vmem:[%s236 + $0xb00] sm:$0xff]
        %v650 = vld [vmem:[%s236 + $0xb08] sm:$0xff]
        %v651 = vld [vmem:[%s236 + $0xb10] sm:$0xff]
        %v652 = vld [vmem:[%s236 + $0xb18] sm:$0xff]
        %v653 = vld [vmem:[%s236 + $0xb20] sm:$0xff]
        %v654 = vld [vmem:[%s236 + $0xb28] sm:$0xff]
        %v655 = vld [vmem:[%s236 + $0xb30] sm:$0xff]
        %v656 = vld [vmem:[%s236 + $0xb38] sm:$0xff]
        %v657 = vld [vmem:[%s236 + $0xb40] sm:$0xff]
        %v658 = vld [vmem:[%s236 + $0xb48] sm:$0xff]
        %v659 = vld [vmem:[%s236 + $0xb50] sm:$0xff]
        %v660 = vld [vmem:[%s236 + $0xb58] sm:$0xff]
        %v661 = vld [vmem:[%s236 + $0xb60] sm:$0xff]
        %v662 = vld [vmem:[%s236 + $0xb68] sm:$0xff]
        %v663 = vld [vmem:[%s236 + $0xb70] sm:$0xff]
        %v664 = vld [vmem:[%s236 + $0xb78] sm:$0xff]
        %v665 = vld [vmem:[%s236 + $0xb80] sm:$0xff]
        %v666 = vld [vmem:[%s236 + $0xb88] sm:$0xff]
        %v667 = vld [vmem:[%s236 + $0xb90] sm:$0xff]
        %v668 = vld [vmem:[%s236 + $0xb98] sm:$0xff]
        %v669 = vld [vmem:[%s236 + $0xba0] sm:$0xff]
        %v670 = vld [vmem:[%s236 + $0xba8] sm:$0xff]
        %v671 = vld [vmem:[%s236 + $0xbb0] sm:$0xff]
        %v672 = vld [vmem:[%s236 + $0xbb8] sm:$0xff]
        %v673 = vld [vmem:[%s236 + $0xbc0] sm:$0xff]
        %v674 = vld [vmem:[%s236 + $0xbc8] sm:$0xff]
        %v675 = vld [vmem:[%s236 + $0xbd0] sm:$0xff]
        %v676 = vld [vmem:[%s236 + $0xbd8] sm:$0xff]
        %v677 = vld [vmem:[%s236 + $0xbe0] sm:$0xff]
        %v678 = vld [vmem:[%s236 + $0xbe8] sm:$0xff]
        %v679 = vld [vmem:[%s236 + $0xbf0] sm:$0xff]
        %v680 = vld [vmem:[%s236 + $0xbf8] sm:$0xff]
        %v681 = vld [vmem:[%s236 + $0xc00] sm:$0xff]
        %v682 = vld [vmem:[%s236 + $0xc08] sm:$0xff]
        %v683 = vld [vmem:[%s236 + $0xc10] sm:$0xff]
        %v684 = vld [vmem:[%s236 + $0xc18] sm:$0xff]
        %v685 = vld [vmem:[%s236 + $0xc20] sm:$0xff]
        %v686 = vld [vmem:[%s236 + $0xc28] sm:$0xff]
        %v687 = vld [vmem:[%s236 + $0xc30] sm:$0xff]
        %v688 = vld [vmem:[%s236 + $0xc38] sm:$0xff]
        %v689 = vld [vmem:[%s236 + $0xc40] sm:$0xff]
        %v690 = vld [vmem:[%s236 + $0xc48] sm:$0xff]
        %v691 = vld [vmem:[%s236 + $0xc50] sm:$0xff]
        %v692 = vld [vmem:[%s236 + $0xc58] sm:$0xff]
        %v693 = vld [vmem:[%s236 + $0xc60] sm:$0xff]
        %v694 = vld [vmem:[%s236 + $0xc68] sm:$0xff]
        %v695 = vld [vmem:[%s236 + $0xc70] sm:$0xff]
        %v696 = vld [vmem:[%s236 + $0xc78] sm:$0xff]
        %v697 = vld [vmem:[%s236 + $0xc80] sm:$0xff]
        %v698 = vld [vmem:[%s236 + $0xc88] sm:$0xff]
        %v699 = vld [vmem:[%s236 + $0xc90] sm:$0xff]
        %v700 = vld [vmem:[%s236 + $0xc98] sm:$0xff]
        %v701 = vld [vmem:[%s236 + $0xca0] sm:$0xff]
        %v702 = vld [vmem:[%s236 + $0xca8] sm:$0xff]
        %v703 = vld [vmem:[%s236 + $0xcb0] sm:$0xff]
        %v704 = vld [vmem:[%s236 + $0xcb8] sm:$0xff]
        %v705 = vld [vmem:[%s236 + $0xcc0] sm:$0xff]
        %v706 = vld [vmem:[%s236 + $0xcc8] sm:$0xff]
        %v707 = vld [vmem:[%s236 + $0xcd0] sm:$0xff]
        %v708 = vld [vmem:[%s236 + $0xcd8] sm:$0xff]
        %v709 = vld [vmem:[%s236 + $0xce0] sm:$0xff]
        %v710 = vld [vmem:[%s236 + $0xce8] sm:$0xff]
        %v711 = vld [vmem:[%s236 + $0xcf0] sm:$0xff]
        %v712 = vld [vmem:[%s236 + $0xcf8] sm:$0xff]
        %v713 = vld [vmem:[%s236 + $0xd00] sm:$0xff]
        %v714 = vld [vmem:[%s236 + $0xd08] sm:$0xff]
        %v715 = vld [vmem:[%s236 + $0xd10] sm:$0xff]
        %v716 = vld [vmem:[%s236 + $0xd18] sm:$0xff]
        %v717 = vld [vmem:[%s236 + $0xd20] sm:$0xff]
        %v718 = vld [vmem:[%s236 + $0xd28] sm:$0xff]
        %v719 = vld [vmem:[%s236 + $0xd30] sm:$0xff]
        %v720 = vld [vmem:[%s236 + $0xd38] sm:$0xff]
        %v721 = vld [vmem:[%s236 + $0xd40] sm:$0xff]
        %v722 = vld [vmem:[%s236 + $0xd48] sm:$0xff]
        %v723 = vld [vmem:[%s236 + $0xd50] sm:$0xff]
        %v724 = vld [vmem:[%s236 + $0xd58] sm:$0xff]
        %v725 = vld [vmem:[%s236 + $0xd60] sm:$0xff]
        %v726 = vld [vmem:[%s236 + $0xd68] sm:$0xff]
        %v727 = vld [vmem:[%s236 + $0xd70] sm:$0xff]
        %v728 = vld [vmem:[%s236 + $0xd78] sm:$0xff]
        %v729 = vld [vmem:[%s236 + $0xd80] sm:$0xff]
        %v730 = vld [vmem:[%s236 + $0xd88] sm:$0xff]
        %v731 = vld [vmem:[%s236 + $0xd90] sm:$0xff]
        %v732 = vld [vmem:[%s236 + $0xd98] sm:$0xff]
        %v733 = vld [vmem:[%s236 + $0xda0] sm:$0xff]
        %v734 = vld [vmem:[%s236 + $0xda8] sm:$0xff]
        %v735 = vld [vmem:[%s236 + $0xdb0] sm:$0xff]
        %v736 = vld [vmem:[%s236 + $0xdb8] sm:$0xff]
        %v737 = vld [vmem:[%s236 + $0xdc0] sm:$0xff]
        %v738 = vld [vmem:[%s236 + $0xdc8] sm:$0xff]
        %v739 = vld [vmem:[%s236 + $0xdd0] sm:$0xff]
        %v740 = vld [vmem:[%s236 + $0xdd8] sm:$0xff]
        %v741 = vld [vmem:[%s236 + $0xde0] sm:$0xff]
        %v742 = vld [vmem:[%s236 + $0xde8] sm:$0xff]
        %v743 = vld [vmem:[%s236 + $0xdf0] sm:$0xff]
        %v744 = vld [vmem:[%s236 + $0xdf8] sm:$0xff]
        %v745 = vld [vmem:[%s236 + $0xe00] sm:$0xff]
        %v746 = vld [vmem:[%s236 + $0xe08] sm:$0xff]
        %v747 = vld [vmem:[%s236 + $0xe10] sm:$0xff]
        %v748 = vld [vmem:[%s236 + $0xe18] sm:$0xff]
        %v749 = vld [vmem:[%s236 + $0xe20] sm:$0xff]
        %v750 = vld [vmem:[%s236 + $0xe28] sm:$0xff]
        %v751 = vld [vmem:[%s236 + $0xe30] sm:$0xff]
        %v752 = vld [vmem:[%s236 + $0xe38] sm:$0xff]
        %v753 = vld [vmem:[%s236 + $0xe40] sm:$0xff]
        %v754 = vld [vmem:[%s236 + $0xe48] sm:$0xff]
        %v755 = vld [vmem:[%s236 + $0xe50] sm:$0xff]
        %v756 = vld [vmem:[%s236 + $0xe58] sm:$0xff]
        %v757 = vld [vmem:[%s236 + $0xe60] sm:$0xff]
        %v758 = vld [vmem:[%s236 + $0xe68] sm:$0xff]
        %v759 = vld [vmem:[%s236 + $0xe70] sm:$0xff]
        %v760 = vld [vmem:[%s236 + $0xe78] sm:$0xff]
        %v761 = vld [vmem:[%s236 + $0xe80] sm:$0xff]
        %v762 = vld [vmem:[%s236 + $0xe88] sm:$0xff]
        %v763 = vld [vmem:[%s236 + $0xe90] sm:$0xff]
        %v764 = vld [vmem:[%s236 + $0xe98] sm:$0xff]
        %v765 = vld [vmem:[%s236 + $0xea0] sm:$0xff]
        %v766 = vld [vmem:[%s236 + $0xea8] sm:$0xff]
        %v767 = vld [vmem:[%s236 + $0xeb0] sm:$0xff]
        %v768 = vld [vmem:[%s236 + $0xeb8] sm:$0xff]
        %v769 = vld [vmem:[%s236 + $0xec0] sm:$0xff]
        %v770 = vld [vmem:[%s236 + $0xec8] sm:$0xff]
        %v771 = vld [vmem:[%s236 + $0xed0] sm:$0xff]
        %v772 = vld [vmem:[%s236 + $0xed8] sm:$0xff]
        %v773 = vld [vmem:[%s236 + $0xee0] sm:$0xff]
        %v774 = vld [vmem:[%s236 + $0xee8] sm:$0xff]
        %v775 = vld [vmem:[%s236 + $0xef0] sm:$0xff]
        %v776 = vld [vmem:[%s236 + $0xef8] sm:$0xff]
        %v777 = vld [vmem:[%s236 + $0xf00] sm:$0xff]
        %v778 = vld [vmem:[%s236 + $0xf08] sm:$0xff]
        %v779 = vld [vmem:[%s236 + $0xf10] sm:$0xff]
        %v780 = vld [vmem:[%s236 + $0xf18] sm:$0xff]
        %v781 = vld [vmem:[%s236 + $0xf20] sm:$0xff]
        %v782 = vld [vmem:[%s236 + $0xf28] sm:$0xff]
        %v783 = vld [vmem:[%s236 + $0xf30] sm:$0xff]
        %v784 = vld [vmem:[%s236 + $0xf38] sm:$0xff]
        %v785 = vld [vmem:[%s236 + $0xf40] sm:$0xff]
        %v786 = vld [vmem:[%s236 + $0xf48] sm:$0xff]
        %v787 = vld [vmem:[%s236 + $0xf50] sm:$0xff]
        %v788 = vld [vmem:[%s236 + $0xf58] sm:$0xff]
        %v789 = vld [vmem:[%s236 + $0xf60] sm:$0xff]
        %v790 = vld [vmem:[%s236 + $0xf68] sm:$0xff]
        %v791 = vld [vmem:[%s236 + $0xf70] sm:$0xff]
        %v792 = vld [vmem:[%s236 + $0xf78] sm:$0xff]
        %v793 = vld [vmem:[%s236 + $0xf80] sm:$0xff]
        %v794 = vld [vmem:[%s236 + $0xf88] sm:$0xff]
        %v795 = vld [vmem:[%s236 + $0xf90] sm:$0xff]
        %v796 = vld [vmem:[%s236 + $0xf98] sm:$0xff]
        %v797 = vld [vmem:[%s236 + $0xfa0] sm:$0xff]
        %v798 = vld [vmem:[%s236 + $0xfa8] sm:$0xff]
        %v799 = vld [vmem:[%s236 + $0xfb0] sm:$0xff]
        %v800 = vld [vmem:[%s236 + $0xfb8] sm:$0xff]
        %v801 = vld [vmem:[%s236 + $0xfc0] sm:$0xff]
        %v802 = vld [vmem:[%s236 + $0xfc8] sm:$0xff]
        %v803 = vld [vmem:[%s236 + $0xfd0] sm:$0xff]
        %v804 = vld [vmem:[%s236 + $0xfd8] sm:$0xff]
        %v805 = vld [vmem:[%s236 + $0xfe0] sm:$0xff]
        %v806 = vld [vmem:[%s236 + $0xfe8] sm:$0xff]
        %v807 = vld [vmem:[%s236 + $0xff0] sm:$0xff]
        %v808 = vld [vmem:[%s236 + $0xff8] sm:$0xff]
        %v809 = vunpack.c.l.s8.bf16 %v297
        %v810 = vunpack.c.l.s8.bf16 %v298
        %v811 = vunpack.c.l.s8.bf16 %v299
        %v812 = vunpack.c.l.s8.bf16 %v300
        %v813 = vunpack.c.l.s8.bf16 %v301
        %v814 = vunpack.c.l.s8.bf16 %v302
        %v815 = vunpack.c.l.s8.bf16 %v303
        %v816 = vunpack.c.l.s8.bf16 %v304
        %v817 = vunpack.c.l.s8.bf16 %v305
        %v818 = vunpack.c.l.s8.bf16 %v306
        %v819 = vunpack.c.l.s8.bf16 %v307
        %v820 = vunpack.c.l.s8.bf16 %v308
        %v821 = vunpack.c.l.s8.bf16 %v309
        %v822 = vunpack.c.l.s8.bf16 %v310
        %v823 = vunpack.c.l.s8.bf16 %v311
        %v824 = vunpack.c.l.s8.bf16 %v312
        %v825 = vunpack.c.h.s8.bf16 %v297
        %v826 = vunpack.c.h.s8.bf16 %v298
        %v827 = vunpack.c.h.s8.bf16 %v299
        %v828 = vunpack.c.h.s8.bf16 %v300
        %v829 = vunpack.c.h.s8.bf16 %v301
        %v830 = vunpack.c.h.s8.bf16 %v302
        %v831 = vunpack.c.h.s8.bf16 %v303
        %v832 = vunpack.c.h.s8.bf16 %v304
        %v833 = vunpack.c.h.s8.bf16 %v305
        %v834 = vunpack.c.h.s8.bf16 %v306
        %v835 = vunpack.c.h.s8.bf16 %v307
        %v836 = vunpack.c.h.s8.bf16 %v308
        %v837 = vunpack.c.h.s8.bf16 %v309
        %v838 = vunpack.c.h.s8.bf16 %v310
        %v839 = vunpack.c.h.s8.bf16 %v311
        %v840 = vunpack.c.h.s8.bf16 %v312
        %v841 = vunpack.c.l.s8.bf16 %v313
        %v842 = vunpack.c.l.s8.bf16 %v314
        %v843 = vunpack.c.l.s8.bf16 %v315
        %v844 = vunpack.c.l.s8.bf16 %v316
        %v845 = vunpack.c.l.s8.bf16 %v317
        %v846 = vunpack.c.l.s8.bf16 %v318
        %v847 = vunpack.c.l.s8.bf16 %v319
        %v848 = vunpack.c.l.s8.bf16 %v320
        %v849 = vunpack.c.l.s8.bf16 %v321
        %v850 = vunpack.c.l.s8.bf16 %v322
        %v851 = vunpack.c.l.s8.bf16 %v323
        %v852 = vunpack.c.l.s8.bf16 %v324
        %v853 = vunpack.c.l.s8.bf16 %v325
        %v854 = vunpack.c.l.s8.bf16 %v326
        %v855 = vunpack.c.l.s8.bf16 %v327
        %v856 = vunpack.c.l.s8.bf16 %v328
        %v857 = vunpack.c.h.s8.bf16 %v313
        %v858 = vunpack.c.h.s8.bf16 %v314
        %v859 = vunpack.c.h.s8.bf16 %v315
        %v860 = vunpack.c.h.s8.bf16 %v316
        %v861 = vunpack.c.h.s8.bf16 %v317
        %v862 = vunpack.c.h.s8.bf16 %v318
        %v863 = vunpack.c.h.s8.bf16 %v319
        %v864 = vunpack.c.h.s8.bf16 %v320
        %v865 = vunpack.c.h.s8.bf16 %v321
        %v866 = vunpack.c.h.s8.bf16 %v322
        %v867 = vunpack.c.h.s8.bf16 %v323
        %v868 = vunpack.c.h.s8.bf16 %v324
        %v869 = vunpack.c.h.s8.bf16 %v325
        %v870 = vunpack.c.h.s8.bf16 %v326
        %v871 = vunpack.c.h.s8.bf16 %v327
        %v872 = vunpack.c.h.s8.bf16 %v328
        %v873 = vunpack.c.l.s8.bf16 %v329
        %v874 = vunpack.c.l.s8.bf16 %v330
        %v875 = vunpack.c.l.s8.bf16 %v331
        %v876 = vunpack.c.l.s8.bf16 %v332
        %v877 = vunpack.c.l.s8.bf16 %v333
        %v878 = vunpack.c.l.s8.bf16 %v334
        %v879 = vunpack.c.l.s8.bf16 %v335
        %v880 = vunpack.c.l.s8.bf16 %v336
        %v881 = vunpack.c.l.s8.bf16 %v337
        %v882 = vunpack.c.l.s8.bf16 %v338
        %v883 = vunpack.c.l.s8.bf16 %v339
        %v884 = vunpack.c.l.s8.bf16 %v340
        %v885 = vunpack.c.l.s8.bf16 %v341
        %v886 = vunpack.c.l.s8.bf16 %v342
        %v887 = vunpack.c.l.s8.bf16 %v343
        %v888 = vunpack.c.l.s8.bf16 %v344
        %v889 = vunpack.c.h.s8.bf16 %v329
        %v890 = vunpack.c.h.s8.bf16 %v330
        %v891 = vunpack.c.h.s8.bf16 %v331
        %v892 = vunpack.c.h.s8.bf16 %v332
        %v893 = vunpack.c.h.s8.bf16 %v333
        %v894 = vunpack.c.h.s8.bf16 %v334
        %v895 = vunpack.c.h.s8.bf16 %v335
        %v896 = vunpack.c.h.s8.bf16 %v336
        %v897 = vunpack.c.h.s8.bf16 %v337
        %v898 = vunpack.c.h.s8.bf16 %v338
        %v899 = vunpack.c.h.s8.bf16 %v339
        %v900 = vunpack.c.h.s8.bf16 %v340
        %v901 = vunpack.c.h.s8.bf16 %v341
        %v902 = vunpack.c.h.s8.bf16 %v342
        %v903 = vunpack.c.h.s8.bf16 %v343
        %v904 = vunpack.c.h.s8.bf16 %v344
        %v905 = vunpack.c.l.s8.bf16 %v345
        %v906 = vunpack.c.l.s8.bf16 %v346
        %v907 = vunpack.c.l.s8.bf16 %v347
        %v908 = vunpack.c.l.s8.bf16 %v348
        %v909 = vunpack.c.l.s8.bf16 %v349
        %v910 = vunpack.c.l.s8.bf16 %v350
        %v911 = vunpack.c.l.s8.bf16 %v351
        %v912 = vunpack.c.l.s8.bf16 %v352
        %v913 = vunpack.c.l.s8.bf16 %v353
        %v914 = vunpack.c.l.s8.bf16 %v354
        %v915 = vunpack.c.l.s8.bf16 %v355
        %v916 = vunpack.c.l.s8.bf16 %v356
        %v917 = vunpack.c.l.s8.bf16 %v357
        %v918 = vunpack.c.l.s8.bf16 %v358
        %v919 = vunpack.c.l.s8.bf16 %v359
        %v920 = vunpack.c.l.s8.bf16 %v360
        %v921 = vunpack.c.h.s8.bf16 %v345
        %v922 = vunpack.c.h.s8.bf16 %v346
        %v923 = vunpack.c.h.s8.bf16 %v347
        %v924 = vunpack.c.h.s8.bf16 %v348
        %v925 = vunpack.c.h.s8.bf16 %v349
        %v926 = vunpack.c.h.s8.bf16 %v350
        %v927 = vunpack.c.h.s8.bf16 %v351
        %v928 = vunpack.c.h.s8.bf16 %v352
        %v929 = vunpack.c.h.s8.bf16 %v353
        %v930 = vunpack.c.h.s8.bf16 %v354
        %v931 = vunpack.c.h.s8.bf16 %v355
        %v932 = vunpack.c.h.s8.bf16 %v356
        %v933 = vunpack.c.h.s8.bf16 %v357
        %v934 = vunpack.c.h.s8.bf16 %v358
        %v935 = vunpack.c.h.s8.bf16 %v359
        %v936 = vunpack.c.h.s8.bf16 %v360
        %v937 = vunpack.c.l.s8.bf16 %v361
        %v938 = vunpack.c.l.s8.bf16 %v362
        %v939 = vunpack.c.l.s8.bf16 %v363
        %v940 = vunpack.c.l.s8.bf16 %v364
        %v941 = vunpack.c.l.s8.bf16 %v365
        %v942 = vunpack.c.l.s8.bf16 %v366
        %v943 = vunpack.c.l.s8.bf16 %v367
        %v944 = vunpack.c.l.s8.bf16 %v368
        %v945 = vunpack.c.l.s8.bf16 %v369
        %v946 = vunpack.c.l.s8.bf16 %v370
        %v947 = vunpack.c.l.s8.bf16 %v371
        %v948 = vunpack.c.l.s8.bf16 %v372
        %v949 = vunpack.c.l.s8.bf16 %v373
        %v950 = vunpack.c.l.s8.bf16 %v374
        %v951 = vunpack.c.l.s8.bf16 %v375
        %v952 = vunpack.c.l.s8.bf16 %v376
        %v953 = vunpack.c.h.s8.bf16 %v361
        %v954 = vunpack.c.h.s8.bf16 %v362
        %v955 = vunpack.c.h.s8.bf16 %v363
        %v956 = vunpack.c.h.s8.bf16 %v364
        %v957 = vunpack.c.h.s8.bf16 %v365
        %v958 = vunpack.c.h.s8.bf16 %v366
        %v959 = vunpack.c.h.s8.bf16 %v367
        %v960 = vunpack.c.h.s8.bf16 %v368
        %v961 = vunpack.c.h.s8.bf16 %v369
        %v962 = vunpack.c.h.s8.bf16 %v370
        %v963 = vunpack.c.h.s8.bf16 %v371
        %v964 = vunpack.c.h.s8.bf16 %v372
        %v965 = vunpack.c.h.s8.bf16 %v373
        %v966 = vunpack.c.h.s8.bf16 %v374
        %v967 = vunpack.c.h.s8.bf16 %v375
        %v968 = vunpack.c.h.s8.bf16 %v376
        %v969 = vunpack.c.l.s8.bf16 %v377
        %v970 = vunpack.c.l.s8.bf16 %v378
        %v971 = vunpack.c.l.s8.bf16 %v379
        %v972 = vunpack.c.l.s8.bf16 %v380
        %v973 = vunpack.c.l.s8.bf16 %v381
        %v974 = vunpack.c.l.s8.bf16 %v382
        %v975 = vunpack.c.l.s8.bf16 %v383
        %v976 = vunpack.c.l.s8.bf16 %v384
        %v977 = vunpack.c.l.s8.bf16 %v385
        %v978 = vunpack.c.l.s8.bf16 %v386
        %v979 = vunpack.c.l.s8.bf16 %v387
        %v980 = vunpack.c.l.s8.bf16 %v388
        %v981 = vunpack.c.l.s8.bf16 %v389
        %v982 = vunpack.c.l.s8.bf16 %v390
        %v983 = vunpack.c.l.s8.bf16 %v391
        %v984 = vunpack.c.l.s8.bf16 %v392
        %v985 = vunpack.c.h.s8.bf16 %v377
        %v986 = vunpack.c.h.s8.bf16 %v378
        %v987 = vunpack.c.h.s8.bf16 %v379
        %v988 = vunpack.c.h.s8.bf16 %v380
        %v989 = vunpack.c.h.s8.bf16 %v381
        %v990 = vunpack.c.h.s8.bf16 %v382
        %v991 = vunpack.c.h.s8.bf16 %v383
        %v992 = vunpack.c.h.s8.bf16 %v384
        %v993 = vunpack.c.h.s8.bf16 %v385
        %v994 = vunpack.c.h.s8.bf16 %v386
        %v995 = vunpack.c.h.s8.bf16 %v387
        %v996 = vunpack.c.h.s8.bf16 %v388
        %v997 = vunpack.c.h.s8.bf16 %v389
        %v998 = vunpack.c.h.s8.bf16 %v390
        %v999 = vunpack.c.h.s8.bf16 %v391
        %v1000 = vunpack.c.h.s8.bf16 %v392
        %v1001 = vunpack.c.l.s8.bf16 %v393
        %v1002 = vunpack.c.l.s8.bf16 %v394
        %v1003 = vunpack.c.l.s8.bf16 %v395
        %v1004 = vunpack.c.l.s8.bf16 %v396
        %v1005 = vunpack.c.l.s8.bf16 %v397
        %v1006 = vunpack.c.l.s8.bf16 %v398
        %v1007 = vunpack.c.l.s8.bf16 %v399
        %v1008 = vunpack.c.l.s8.bf16 %v400
        %v1009 = vunpack.c.l.s8.bf16 %v401
        %v1010 = vunpack.c.l.s8.bf16 %v402
        %v1011 = vunpack.c.l.s8.bf16 %v403
        %v1012 = vunpack.c.l.s8.bf16 %v404
        %v1013 = vunpack.c.l.s8.bf16 %v405
        %v1014 = vunpack.c.l.s8.bf16 %v406
        %v1015 = vunpack.c.l.s8.bf16 %v407
        %v1016 = vunpack.c.l.s8.bf16 %v408
        %v1017 = vunpack.c.h.s8.bf16 %v393
        %v1018 = vunpack.c.h.s8.bf16 %v394
        %v1019 = vunpack.c.h.s8.bf16 %v395
        %v1020 = vunpack.c.h.s8.bf16 %v396
        %v1021 = vunpack.c.h.s8.bf16 %v397
        %v1022 = vunpack.c.h.s8.bf16 %v398
        %v1023 = vunpack.c.h.s8.bf16 %v399
        %v1024 = vunpack.c.h.s8.bf16 %v400
        %v1025 = vunpack.c.h.s8.bf16 %v401
        %v1026 = vunpack.c.h.s8.bf16 %v402
        %v1027 = vunpack.c.h.s8.bf16 %v403
        %v1028 = vunpack.c.h.s8.bf16 %v404
        %v1029 = vunpack.c.h.s8.bf16 %v405
        %v1030 = vunpack.c.h.s8.bf16 %v406
        %v1031 = vunpack.c.h.s8.bf16 %v407
        %v1032 = vunpack.c.h.s8.bf16 %v408
        %v1033 = vunpack.c.l.s8.bf16 %v409
        %v1034 = vunpack.c.l.s8.bf16 %v410
        %v1035 = vunpack.c.l.s8.bf16 %v411
        %v1036 = vunpack.c.l.s8.bf16 %v412
        %v1037 = vunpack.c.l.s8.bf16 %v413
        %v1038 = vunpack.c.l.s8.bf16 %v414
        %v1039 = vunpack.c.l.s8.bf16 %v415
        %v1040 = vunpack.c.l.s8.bf16 %v416
        %v1041 = vunpack.c.l.s8.bf16 %v417
        %v1042 = vunpack.c.l.s8.bf16 %v418
        %v1043 = vunpack.c.l.s8.bf16 %v419
        %v1044 = vunpack.c.l.s8.bf16 %v420
        %v1045 = vunpack.c.l.s8.bf16 %v421
        %v1046 = vunpack.c.l.s8.bf16 %v422
        %v1047 = vunpack.c.l.s8.bf16 %v423
        %v1048 = vunpack.c.l.s8.bf16 %v424
        %v1049 = vunpack.c.h.s8.bf16 %v409
        %v1050 = vunpack.c.h.s8.bf16 %v410
        %v1051 = vunpack.c.h.s8.bf16 %v411
        %v1052 = vunpack.c.h.s8.bf16 %v412
        %v1053 = vunpack.c.h.s8.bf16 %v413
        %v1054 = vunpack.c.h.s8.bf16 %v414
        %v1055 = vunpack.c.h.s8.bf16 %v415
        %v1056 = vunpack.c.h.s8.bf16 %v416
        %v1057 = vunpack.c.h.s8.bf16 %v417
        %v1058 = vunpack.c.h.s8.bf16 %v418
        %v1059 = vunpack.c.h.s8.bf16 %v419
        %v1060 = vunpack.c.h.s8.bf16 %v420
        %v1061 = vunpack.c.h.s8.bf16 %v421
        %v1062 = vunpack.c.h.s8.bf16 %v422
        %v1063 = vunpack.c.h.s8.bf16 %v423
        %v1064 = vunpack.c.h.s8.bf16 %v424
        %v1065 = vunpack.c.l.s8.bf16 %v425
        %v1066 = vunpack.c.l.s8.bf16 %v426
        %v1067 = vunpack.c.l.s8.bf16 %v427
        %v1068 = vunpack.c.l.s8.bf16 %v428
        %v1069 = vunpack.c.l.s8.bf16 %v429
        %v1070 = vunpack.c.l.s8.bf16 %v430
        %v1071 = vunpack.c.l.s8.bf16 %v431
        %v1072 = vunpack.c.l.s8.bf16 %v432
        %v1073 = vunpack.c.l.s8.bf16 %v433
        %v1074 = vunpack.c.l.s8.bf16 %v434
        %v1075 = vunpack.c.l.s8.bf16 %v435
        %v1076 = vunpack.c.l.s8.bf16 %v436
        %v1077 = vunpack.c.l.s8.bf16 %v437
        %v1078 = vunpack.c.l.s8.bf16 %v438
        %v1079 = vunpack.c.l.s8.bf16 %v439
        %v1080 = vunpack.c.l.s8.bf16 %v440
        %v1081 = vunpack.c.h.s8.bf16 %v425
        %v1082 = vunpack.c.h.s8.bf16 %v426
        %v1083 = vunpack.c.h.s8.bf16 %v427
        %v1084 = vunpack.c.h.s8.bf16 %v428
        %v1085 = vunpack.c.h.s8.bf16 %v429
        %v1086 = vunpack.c.h.s8.bf16 %v430
        %v1087 = vunpack.c.h.s8.bf16 %v431
        %v1088 = vunpack.c.h.s8.bf16 %v432
        %v1089 = vunpack.c.h.s8.bf16 %v433
        %v1090 = vunpack.c.h.s8.bf16 %v434
        %v1091 = vunpack.c.h.s8.bf16 %v435
        %v1092 = vunpack.c.h.s8.bf16 %v436
        %v1093 = vunpack.c.h.s8.bf16 %v437
        %v1094 = vunpack.c.h.s8.bf16 %v438
        %v1095 = vunpack.c.h.s8.bf16 %v439
        %v1096 = vunpack.c.h.s8.bf16 %v440
        %v1097 = vunpack.c.l.s8.bf16 %v441
        %v1098 = vunpack.c.l.s8.bf16 %v442
        %v1099 = vunpack.c.l.s8.bf16 %v443
        %v1100 = vunpack.c.l.s8.bf16 %v444
        %v1101 = vunpack.c.l.s8.bf16 %v445
        %v1102 = vunpack.c.l.s8.bf16 %v446
        %v1103 = vunpack.c.l.s8.bf16 %v447
        %v1104 = vunpack.c.l.s8.bf16 %v448
        %v1105 = vunpack.c.l.s8.bf16 %v449
        %v1106 = vunpack.c.l.s8.bf16 %v450
        %v1107 = vunpack.c.l.s8.bf16 %v451
        %v1108 = vunpack.c.l.s8.bf16 %v452
        %v1109 = vunpack.c.l.s8.bf16 %v453
        %v1110 = vunpack.c.l.s8.bf16 %v454
        %v1111 = vunpack.c.l.s8.bf16 %v455
        %v1112 = vunpack.c.l.s8.bf16 %v456
        %v1113 = vunpack.c.h.s8.bf16 %v441
        %v1114 = vunpack.c.h.s8.bf16 %v442
        %v1115 = vunpack.c.h.s8.bf16 %v443
        %v1116 = vunpack.c.h.s8.bf16 %v444
        %v1117 = vunpack.c.h.s8.bf16 %v445
        %v1118 = vunpack.c.h.s8.bf16 %v446
        %v1119 = vunpack.c.h.s8.bf16 %v447
        %v1120 = vunpack.c.h.s8.bf16 %v448
        %v1121 = vunpack.c.h.s8.bf16 %v449
        %v1122 = vunpack.c.h.s8.bf16 %v450
        %v1123 = vunpack.c.h.s8.bf16 %v451
        %v1124 = vunpack.c.h.s8.bf16 %v452
        %v1125 = vunpack.c.h.s8.bf16 %v453
        %v1126 = vunpack.c.h.s8.bf16 %v454
        %v1127 = vunpack.c.h.s8.bf16 %v455
        %v1128 = vunpack.c.h.s8.bf16 %v456
        %v1129 = vunpack.c.l.s8.bf16 %v457
        %v1130 = vunpack.c.l.s8.bf16 %v458
        %v1131 = vunpack.c.l.s8.bf16 %v459
        %v1132 = vunpack.c.l.s8.bf16 %v460
        %v1133 = vunpack.c.l.s8.bf16 %v461
        %v1134 = vunpack.c.l.s8.bf16 %v462
        %v1135 = vunpack.c.l.s8.bf16 %v463
        %v1136 = vunpack.c.l.s8.bf16 %v464
        %v1137 = vunpack.c.l.s8.bf16 %v465
        %v1138 = vunpack.c.l.s8.bf16 %v466
        %v1139 = vunpack.c.l.s8.bf16 %v467
        %v1140 = vunpack.c.l.s8.bf16 %v468
        %v1141 = vunpack.c.l.s8.bf16 %v469
        %v1142 = vunpack.c.l.s8.bf16 %v470
        %v1143 = vunpack.c.l.s8.bf16 %v471
        %v1144 = vunpack.c.l.s8.bf16 %v472
        %v1145 = vunpack.c.h.s8.bf16 %v457
        %v1146 = vunpack.c.h.s8.bf16 %v458
        %v1147 = vunpack.c.h.s8.bf16 %v459
        %v1148 = vunpack.c.h.s8.bf16 %v460
        %v1149 = vunpack.c.h.s8.bf16 %v461
        %v1150 = vunpack.c.h.s8.bf16 %v462
        %v1151 = vunpack.c.h.s8.bf16 %v463
        %v1152 = vunpack.c.h.s8.bf16 %v464
        %v1153 = vunpack.c.h.s8.bf16 %v465
        %v1154 = vunpack.c.h.s8.bf16 %v466
        %v1155 = vunpack.c.h.s8.bf16 %v467
        %v1156 = vunpack.c.h.s8.bf16 %v468
        %v1157 = vunpack.c.h.s8.bf16 %v469
        %v1158 = vunpack.c.h.s8.bf16 %v470
        %v1159 = vunpack.c.h.s8.bf16 %v471
        %v1160 = vunpack.c.h.s8.bf16 %v472
        %v1161 = vunpack.c.l.s8.bf16 %v473
        %v1162 = vunpack.c.l.s8.bf16 %v474
        %v1163 = vunpack.c.l.s8.bf16 %v475
        %v1164 = vunpack.c.l.s8.bf16 %v476
        %v1165 = vunpack.c.l.s8.bf16 %v477
        %v1166 = vunpack.c.l.s8.bf16 %v478
        %v1167 = vunpack.c.l.s8.bf16 %v479
        %v1168 = vunpack.c.l.s8.bf16 %v480
        %v1169 = vunpack.c.l.s8.bf16 %v481
        %v1170 = vunpack.c.l.s8.bf16 %v482
        %v1171 = vunpack.c.l.s8.bf16 %v483
        %v1172 = vunpack.c.l.s8.bf16 %v484
        %v1173 = vunpack.c.l.s8.bf16 %v485
        %v1174 = vunpack.c.l.s8.bf16 %v486
        %v1175 = vunpack.c.l.s8.bf16 %v487
        %v1176 = vunpack.c.l.s8.bf16 %v488
        %v1177 = vunpack.c.h.s8.bf16 %v473
        %v1178 = vunpack.c.h.s8.bf16 %v474
        %v1179 = vunpack.c.h.s8.bf16 %v475
        %v1180 = vunpack.c.h.s8.bf16 %v476
        %v1181 = vunpack.c.h.s8.bf16 %v477
        %v1182 = vunpack.c.h.s8.bf16 %v478
        %v1183 = vunpack.c.h.s8.bf16 %v479
        %v1184 = vunpack.c.h.s8.bf16 %v480
        %v1185 = vunpack.c.h.s8.bf16 %v481
        %v1186 = vunpack.c.h.s8.bf16 %v482
        %v1187 = vunpack.c.h.s8.bf16 %v483
        %v1188 = vunpack.c.h.s8.bf16 %v484
        %v1189 = vunpack.c.h.s8.bf16 %v485
        %v1190 = vunpack.c.h.s8.bf16 %v486
        %v1191 = vunpack.c.h.s8.bf16 %v487
        %v1192 = vunpack.c.h.s8.bf16 %v488
        %v1193 = vunpack.c.l.s8.bf16 %v489
        %v1194 = vunpack.c.l.s8.bf16 %v490
        %v1195 = vunpack.c.l.s8.bf16 %v491
        %v1196 = vunpack.c.l.s8.bf16 %v492
        %v1197 = vunpack.c.l.s8.bf16 %v493
        %v1198 = vunpack.c.l.s8.bf16 %v494
        %v1199 = vunpack.c.l.s8.bf16 %v495
        %v1200 = vunpack.c.l.s8.bf16 %v496
        %v1201 = vunpack.c.l.s8.bf16 %v497
        %v1202 = vunpack.c.l.s8.bf16 %v498
        %v1203 = vunpack.c.l.s8.bf16 %v499
        %v1204 = vunpack.c.l.s8.bf16 %v500
        %v1205 = vunpack.c.l.s8.bf16 %v501
        %v1206 = vunpack.c.l.s8.bf16 %v502
        %v1207 = vunpack.c.l.s8.bf16 %v503
        %v1208 = vunpack.c.l.s8.bf16 %v504
        %v1209 = vunpack.c.h.s8.bf16 %v489
        %v1210 = vunpack.c.h.s8.bf16 %v490
        %v1211 = vunpack.c.h.s8.bf16 %v491
        %v1212 = vunpack.c.h.s8.bf16 %v492
        %v1213 = vunpack.c.h.s8.bf16 %v493
        %v1214 = vunpack.c.h.s8.bf16 %v494
        %v1215 = vunpack.c.h.s8.bf16 %v495
        %v1216 = vunpack.c.h.s8.bf16 %v496
        %v1217 = vunpack.c.h.s8.bf16 %v497
        %v1218 = vunpack.c.h.s8.bf16 %v498
        %v1219 = vunpack.c.h.s8.bf16 %v499
        %v1220 = vunpack.c.h.s8.bf16 %v500
        %v1221 = vunpack.c.h.s8.bf16 %v501
        %v1222 = vunpack.c.h.s8.bf16 %v502
        %v1223 = vunpack.c.h.s8.bf16 %v503
        %v1224 = vunpack.c.h.s8.bf16 %v504
        %v1225 = vunpack.c.l.s8.bf16 %v505
        %v1226 = vunpack.c.l.s8.bf16 %v506
        %v1227 = vunpack.c.l.s8.bf16 %v507
        %v1228 = vunpack.c.l.s8.bf16 %v508
        %v1229 = vunpack.c.l.s8.bf16 %v509
        %v1230 = vunpack.c.l.s8.bf16 %v510
        %v1231 = vunpack.c.l.s8.bf16 %v511
        %v1232 = vunpack.c.l.s8.bf16 %v512
        %v1233 = vunpack.c.l.s8.bf16 %v513
        %v1234 = vunpack.c.l.s8.bf16 %v514
        %v1235 = vunpack.c.l.s8.bf16 %v515
        %v1236 = vunpack.c.l.s8.bf16 %v516
        %v1237 = vunpack.c.l.s8.bf16 %v517
        %v1238 = vunpack.c.l.s8.bf16 %v518
        %v1239 = vunpack.c.l.s8.bf16 %v519
        %v1240 = vunpack.c.l.s8.bf16 %v520
        %v1241 = vunpack.c.h.s8.bf16 %v505
        %v1242 = vunpack.c.h.s8.bf16 %v506
        %v1243 = vunpack.c.h.s8.bf16 %v507
        %v1244 = vunpack.c.h.s8.bf16 %v508
        %v1245 = vunpack.c.h.s8.bf16 %v509
        %v1246 = vunpack.c.h.s8.bf16 %v510
        %v1247 = vunpack.c.h.s8.bf16 %v511
        %v1248 = vunpack.c.h.s8.bf16 %v512
        %v1249 = vunpack.c.h.s8.bf16 %v513
        %v1250 = vunpack.c.h.s8.bf16 %v514
        %v1251 = vunpack.c.h.s8.bf16 %v515
        %v1252 = vunpack.c.h.s8.bf16 %v516
        %v1253 = vunpack.c.h.s8.bf16 %v517
        %v1254 = vunpack.c.h.s8.bf16 %v518
        %v1255 = vunpack.c.h.s8.bf16 %v519
        %v1256 = vunpack.c.h.s8.bf16 %v520
        %v1257 = vunpack.c.l.s8.bf16 %v521
        %v1258 = vunpack.c.l.s8.bf16 %v522
        %v1259 = vunpack.c.l.s8.bf16 %v523
        %v1260 = vunpack.c.l.s8.bf16 %v524
        %v1261 = vunpack.c.l.s8.bf16 %v525
        %v1262 = vunpack.c.l.s8.bf16 %v526
        %v1263 = vunpack.c.l.s8.bf16 %v527
        %v1264 = vunpack.c.l.s8.bf16 %v528
        %v1265 = vunpack.c.l.s8.bf16 %v529
        %v1266 = vunpack.c.l.s8.bf16 %v530
        %v1267 = vunpack.c.l.s8.bf16 %v531
        %v1268 = vunpack.c.l.s8.bf16 %v532
        %v1269 = vunpack.c.l.s8.bf16 %v533
        %v1270 = vunpack.c.l.s8.bf16 %v534
        %v1271 = vunpack.c.l.s8.bf16 %v535
        %v1272 = vunpack.c.l.s8.bf16 %v536
        %v1273 = vunpack.c.h.s8.bf16 %v521
        %v1274 = vunpack.c.h.s8.bf16 %v522
        %v1275 = vunpack.c.h.s8.bf16 %v523
        %v1276 = vunpack.c.h.s8.bf16 %v524
        %v1277 = vunpack.c.h.s8.bf16 %v525
        %v1278 = vunpack.c.h.s8.bf16 %v526
        %v1279 = vunpack.c.h.s8.bf16 %v527
        %v1280 = vunpack.c.h.s8.bf16 %v528
        %v1281 = vunpack.c.h.s8.bf16 %v529
        %v1282 = vunpack.c.h.s8.bf16 %v530
        %v1283 = vunpack.c.h.s8.bf16 %v531
        %v1284 = vunpack.c.h.s8.bf16 %v532
        %v1285 = vunpack.c.h.s8.bf16 %v533
        %v1286 = vunpack.c.h.s8.bf16 %v534
        %v1287 = vunpack.c.h.s8.bf16 %v535
        %v1288 = vunpack.c.h.s8.bf16 %v536
        %v1289 = vunpack.c.l.s8.bf16 %v537
        %v1290 = vunpack.c.l.s8.bf16 %v538
        %v1291 = vunpack.c.l.s8.bf16 %v539
        %v1292 = vunpack.c.l.s8.bf16 %v540
        %v1293 = vunpack.c.l.s8.bf16 %v541
        %v1294 = vunpack.c.l.s8.bf16 %v542
        %v1295 = vunpack.c.l.s8.bf16 %v543
        %v1296 = vunpack.c.l.s8.bf16 %v544
        %v1297 = vunpack.c.l.s8.bf16 %v545
        %v1298 = vunpack.c.l.s8.bf16 %v546
        %v1299 = vunpack.c.l.s8.bf16 %v547
        %v1300 = vunpack.c.l.s8.bf16 %v548
        %v1301 = vunpack.c.l.s8.bf16 %v549
        %v1302 = vunpack.c.l.s8.bf16 %v550
        %v1303 = vunpack.c.l.s8.bf16 %v551
        %v1304 = vunpack.c.l.s8.bf16 %v552
        %v1305 = vunpack.c.h.s8.bf16 %v537
        %v1306 = vunpack.c.h.s8.bf16 %v538
        %v1307 = vunpack.c.h.s8.bf16 %v539
        %v1308 = vunpack.c.h.s8.bf16 %v540
        %v1309 = vunpack.c.h.s8.bf16 %v541
        %v1310 = vunpack.c.h.s8.bf16 %v542
        %v1311 = vunpack.c.h.s8.bf16 %v543
        %v1312 = vunpack.c.h.s8.bf16 %v544
        %v1313 = vunpack.c.h.s8.bf16 %v545
        %v1314 = vunpack.c.h.s8.bf16 %v546
        %v1315 = vunpack.c.h.s8.bf16 %v547
        %v1316 = vunpack.c.h.s8.bf16 %v548
        %v1317 = vunpack.c.h.s8.bf16 %v549
        %v1318 = vunpack.c.h.s8.bf16 %v550
        %v1319 = vunpack.c.h.s8.bf16 %v551
        %v1320 = vunpack.c.h.s8.bf16 %v552
        %v1321 = vunpack.c.l.s8.bf16 %v553
        %v1322 = vunpack.c.l.s8.bf16 %v554
        %v1323 = vunpack.c.l.s8.bf16 %v555
        %v1324 = vunpack.c.l.s8.bf16 %v556
        %v1325 = vunpack.c.l.s8.bf16 %v557
        %v1326 = vunpack.c.l.s8.bf16 %v558
        %v1327 = vunpack.c.l.s8.bf16 %v559
        %v1328 = vunpack.c.l.s8.bf16 %v560
        %v1329 = vunpack.c.l.s8.bf16 %v561
        %v1330 = vunpack.c.l.s8.bf16 %v562
        %v1331 = vunpack.c.l.s8.bf16 %v563
        %v1332 = vunpack.c.l.s8.bf16 %v564
        %v1333 = vunpack.c.l.s8.bf16 %v565
        %v1334 = vunpack.c.l.s8.bf16 %v566
        %v1335 = vunpack.c.l.s8.bf16 %v567
        %v1336 = vunpack.c.l.s8.bf16 %v568
        %v1337 = vunpack.c.h.s8.bf16 %v553
        %v1338 = vunpack.c.h.s8.bf16 %v554
        %v1339 = vunpack.c.h.s8.bf16 %v555
        %v1340 = vunpack.c.h.s8.bf16 %v556
        %v1341 = vunpack.c.h.s8.bf16 %v557
        %v1342 = vunpack.c.h.s8.bf16 %v558
        %v1343 = vunpack.c.h.s8.bf16 %v559
        %v1344 = vunpack.c.h.s8.bf16 %v560
        %v1345 = vunpack.c.h.s8.bf16 %v561
        %v1346 = vunpack.c.h.s8.bf16 %v562
        %v1347 = vunpack.c.h.s8.bf16 %v563
        %v1348 = vunpack.c.h.s8.bf16 %v564
        %v1349 = vunpack.c.h.s8.bf16 %v565
        %v1350 = vunpack.c.h.s8.bf16 %v566
        %v1351 = vunpack.c.h.s8.bf16 %v567
        %v1352 = vunpack.c.h.s8.bf16 %v568
        %v1353 = vunpack.c.l.s8.bf16 %v569
        %v1354 = vunpack.c.l.s8.bf16 %v570
        %v1355 = vunpack.c.l.s8.bf16 %v571
        %v1356 = vunpack.c.l.s8.bf16 %v572
        %v1357 = vunpack.c.l.s8.bf16 %v573
        %v1358 = vunpack.c.l.s8.bf16 %v574
        %v1359 = vunpack.c.l.s8.bf16 %v575
        %v1360 = vunpack.c.l.s8.bf16 %v576
        %v1361 = vunpack.c.l.s8.bf16 %v577
        %v1362 = vunpack.c.l.s8.bf16 %v578
        %v1363 = vunpack.c.l.s8.bf16 %v579
        %v1364 = vunpack.c.l.s8.bf16 %v580
        %v1365 = vunpack.c.l.s8.bf16 %v581
        %v1366 = vunpack.c.l.s8.bf16 %v582
        %v1367 = vunpack.c.l.s8.bf16 %v583
        %v1368 = vunpack.c.l.s8.bf16 %v584
        %v1369 = vunpack.c.h.s8.bf16 %v569
        %v1370 = vunpack.c.h.s8.bf16 %v570
        %v1371 = vunpack.c.h.s8.bf16 %v571
        %v1372 = vunpack.c.h.s8.bf16 %v572
        %v1373 = vunpack.c.h.s8.bf16 %v573
        %v1374 = vunpack.c.h.s8.bf16 %v574
        %v1375 = vunpack.c.h.s8.bf16 %v575
        %v1376 = vunpack.c.h.s8.bf16 %v576
        %v1377 = vunpack.c.h.s8.bf16 %v577
        %v1378 = vunpack.c.h.s8.bf16 %v578
        %v1379 = vunpack.c.h.s8.bf16 %v579
        %v1380 = vunpack.c.h.s8.bf16 %v580
        %v1381 = vunpack.c.h.s8.bf16 %v581
        %v1382 = vunpack.c.h.s8.bf16 %v582
        %v1383 = vunpack.c.h.s8.bf16 %v583
        %v1384 = vunpack.c.h.s8.bf16 %v584
        %v1385 = vunpack.c.l.s8.bf16 %v585
        %v1386 = vunpack.c.l.s8.bf16 %v586
        %v1387 = vunpack.c.l.s8.bf16 %v587
        %v1388 = vunpack.c.l.s8.bf16 %v588
        %v1389 = vunpack.c.l.s8.bf16 %v589
        %v1390 = vunpack.c.l.s8.bf16 %v590
        %v1391 = vunpack.c.l.s8.bf16 %v591
        %v1392 = vunpack.c.l.s8.bf16 %v592
        %v1393 = vunpack.c.l.s8.bf16 %v593
        %v1394 = vunpack.c.l.s8.bf16 %v594
        %v1395 = vunpack.c.l.s8.bf16 %v595
        %v1396 = vunpack.c.l.s8.bf16 %v596
        %v1397 = vunpack.c.l.s8.bf16 %v597
        %v1398 = vunpack.c.l.s8.bf16 %v598
        %v1399 = vunpack.c.l.s8.bf16 %v599
        %v1400 = vunpack.c.l.s8.bf16 %v600
        %v1401 = vunpack.c.h.s8.bf16 %v585
        %v1402 = vunpack.c.h.s8.bf16 %v586
        %v1403 = vunpack.c.h.s8.bf16 %v587
        %v1404 = vunpack.c.h.s8.bf16 %v588
        %v1405 = vunpack.c.h.s8.bf16 %v589
        %v1406 = vunpack.c.h.s8.bf16 %v590
        %v1407 = vunpack.c.h.s8.bf16 %v591
        %v1408 = vunpack.c.h.s8.bf16 %v592
        %v1409 = vunpack.c.h.s8.bf16 %v593
        %v1410 = vunpack.c.h.s8.bf16 %v594
        %v1411 = vunpack.c.h.s8.bf16 %v595
        %v1412 = vunpack.c.h.s8.bf16 %v596
        %v1413 = vunpack.c.h.s8.bf16 %v597
        %v1414 = vunpack.c.h.s8.bf16 %v598
        %v1415 = vunpack.c.h.s8.bf16 %v599
        %v1416 = vunpack.c.h.s8.bf16 %v600
        %v1417 = vunpack.c.l.s8.bf16 %v601
        %v1418 = vunpack.c.l.s8.bf16 %v602
        %v1419 = vunpack.c.l.s8.bf16 %v603
        %v1420 = vunpack.c.l.s8.bf16 %v604
        %v1421 = vunpack.c.l.s8.bf16 %v605
        %v1422 = vunpack.c.l.s8.bf16 %v606
        %v1423 = vunpack.c.l.s8.bf16 %v607
        %v1424 = vunpack.c.l.s8.bf16 %v608
        %v1425 = vunpack.c.l.s8.bf16 %v609
        %v1426 = vunpack.c.l.s8.bf16 %v610
        %v1427 = vunpack.c.l.s8.bf16 %v611
        %v1428 = vunpack.c.l.s8.bf16 %v612
        %v1429 = vunpack.c.l.s8.bf16 %v613
        %v1430 = vunpack.c.l.s8.bf16 %v614
        %v1431 = vunpack.c.l.s8.bf16 %v615
        %v1432 = vunpack.c.l.s8.bf16 %v616
        %v1433 = vunpack.c.h.s8.bf16 %v601
        %v1434 = vunpack.c.h.s8.bf16 %v602
        %v1435 = vunpack.c.h.s8.bf16 %v603
        %v1436 = vunpack.c.h.s8.bf16 %v604
        %v1437 = vunpack.c.h.s8.bf16 %v605
        %v1438 = vunpack.c.h.s8.bf16 %v606
        %v1439 = vunpack.c.h.s8.bf16 %v607
        %v1440 = vunpack.c.h.s8.bf16 %v608
        %v1441 = vunpack.c.h.s8.bf16 %v609
        %v1442 = vunpack.c.h.s8.bf16 %v610
        %v1443 = vunpack.c.h.s8.bf16 %v611
        %v1444 = vunpack.c.h.s8.bf16 %v612
        %v1445 = vunpack.c.h.s8.bf16 %v613
        %v1446 = vunpack.c.h.s8.bf16 %v614
        %v1447 = vunpack.c.h.s8.bf16 %v615
        %v1448 = vunpack.c.h.s8.bf16 %v616
        %v1449 = vunpack.c.l.s8.bf16 %v617
        %v1450 = vunpack.c.l.s8.bf16 %v618
        %v1451 = vunpack.c.l.s8.bf16 %v619
        %v1452 = vunpack.c.l.s8.bf16 %v620
        %v1453 = vunpack.c.l.s8.bf16 %v621
        %v1454 = vunpack.c.l.s8.bf16 %v622
        %v1455 = vunpack.c.l.s8.bf16 %v623
        %v1456 = vunpack.c.l.s8.bf16 %v624
        %v1457 = vunpack.c.l.s8.bf16 %v625
        %v1458 = vunpack.c.l.s8.bf16 %v626
        %v1459 = vunpack.c.l.s8.bf16 %v627
        %v1460 = vunpack.c.l.s8.bf16 %v628
        %v1461 = vunpack.c.l.s8.bf16 %v629
        %v1462 = vunpack.c.l.s8.bf16 %v630
        %v1463 = vunpack.c.l.s8.bf16 %v631
        %v1464 = vunpack.c.l.s8.bf16 %v632
        %v1465 = vunpack.c.h.s8.bf16 %v617
        %v1466 = vunpack.c.h.s8.bf16 %v618
        %v1467 = vunpack.c.h.s8.bf16 %v619
        %v1468 = vunpack.c.h.s8.bf16 %v620
        %v1469 = vunpack.c.h.s8.bf16 %v621
        %v1470 = vunpack.c.h.s8.bf16 %v622
        %v1471 = vunpack.c.h.s8.bf16 %v623
        %v1472 = vunpack.c.h.s8.bf16 %v624
        %v1473 = vunpack.c.h.s8.bf16 %v625
        %v1474 = vunpack.c.h.s8.bf16 %v626
        %v1475 = vunpack.c.h.s8.bf16 %v627
        %v1476 = vunpack.c.h.s8.bf16 %v628
        %v1477 = vunpack.c.h.s8.bf16 %v629
        %v1478 = vunpack.c.h.s8.bf16 %v630
        %v1479 = vunpack.c.h.s8.bf16 %v631
        %v1480 = vunpack.c.h.s8.bf16 %v632
        %v1481 = vunpack.c.l.s8.bf16 %v633
        %v1482 = vunpack.c.l.s8.bf16 %v634
        %v1483 = vunpack.c.l.s8.bf16 %v635
        %v1484 = vunpack.c.l.s8.bf16 %v636
        %v1485 = vunpack.c.l.s8.bf16 %v637
        %v1486 = vunpack.c.l.s8.bf16 %v638
        %v1487 = vunpack.c.l.s8.bf16 %v639
        %v1488 = vunpack.c.l.s8.bf16 %v640
        %v1489 = vunpack.c.l.s8.bf16 %v641
        %v1490 = vunpack.c.l.s8.bf16 %v642
        %v1491 = vunpack.c.l.s8.bf16 %v643
        %v1492 = vunpack.c.l.s8.bf16 %v644
        %v1493 = vunpack.c.l.s8.bf16 %v645
        %v1494 = vunpack.c.l.s8.bf16 %v646
        %v1495 = vunpack.c.l.s8.bf16 %v647
        %v1496 = vunpack.c.l.s8.bf16 %v648
        %v1497 = vunpack.c.h.s8.bf16 %v633
        %v1498 = vunpack.c.h.s8.bf16 %v634
        %v1499 = vunpack.c.h.s8.bf16 %v635
        %v1500 = vunpack.c.h.s8.bf16 %v636
        %v1501 = vunpack.c.h.s8.bf16 %v637
        %v1502 = vunpack.c.h.s8.bf16 %v638
        %v1503 = vunpack.c.h.s8.bf16 %v639
        %v1504 = vunpack.c.h.s8.bf16 %v640
        %v1505 = vunpack.c.h.s8.bf16 %v641
        %v1506 = vunpack.c.h.s8.bf16 %v642
        %v1507 = vunpack.c.h.s8.bf16 %v643
        %v1508 = vunpack.c.h.s8.bf16 %v644
        %v1509 = vunpack.c.h.s8.bf16 %v645
        %v1510 = vunpack.c.h.s8.bf16 %v646
        %v1511 = vunpack.c.h.s8.bf16 %v647
        %v1512 = vunpack.c.h.s8.bf16 %v648
        %v1513 = vunpack.c.l.s8.bf16 %v649
        %v1514 = vunpack.c.l.s8.bf16 %v650
        %v1515 = vunpack.c.l.s8.bf16 %v651
        %v1516 = vunpack.c.l.s8.bf16 %v652
        %v1517 = vunpack.c.l.s8.bf16 %v653
        %v1518 = vunpack.c.l.s8.bf16 %v654
        %v1519 = vunpack.c.l.s8.bf16 %v655
        %v1520 = vunpack.c.l.s8.bf16 %v656
        %v1521 = vunpack.c.l.s8.bf16 %v657
        %v1522 = vunpack.c.l.s8.bf16 %v658
        %v1523 = vunpack.c.l.s8.bf16 %v659
        %v1524 = vunpack.c.l.s8.bf16 %v660
        %v1525 = vunpack.c.l.s8.bf16 %v661
        %v1526 = vunpack.c.l.s8.bf16 %v662
        %v1527 = vunpack.c.l.s8.bf16 %v663
        %v1528 = vunpack.c.l.s8.bf16 %v664
        %v1529 = vunpack.c.h.s8.bf16 %v649
        %v1530 = vunpack.c.h.s8.bf16 %v650
        %v1531 = vunpack.c.h.s8.bf16 %v651
        %v1532 = vunpack.c.h.s8.bf16 %v652
        %v1533 = vunpack.c.h.s8.bf16 %v653
        %v1534 = vunpack.c.h.s8.bf16 %v654
        %v1535 = vunpack.c.h.s8.bf16 %v655
        %v1536 = vunpack.c.h.s8.bf16 %v656
        %v1537 = vunpack.c.h.s8.bf16 %v657
        %v1538 = vunpack.c.h.s8.bf16 %v658
        %v1539 = vunpack.c.h.s8.bf16 %v659
        %v1540 = vunpack.c.h.s8.bf16 %v660
        %v1541 = vunpack.c.h.s8.bf16 %v661
        %v1542 = vunpack.c.h.s8.bf16 %v662
        %v1543 = vunpack.c.h.s8.bf16 %v663
        %v1544 = vunpack.c.h.s8.bf16 %v664
        %v1545 = vunpack.c.l.s8.bf16 %v665
        %v1546 = vunpack.c.l.s8.bf16 %v666
        %v1547 = vunpack.c.l.s8.bf16 %v667
        %v1548 = vunpack.c.l.s8.bf16 %v668
        %v1549 = vunpack.c.l.s8.bf16 %v669
        %v1550 = vunpack.c.l.s8.bf16 %v670
        %v1551 = vunpack.c.l.s8.bf16 %v671
        %v1552 = vunpack.c.l.s8.bf16 %v672
        %v1553 = vunpack.c.l.s8.bf16 %v673
        %v1554 = vunpack.c.l.s8.bf16 %v674
        %v1555 = vunpack.c.l.s8.bf16 %v675
        %v1556 = vunpack.c.l.s8.bf16 %v676
        %v1557 = vunpack.c.l.s8.bf16 %v677
        %v1558 = vunpack.c.l.s8.bf16 %v678
        %v1559 = vunpack.c.l.s8.bf16 %v679
        %v1560 = vunpack.c.l.s8.bf16 %v680
        %v1561 = vunpack.c.h.s8.bf16 %v665
        %v1562 = vunpack.c.h.s8.bf16 %v666
        %v1563 = vunpack.c.h.s8.bf16 %v667
        %v1564 = vunpack.c.h.s8.bf16 %v668
        %v1565 = vunpack.c.h.s8.bf16 %v669
        %v1566 = vunpack.c.h.s8.bf16 %v670
        %v1567 = vunpack.c.h.s8.bf16 %v671
        %v1568 = vunpack.c.h.s8.bf16 %v672
        %v1569 = vunpack.c.h.s8.bf16 %v673
        %v1570 = vunpack.c.h.s8.bf16 %v674
        %v1571 = vunpack.c.h.s8.bf16 %v675
        %v1572 = vunpack.c.h.s8.bf16 %v676
        %v1573 = vunpack.c.h.s8.bf16 %v677
        %v1574 = vunpack.c.h.s8.bf16 %v678
        %v1575 = vunpack.c.h.s8.bf16 %v679
        %v1576 = vunpack.c.h.s8.bf16 %v680
        %v1577 = vunpack.c.l.s8.bf16 %v681
        %v1578 = vunpack.c.l.s8.bf16 %v682
        %v1579 = vunpack.c.l.s8.bf16 %v683
        %v1580 = vunpack.c.l.s8.bf16 %v684
        %v1581 = vunpack.c.l.s8.bf16 %v685
        %v1582 = vunpack.c.l.s8.bf16 %v686
        %v1583 = vunpack.c.l.s8.bf16 %v687
        %v1584 = vunpack.c.l.s8.bf16 %v688
        %v1585 = vunpack.c.l.s8.bf16 %v689
        %v1586 = vunpack.c.l.s8.bf16 %v690
        %v1587 = vunpack.c.l.s8.bf16 %v691
        %v1588 = vunpack.c.l.s8.bf16 %v692
        %v1589 = vunpack.c.l.s8.bf16 %v693
        %v1590 = vunpack.c.l.s8.bf16 %v694
        %v1591 = vunpack.c.l.s8.bf16 %v695
        %v1592 = vunpack.c.l.s8.bf16 %v696
        %v1593 = vunpack.c.h.s8.bf16 %v681
        %v1594 = vunpack.c.h.s8.bf16 %v682
        %v1595 = vunpack.c.h.s8.bf16 %v683
        %v1596 = vunpack.c.h.s8.bf16 %v684
        %v1597 = vunpack.c.h.s8.bf16 %v685
        %v1598 = vunpack.c.h.s8.bf16 %v686
        %v1599 = vunpack.c.h.s8.bf16 %v687
        %v1600 = vunpack.c.h.s8.bf16 %v688
        %v1601 = vunpack.c.h.s8.bf16 %v689
        %v1602 = vunpack.c.h.s8.bf16 %v690
        %v1603 = vunpack.c.h.s8.bf16 %v691
        %v1604 = vunpack.c.h.s8.bf16 %v692
        %v1605 = vunpack.c.h.s8.bf16 %v693
        %v1606 = vunpack.c.h.s8.bf16 %v694
        %v1607 = vunpack.c.h.s8.bf16 %v695
        %v1608 = vunpack.c.h.s8.bf16 %v696
        %v1609 = vunpack.c.l.s8.bf16 %v697
        %v1610 = vunpack.c.l.s8.bf16 %v698
        %v1611 = vunpack.c.l.s8.bf16 %v699
        %v1612 = vunpack.c.l.s8.bf16 %v700
        %v1613 = vunpack.c.l.s8.bf16 %v701
        %v1614 = vunpack.c.l.s8.bf16 %v702
        %v1615 = vunpack.c.l.s8.bf16 %v703
        %v1616 = vunpack.c.l.s8.bf16 %v704
        %v1617 = vunpack.c.l.s8.bf16 %v705
        %v1618 = vunpack.c.l.s8.bf16 %v706
        %v1619 = vunpack.c.l.s8.bf16 %v707
        %v1620 = vunpack.c.l.s8.bf16 %v708
        %v1621 = vunpack.c.l.s8.bf16 %v709
        %v1622 = vunpack.c.l.s8.bf16 %v710
        %v1623 = vunpack.c.l.s8.bf16 %v711
        %v1624 = vunpack.c.l.s8.bf16 %v712
        %v1625 = vunpack.c.h.s8.bf16 %v697
        %v1626 = vunpack.c.h.s8.bf16 %v698
        %v1627 = vunpack.c.h.s8.bf16 %v699
        %v1628 = vunpack.c.h.s8.bf16 %v700
        %v1629 = vunpack.c.h.s8.bf16 %v701
        %v1630 = vunpack.c.h.s8.bf16 %v702
        %v1631 = vunpack.c.h.s8.bf16 %v703
        %v1632 = vunpack.c.h.s8.bf16 %v704
        %v1633 = vunpack.c.h.s8.bf16 %v705
        %v1634 = vunpack.c.h.s8.bf16 %v706
        %v1635 = vunpack.c.h.s8.bf16 %v707
        %v1636 = vunpack.c.h.s8.bf16 %v708
        %v1637 = vunpack.c.h.s8.bf16 %v709
        %v1638 = vunpack.c.h.s8.bf16 %v710
        %v1639 = vunpack.c.h.s8.bf16 %v711
        %v1640 = vunpack.c.h.s8.bf16 %v712
        %v1641 = vunpack.c.l.s8.bf16 %v713
        %v1642 = vunpack.c.l.s8.bf16 %v714
        %v1643 = vunpack.c.l.s8.bf16 %v715
        %v1644 = vunpack.c.l.s8.bf16 %v716
        %v1645 = vunpack.c.l.s8.bf16 %v717
        %v1646 = vunpack.c.l.s8.bf16 %v718
        %v1647 = vunpack.c.l.s8.bf16 %v719
        %v1648 = vunpack.c.l.s8.bf16 %v720
        %v1649 = vunpack.c.l.s8.bf16 %v721
        %v1650 = vunpack.c.l.s8.bf16 %v722
        %v1651 = vunpack.c.l.s8.bf16 %v723
        %v1652 = vunpack.c.l.s8.bf16 %v724
        %v1653 = vunpack.c.l.s8.bf16 %v725
        %v1654 = vunpack.c.l.s8.bf16 %v726
        %v1655 = vunpack.c.l.s8.bf16 %v727
        %v1656 = vunpack.c.l.s8.bf16 %v728
        %v1657 = vunpack.c.h.s8.bf16 %v713
        %v1658 = vunpack.c.h.s8.bf16 %v714
        %v1659 = vunpack.c.h.s8.bf16 %v715
        %v1660 = vunpack.c.h.s8.bf16 %v716
        %v1661 = vunpack.c.h.s8.bf16 %v717
        %v1662 = vunpack.c.h.s8.bf16 %v718
        %v1663 = vunpack.c.h.s8.bf16 %v719
        %v1664 = vunpack.c.h.s8.bf16 %v720
        %v1665 = vunpack.c.h.s8.bf16 %v721
        %v1666 = vunpack.c.h.s8.bf16 %v722
        %v1667 = vunpack.c.h.s8.bf16 %v723
        %v1668 = vunpack.c.h.s8.bf16 %v724
        %v1669 = vunpack.c.h.s8.bf16 %v725
        %v1670 = vunpack.c.h.s8.bf16 %v726
        %v1671 = vunpack.c.h.s8.bf16 %v727
        %v1672 = vunpack.c.h.s8.bf16 %v728
        %v1673 = vunpack.c.l.s8.bf16 %v729
        %v1674 = vunpack.c.l.s8.bf16 %v730
        %v1675 = vunpack.c.l.s8.bf16 %v731
        %v1676 = vunpack.c.l.s8.bf16 %v732
        %v1677 = vunpack.c.l.s8.bf16 %v733
        %v1678 = vunpack.c.l.s8.bf16 %v734
        %v1679 = vunpack.c.l.s8.bf16 %v735
        %v1680 = vunpack.c.l.s8.bf16 %v736
        %v1681 = vunpack.c.l.s8.bf16 %v737
        %v1682 = vunpack.c.l.s8.bf16 %v738
        %v1683 = vunpack.c.l.s8.bf16 %v739
        %v1684 = vunpack.c.l.s8.bf16 %v740
        %v1685 = vunpack.c.l.s8.bf16 %v741
        %v1686 = vunpack.c.l.s8.bf16 %v742
        %v1687 = vunpack.c.l.s8.bf16 %v743
        %v1688 = vunpack.c.l.s8.bf16 %v744
        %v1689 = vunpack.c.h.s8.bf16 %v729
        %v1690 = vunpack.c.h.s8.bf16 %v730
        %v1691 = vunpack.c.h.s8.bf16 %v731
        %v1692 = vunpack.c.h.s8.bf16 %v732
        %v1693 = vunpack.c.h.s8.bf16 %v733
        %v1694 = vunpack.c.h.s8.bf16 %v734
        %v1695 = vunpack.c.h.s8.bf16 %v735
        %v1696 = vunpack.c.h.s8.bf16 %v736
        %v1697 = vunpack.c.h.s8.bf16 %v737
        %v1698 = vunpack.c.h.s8.bf16 %v738
        %v1699 = vunpack.c.h.s8.bf16 %v739
        %v1700 = vunpack.c.h.s8.bf16 %v740
        %v1701 = vunpack.c.h.s8.bf16 %v741
        %v1702 = vunpack.c.h.s8.bf16 %v742
        %v1703 = vunpack.c.h.s8.bf16 %v743
        %v1704 = vunpack.c.h.s8.bf16 %v744
        %v1705 = vunpack.c.l.s8.bf16 %v745
        %v1706 = vunpack.c.l.s8.bf16 %v746
        %v1707 = vunpack.c.l.s8.bf16 %v747
        %v1708 = vunpack.c.l.s8.bf16 %v748
        %v1709 = vunpack.c.l.s8.bf16 %v749
        %v1710 = vunpack.c.l.s8.bf16 %v750
        %v1711 = vunpack.c.l.s8.bf16 %v751
        %v1712 = vunpack.c.l.s8.bf16 %v752
        %v1713 = vunpack.c.l.s8.bf16 %v753
        %v1714 = vunpack.c.l.s8.bf16 %v754
        %v1715 = vunpack.c.l.s8.bf16 %v755
        %v1716 = vunpack.c.l.s8.bf16 %v756
        %v1717 = vunpack.c.l.s8.bf16 %v757
        %v1718 = vunpack.c.l.s8.bf16 %v758
        %v1719 = vunpack.c.l.s8.bf16 %v759
        %v1720 = vunpack.c.l.s8.bf16 %v760
        %v1721 = vunpack.c.h.s8.bf16 %v745
        %v1722 = vunpack.c.h.s8.bf16 %v746
        %v1723 = vunpack.c.h.s8.bf16 %v747
        %v1724 = vunpack.c.h.s8.bf16 %v748
        %v1725 = vunpack.c.h.s8.bf16 %v749
        %v1726 = vunpack.c.h.s8.bf16 %v750
        %v1727 = vunpack.c.h.s8.bf16 %v751
        %v1728 = vunpack.c.h.s8.bf16 %v752
        %v1729 = vunpack.c.h.s8.bf16 %v753
        %v1730 = vunpack.c.h.s8.bf16 %v754
        %v1731 = vunpack.c.h.s8.bf16 %v755
        %v1732 = vunpack.c.h.s8.bf16 %v756
        %v1733 = vunpack.c.h.s8.bf16 %v757
        %v1734 = vunpack.c.h.s8.bf16 %v758
        %v1735 = vunpack.c.h.s8.bf16 %v759
        %v1736 = vunpack.c.h.s8.bf16 %v760
        %v1737 = vunpack.c.l.s8.bf16 %v761
        %v1738 = vunpack.c.l.s8.bf16 %v762
        %v1739 = vunpack.c.l.s8.bf16 %v763
        %v1740 = vunpack.c.l.s8.bf16 %v764
        %v1741 = vunpack.c.l.s8.bf16 %v765
        %v1742 = vunpack.c.l.s8.bf16 %v766
        %v1743 = vunpack.c.l.s8.bf16 %v767
        %v1744 = vunpack.c.l.s8.bf16 %v768
        %v1745 = vunpack.c.l.s8.bf16 %v769
        %v1746 = vunpack.c.l.s8.bf16 %v770
        %v1747 = vunpack.c.l.s8.bf16 %v771
        %v1748 = vunpack.c.l.s8.bf16 %v772
        %v1749 = vunpack.c.l.s8.bf16 %v773
        %v1750 = vunpack.c.l.s8.bf16 %v774
        %v1751 = vunpack.c.l.s8.bf16 %v775
        %v1752 = vunpack.c.l.s8.bf16 %v776
        %v1753 = vunpack.c.h.s8.bf16 %v761
        %v1754 = vunpack.c.h.s8.bf16 %v762
        %v1755 = vunpack.c.h.s8.bf16 %v763
        %v1756 = vunpack.c.h.s8.bf16 %v764
        %v1757 = vunpack.c.h.s8.bf16 %v765
        %v1758 = vunpack.c.h.s8.bf16 %v766
        %v1759 = vunpack.c.h.s8.bf16 %v767
        %v1760 = vunpack.c.h.s8.bf16 %v768
        %v1761 = vunpack.c.h.s8.bf16 %v769
        %v1762 = vunpack.c.h.s8.bf16 %v770
        %v1763 = vunpack.c.h.s8.bf16 %v771
        %v1764 = vunpack.c.h.s8.bf16 %v772
        %v1765 = vunpack.c.h.s8.bf16 %v773
        %v1766 = vunpack.c.h.s8.bf16 %v774
        %v1767 = vunpack.c.h.s8.bf16 %v775
        %v1768 = vunpack.c.h.s8.bf16 %v776
        %v1769 = vunpack.c.l.s8.bf16 %v777
        %v1770 = vunpack.c.l.s8.bf16 %v778
        %v1771 = vunpack.c.l.s8.bf16 %v779
        %v1772 = vunpack.c.l.s8.bf16 %v780
        %v1773 = vunpack.c.l.s8.bf16 %v781
        %v1774 = vunpack.c.l.s8.bf16 %v782
        %v1775 = vunpack.c.l.s8.bf16 %v783
        %v1776 = vunpack.c.l.s8.bf16 %v784
        %v1777 = vunpack.c.l.s8.bf16 %v785
        %v1778 = vunpack.c.l.s8.bf16 %v786
        %v1779 = vunpack.c.l.s8.bf16 %v787
        %v1780 = vunpack.c.l.s8.bf16 %v788
        %v1781 = vunpack.c.l.s8.bf16 %v789
        %v1782 = vunpack.c.l.s8.bf16 %v790
        %v1783 = vunpack.c.l.s8.bf16 %v791
        %v1784 = vunpack.c.l.s8.bf16 %v792
        %v1785 = vunpack.c.h.s8.bf16 %v777
        %v1786 = vunpack.c.h.s8.bf16 %v778
        %v1787 = vunpack.c.h.s8.bf16 %v779
        %v1788 = vunpack.c.h.s8.bf16 %v780
        %v1789 = vunpack.c.h.s8.bf16 %v781
        %v1790 = vunpack.c.h.s8.bf16 %v782
        %v1791 = vunpack.c.h.s8.bf16 %v783
        %v1792 = vunpack.c.h.s8.bf16 %v784
        %v1793 = vunpack.c.h.s8.bf16 %v785
        %v1794 = vunpack.c.h.s8.bf16 %v786
        %v1795 = vunpack.c.h.s8.bf16 %v787
        %v1796 = vunpack.c.h.s8.bf16 %v788
        %v1797 = vunpack.c.h.s8.bf16 %v789
        %v1798 = vunpack.c.h.s8.bf16 %v790
        %v1799 = vunpack.c.h.s8.bf16 %v791
        %v1800 = vunpack.c.h.s8.bf16 %v792
        %v1801 = vunpack.c.l.s8.bf16 %v793
        %v1802 = vunpack.c.l.s8.bf16 %v794
        %v1803 = vunpack.c.l.s8.bf16 %v795
        %v1804 = vunpack.c.l.s8.bf16 %v796
        %v1805 = vunpack.c.l.s8.bf16 %v797
        %v1806 = vunpack.c.l.s8.bf16 %v798
        %v1807 = vunpack.c.l.s8.bf16 %v799
        %v1808 = vunpack.c.l.s8.bf16 %v800
        %v1809 = vunpack.c.l.s8.bf16 %v801
        %v1810 = vunpack.c.l.s8.bf16 %v802
        %v1811 = vunpack.c.l.s8.bf16 %v803
        %v1812 = vunpack.c.l.s8.bf16 %v804
        %v1813 = vunpack.c.l.s8.bf16 %v805
        %v1814 = vunpack.c.l.s8.bf16 %v806
        %v1815 = vunpack.c.l.s8.bf16 %v807
        %v1816 = vunpack.c.l.s8.bf16 %v808
        %v1817 = vunpack.c.h.s8.bf16 %v793
        %v1818 = vunpack.c.h.s8.bf16 %v794
        %v1819 = vunpack.c.h.s8.bf16 %v795
        %v1820 = vunpack.c.h.s8.bf16 %v796
        %v1821 = vunpack.c.h.s8.bf16 %v797
        %v1822 = vunpack.c.h.s8.bf16 %v798
        %v1823 = vunpack.c.h.s8.bf16 %v799
        %v1824 = vunpack.c.h.s8.bf16 %v800
        %v1825 = vunpack.c.h.s8.bf16 %v801
        %v1826 = vunpack.c.h.s8.bf16 %v802
        %v1827 = vunpack.c.h.s8.bf16 %v803
        %v1828 = vunpack.c.h.s8.bf16 %v804
        %v1829 = vunpack.c.h.s8.bf16 %v805
        %v1830 = vunpack.c.h.s8.bf16 %v806
        %v1831 = vunpack.c.h.s8.bf16 %v807
        %v1832 = vunpack.c.h.s8.bf16 %v808
        %v1837 = vunpack.c.l.b16 %v293
        %v1838 = vunpack.c.h.b16 %v293
        %v1839 = vunpack.c.l.b16 %v294
        %v1840 = vunpack.c.h.b16 %v294
        %v1841 = vunpack.c.l.b16 %v295
        %v1842 = vunpack.c.h.b16 %v295
        %v1843 = vunpack.c.l.b16 %v296
        %v1844 = vunpack.c.h.b16 %v296
        %v1845 = vpack.c.b16 %v1837, %v1837
        %v1846 = vpack.c.b16 %v1838, %v1838
        %v1847 = vpack.c.b16 %v1839, %v1839
        %v1848 = vpack.c.b16 %v1840, %v1840
        %v1849 = vpack.c.b16 %v1841, %v1841
        %v1850 = vpack.c.b16 %v1842, %v1842
        %v1851 = vpack.c.b16 %v1843, %v1843
        %v1852 = vpack.c.b16 %v1844, %v1844
        %1861 = vmatprep.subr.bf16.mxu0 %v810
        %1862 = vmatpush1.bf16.msra.mxu0 %v809
        %1863 = vmatprep.subr.bf16.mxu0 %v826
        %1864 = vmatpush1.bf16.msra.mxu0 %v825
        %1865 = vmatprep.subr.bf16.mxu0 %v842
        %1866 = vmatpush1.bf16.msra.mxu0 %v841
        %1867 = vmatprep.subr.bf16.mxu0 %v858
        %1868 = vmatpush1.bf16.msra.mxu0 %v857
        %1869 = vmatprep.subr.bf16.mxu0 %v874
        %1870 = vmatpush1.bf16.msra.mxu0 %v873
        %1871 = vmatprep.subr.bf16.mxu0 %v890
        %1872 = vmatpush1.bf16.msra.mxu0 %v889
        %1873 = vmatprep.subr.bf16.mxu0 %v906
        %1874 = vmatpush1.bf16.msra.mxu0 %v905
        %1875 = vmatprep.subr.bf16.mxu0 %v922
        %1876 = vmatpush1.bf16.msra.mxu0 %v921
        %1877 = vmatprep.subr.bf16.mxu0 %v938
        %1878 = vmatpush1.bf16.msra.mxu0 %v937
        %1879 = vmatprep.subr.bf16.mxu0 %v954
        %1880 = vmatpush1.bf16.msra.mxu0 %v953
        %1881 = vmatprep.subr.bf16.mxu0 %v970
        %1882 = vmatpush1.bf16.msra.mxu0 %v969
        %1883 = vmatprep.subr.bf16.mxu0 %v986
        %1884 = vmatpush1.bf16.msra.mxu0 %v985
        %1885 = vmatprep.subr.bf16.mxu0 %v1002
        %1886 = vmatpush1.bf16.msra.mxu0 %v1001
        %1887 = vmatprep.subr.bf16.mxu0 %v1018
        %1888 = vmatpush1.bf16.msra.mxu0 %v1017
        %1889 = vmatprep.subr.bf16.mxu0 %v1034
        %1890 = vmatpush1.bf16.msra.mxu0 %v1033
        %1891 = vmatprep.subr.bf16.mxu0 %v1050
        %1892 = vmatpush1.bf16.msra.mxu0 %v1049
        %1893 = vmatprep.mubr.bf16.mxu0 %v1846
        %1894 = vmatmul.mubr.bf16.gmra.mrb[0].mxu0 %v1845
        %v1895 = vpop.f32.mrb[0].mxu0
        %v1896 = vadd.f32 0.0, %v1895
        %v1897 = vpop.f32.mrb[0].mxu0
        %v1898 = vadd.f32 0.0, %v1897
        %v1899 = vpop.f32.mrb[0].mxu0
        %v1900 = vpop.f32.mrb[0].mxu0
        %1901 = vdwg.mxu0
        %1902 = vmatprep.subr.bf16.mxu0 %v1066
        %1903 = vmatpush1.bf16.msra.mxu0 %v1065
        %1904 = vmatprep.subr.bf16.mxu0 %v1082
        %1905 = vmatpush1.bf16.msra.mxu0 %v1081
        %1906 = vmatprep.subr.bf16.mxu0 %v1098
        %1907 = vmatpush1.bf16.msra.mxu0 %v1097
        %1908 = vmatprep.subr.bf16.mxu0 %v1114
        %1909 = vmatpush1.bf16.msra.mxu0 %v1113
        %1910 = vmatprep.subr.bf16.mxu0 %v1130
        %1911 = vmatpush1.bf16.msra.mxu0 %v1129
        %1912 = vmatprep.subr.bf16.mxu0 %v1146
        %1913 = vmatpush1.bf16.msra.mxu0 %v1145
        %1914 = vmatprep.subr.bf16.mxu0 %v1162
        %1915 = vmatpush1.bf16.msra.mxu0 %v1161
        %1916 = vmatprep.subr.bf16.mxu0 %v1178
        %1917 = vmatpush1.bf16.msra.mxu0 %v1177
        %1918 = vmatprep.subr.bf16.mxu0 %v1194
        %1919 = vmatpush1.bf16.msra.mxu0 %v1193
        %1920 = vmatprep.subr.bf16.mxu0 %v1210
        %1921 = vmatpush1.bf16.msra.mxu0 %v1209
        %1922 = vmatprep.subr.bf16.mxu0 %v1226
        %1923 = vmatpush1.bf16.msra.mxu0 %v1225
        %1924 = vmatprep.subr.bf16.mxu0 %v1242
        %1925 = vmatpush1.bf16.msra.mxu0 %v1241
        %1926 = vmatprep.subr.bf16.mxu0 %v1258
        %1927 = vmatpush1.bf16.msra.mxu0 %v1257
        %1928 = vmatprep.subr.bf16.mxu0 %v1274
        %1929 = vmatpush1.bf16.msra.mxu0 %v1273
        %1930 = vmatprep.subr.bf16.mxu0 %v1290
        %1931 = vmatpush1.bf16.msra.mxu0 %v1289
        %1932 = vmatprep.subr.bf16.mxu0 %v1306
        %1933 = vmatpush1.bf16.msra.mxu0 %v1305
        %1934 = vmatprep.mubr.bf16.mxu0 %v1848
        %1935 = vmatmul.mubr.bf16.gmra.mrb[0].mxu0 %v1847
        %v1936 = vpop.f32.mrb[0].mxu0
        %v1937 = vadd.f32 %v1896, %v1936
        %v1938 = vpop.f32.mrb[0].mxu0
        %v1939 = vadd.f32 %v1898, %v1938
        %v1940 = vpop.f32.mrb[0].mxu0
        %v1941 = vpop.f32.mrb[0].mxu0
        %1942 = vdwg.mxu0
        %1943 = vmatprep.subr.bf16.mxu0 %v1322
        %1944 = vmatpush1.bf16.msra.mxu0 %v1321
        %1945 = vmatprep.subr.bf16.mxu0 %v1338
        %1946 = vmatpush1.bf16.msra.mxu0 %v1337
        %1947 = vmatprep.subr.bf16.mxu0 %v1354
        %1948 = vmatpush1.bf16.msra.mxu0 %v1353
        %1949 = vmatprep.subr.bf16.mxu0 %v1370
        %1950 = vmatpush1.bf16.msra.mxu0 %v1369
        %1951 = vmatprep.subr.bf16.mxu0 %v1386
        %1952 = vmatpush1.bf16.msra.mxu0 %v1385
        %1953 = vmatprep.subr.bf16.mxu0 %v1402
        %1954 = vmatpush1.bf16.msra.mxu0 %v1401
        %1955 = vmatprep.subr.bf16.mxu0 %v1418
        %1956 = vmatpush1.bf16.msra.mxu0 %v1417
        %1957 = vmatprep.subr.bf16.mxu0 %v1434
        %1958 = vmatpush1.bf16.msra.mxu0 %v1433
        %1959 = vmatprep.subr.bf16.mxu0 %v1450
        %1960 = vmatpush1.bf16.msra.mxu0 %v1449
        %1961 = vmatprep.subr.bf16.mxu0 %v1466
        %1962 = vmatpush1.bf16.msra.mxu0 %v1465
        %1963 = vmatprep.subr.bf16.mxu0 %v1482
        %1964 = vmatpush1.bf16.msra.mxu0 %v1481
        %1965 = vmatprep.subr.bf16.mxu0 %v1498
        %1966 = vmatpush1.bf16.msra.mxu0 %v1497
        %1967 = vmatprep.subr.bf16.mxu0 %v1514
        %1968 = vmatpush1.bf16.msra.mxu0 %v1513
        %1969 = vmatprep.subr.bf16.mxu0 %v1530
        %1970 = vmatpush1.bf16.msra.mxu0 %v1529
        %1971 = vmatprep.subr.bf16.mxu0 %v1546
        %1972 = vmatpush1.bf16.msra.mxu0 %v1545
        %1973 = vmatprep.subr.bf16.mxu0 %v1562
        %1974 = vmatpush1.bf16.msra.mxu0 %v1561
        %1975 = vmatprep.mubr.bf16.mxu0 %v1850
        %1976 = vmatmul.mubr.bf16.gmra.mrb[0].mxu0 %v1849
        %v1977 = vpop.f32.mrb[0].mxu0
        %v1978 = vadd.f32 %v1937, %v1977
        %v1979 = vpop.f32.mrb[0].mxu0
        %v1980 = vadd.f32 %v1939, %v1979
        %v1981 = vpop.f32.mrb[0].mxu0
        %v1982 = vpop.f32.mrb[0].mxu0
        %1983 = vdwg.mxu0
        %1984 = vmatprep.subr.bf16.mxu0 %v1578
        %1985 = vmatpush1.bf16.msra.mxu0 %v1577
        %1986 = vmatprep.subr.bf16.mxu0 %v1594
        %1987 = vmatpush1.bf16.msra.mxu0 %v1593
        %1988 = vmatprep.subr.bf16.mxu0 %v1610
        %1989 = vmatpush1.bf16.msra.mxu0 %v1609
        %1990 = vmatprep.subr.bf16.mxu0 %v1626
        %1991 = vmatpush1.bf16.msra.mxu0 %v1625
        %1992 = vmatprep.subr.bf16.mxu0 %v1642
        %1993 = vmatpush1.bf16.msra.mxu0 %v1641
        %1994 = vmatprep.subr.bf16.mxu0 %v1658
        %1995 = vmatpush1.bf16.msra.mxu0 %v1657
        %1996 = vmatprep.subr.bf16.mxu0 %v1674
        %1997 = vmatpush1.bf16.msra.mxu0 %v1673
        %1998 = vmatprep.subr.bf16.mxu0 %v1690
        %1999 = vmatpush1.bf16.msra.mxu0 %v1689
        %2000 = vmatprep.subr.bf16.mxu0 %v1706
        %2001 = vmatpush1.bf16.msra.mxu0 %v1705
        %2002 = vmatprep.subr.bf16.mxu0 %v1722
        %2003 = vmatpush1.bf16.msra.mxu0 %v1721
        %2004 = vmatprep.subr.bf16.mxu0 %v1738
        %2005 = vmatpush1.bf16.msra.mxu0 %v1737
        %2006 = vmatprep.subr.bf16.mxu0 %v1754
        %2007 = vmatpush1.bf16.msra.mxu0 %v1753
        %2008 = vmatprep.subr.bf16.mxu0 %v1770
        %2009 = vmatpush1.bf16.msra.mxu0 %v1769
        %2010 = vmatprep.subr.bf16.mxu0 %v1786
        %2011 = vmatpush1.bf16.msra.mxu0 %v1785
        %2012 = vmatprep.subr.bf16.mxu0 %v1802
        %2013 = vmatpush1.bf16.msra.mxu0 %v1801
        %2014 = vmatprep.subr.bf16.mxu0 %v1818
        %2015 = vmatpush1.bf16.msra.mxu0 %v1817
        %2016 = vmatprep.mubr.bf16.mxu0 %v1852
        %2017 = vmatmul.mubr.bf16.gmra.mrb[0].mxu0 %v1851
        %v2018 = vpop.f32.mrb[0].mxu0
        %v2019 = vadd.f32 %v1978, %v2018
        %v2020 = vpop.f32.mrb[0].mxu0
        %v2021 = vadd.f32 %v1980, %v2020
        %v2022 = vpop.f32.mrb[0].mxu0
        %v2023 = vpop.f32.mrb[0].mxu0
        %2024 = vdwg.mxu0
        %2025 = vmatprep.subr.bf16.mxu0 %v812
        %2026 = vmatpush1.bf16.msra.mxu0 %v811
        %2027 = vmatprep.subr.bf16.mxu0 %v828
        %2028 = vmatpush1.bf16.msra.mxu0 %v827
        %2029 = vmatprep.subr.bf16.mxu0 %v844
        %2030 = vmatpush1.bf16.msra.mxu0 %v843
        %2031 = vmatprep.subr.bf16.mxu0 %v860
        %2032 = vmatpush1.bf16.msra.mxu0 %v859
        %2033 = vmatprep.subr.bf16.mxu0 %v876
        %2034 = vmatpush1.bf16.msra.mxu0 %v875
        %2035 = vmatprep.subr.bf16.mxu0 %v892
        %2036 = vmatpush1.bf16.msra.mxu0 %v891
        %2037 = vmatprep.subr.bf16.mxu0 %v908
        %2038 = vmatpush1.bf16.msra.mxu0 %v907
        %2039 = vmatprep.subr.bf16.mxu0 %v924
        %2040 = vmatpush1.bf16.msra.mxu0 %v923
        %2041 = vmatprep.subr.bf16.mxu0 %v940
        %2042 = vmatpush1.bf16.msra.mxu0 %v939
        %2043 = vmatprep.subr.bf16.mxu0 %v956
        %2044 = vmatpush1.bf16.msra.mxu0 %v955
        %2045 = vmatprep.subr.bf16.mxu0 %v972
        %2046 = vmatpush1.bf16.msra.mxu0 %v971
        %2047 = vmatprep.subr.bf16.mxu0 %v988
        %2048 = vmatpush1.bf16.msra.mxu0 %v987
        %2049 = vmatprep.subr.bf16.mxu0 %v1004
        %2050 = vmatpush1.bf16.msra.mxu0 %v1003
        %2051 = vmatprep.subr.bf16.mxu0 %v1020
        %2052 = vmatpush1.bf16.msra.mxu0 %v1019
        %2053 = vmatprep.subr.bf16.mxu0 %v1036
        %2054 = vmatpush1.bf16.msra.mxu0 %v1035
        %2055 = vmatprep.subr.bf16.mxu0 %v1052
        %2056 = vmatpush1.bf16.msra.mxu0 %v1051
        %2057 = vmatprep.mubr.bf16.mxu0 %v1846
        %2058 = vmatmul.mubr.bf16.gmra.mrb[0].mxu0 %v1845
        %v2059 = vpop.f32.mrb[0].mxu0
        %v2060 = vadd.f32 0.0, %v2059
        %v2061 = vpop.f32.mrb[0].mxu0
        %v2062 = vadd.f32 0.0, %v2061
        %v2063 = vpop.f32.mrb[0].mxu0
        %v2064 = vpop.f32.mrb[0].mxu0
        %2065 = vdwg.mxu0
        %2066 = vmatprep.subr.bf16.mxu0 %v1068
        %2067 = vmatpush1.bf16.msra.mxu0 %v1067
        %2068 = vmatprep.subr.bf16.mxu0 %v1084
        %2069 = vmatpush1.bf16.msra.mxu0 %v1083
        %2070 = vmatprep.subr.bf16.mxu0 %v1100
        %2071 = vmatpush1.bf16.msra.mxu0 %v1099
        %2072 = vmatprep.subr.bf16.mxu0 %v1116
        %2073 = vmatpush1.bf16.msra.mxu0 %v1115
        %2074 = vmatprep.subr.bf16.mxu0 %v1132
        %2075 = vmatpush1.bf16.msra.mxu0 %v1131
        %2076 = vmatprep.subr.bf16.mxu0 %v1148
        %2077 = vmatpush1.bf16.msra.mxu0 %v1147
        %2078 = vmatprep.subr.bf16.mxu0 %v1164
        %2079 = vmatpush1.bf16.msra.mxu0 %v1163
        %2080 = vmatprep.subr.bf16.mxu0 %v1180
        %2081 = vmatpush1.bf16.msra.mxu0 %v1179
        %2082 = vmatprep.subr.bf16.mxu0 %v1196
        %2083 = vmatpush1.bf16.msra.mxu0 %v1195
        %2084 = vmatprep.subr.bf16.mxu0 %v1212
        %2085 = vmatpush1.bf16.msra.mxu0 %v1211
        %2086 = vmatprep.subr.bf16.mxu0 %v1228
        %2087 = vmatpush1.bf16.msra.mxu0 %v1227
        %2088 = vmatprep.subr.bf16.mxu0 %v1244
        %2089 = vmatpush1.bf16.msra.mxu0 %v1243
        %2090 = vmatprep.subr.bf16.mxu0 %v1260
        %2091 = vmatpush1.bf16.msra.mxu0 %v1259
        %2092 = vmatprep.subr.bf16.mxu0 %v1276
        %2093 = vmatpush1.bf16.msra.mxu0 %v1275
        %2094 = vmatprep.subr.bf16.mxu0 %v1292
        %2095 = vmatpush1.bf16.msra.mxu0 %v1291
        %2096 = vmatprep.subr.bf16.mxu0 %v1308
        %2097 = vmatpush1.bf16.msra.mxu0 %v1307
        %2098 = vmatprep.mubr.bf16.mxu0 %v1848
        %2099 = vmatmul.mubr.bf16.gmra.mrb[0].mxu0 %v1847
        %v2100 = vpop.f32.mrb[0].mxu0
        %v2101 = vadd.f32 %v2060, %v2100
        %v2102 = vpop.f32.mrb[0].mxu0
        %v2103 = vadd.f32 %v2062, %v2102
        %v2104 = vpop.f32.mrb[0].mxu0
        %v2105 = vpop.f32.mrb[0].mxu0
        %2106 = vdwg.mxu0
        %2107 = vmatprep.subr.bf16.mxu0 %v1324
        %2108 = vmatpush1.bf16.msra.mxu0 %v1323
        %2109 = vmatprep.subr.bf16.mxu0 %v1340
        %2110 = vmatpush1.bf16.msra.mxu0 %v1339
        %2111 = vmatprep.subr.bf16.mxu0 %v1356
        %2112 = vmatpush1.bf16.msra.mxu0 %v1355
        %2113 = vmatprep.subr.bf16.mxu0 %v1372
        %2114 = vmatpush1.bf16.msra.mxu0 %v1371
        %2115 = vmatprep.subr.bf16.mxu0 %v1388
        %2116 = vmatpush1.bf16.msra.mxu0 %v1387
        %2117 = vmatprep.subr.bf16.mxu0 %v1404
        %2118 = vmatpush1.bf16.msra.mxu0 %v1403
        %2119 = vmatprep.subr.bf16.mxu0 %v1420
        %2120 = vmatpush1.bf16.msra.mxu0 %v1419
        %2121 = vmatprep.subr.bf16.mxu0 %v1436
        %2122 = vmatpush1.bf16.msra.mxu0 %v1435
        %2123 = vmatprep.subr.bf16.mxu0 %v1452
        %2124 = vmatpush1.bf16.msra.mxu0 %v1451
        %2125 = vmatprep.subr.bf16.mxu0 %v1468
        %2126 = vmatpush1.bf16.msra.mxu0 %v1467
        %2127 = vmatprep.subr.bf16.mxu0 %v1484
        %2128 = vmatpush1.bf16.msra.mxu0 %v1483
        %2129 = vmatprep.subr.bf16.mxu0 %v1500
        %2130 = vmatpush1.bf16.msra.mxu0 %v1499
        %2131 = vmatprep.subr.bf16.mxu0 %v1516
        %2132 = vmatpush1.bf16.msra.mxu0 %v1515
        %2133 = vmatprep.subr.bf16.mxu0 %v1532
        %2134 = vmatpush1.bf16.msra.mxu0 %v1531
        %2135 = vmatprep.subr.bf16.mxu0 %v1548
        %2136 = vmatpush1.bf16.msra.mxu0 %v1547
        %2137 = vmatprep.subr.bf16.mxu0 %v1564
        %2138 = vmatpush1.bf16.msra.mxu0 %v1563
        %2139 = vmatprep.mubr.bf16.mxu0 %v1850
        %2140 = vmatmul.mubr.bf16.gmra.mrb[0].mxu0 %v1849
        %v2141 = vpop.f32.mrb[0].mxu0
        %v2142 = vadd.f32 %v2101, %v2141
        %v2143 = vpop.f32.mrb[0].mxu0
        %v2144 = vadd.f32 %v2103, %v2143
        %v2145 = vpop.f32.mrb[0].mxu0
        %v2146 = vpop.f32.mrb[0].mxu0
        %2147 = vdwg.mxu0
        %2148 = vmatprep.subr.bf16.mxu0 %v1580
        %2149 = vmatpush1.bf16.msra.mxu0 %v1579
        %2150 = vmatprep.subr.bf16.mxu0 %v1596
        %2151 = vmatpush1.bf16.msra.mxu0 %v1595
        %2152 = vmatprep.subr.bf16.mxu0 %v1612
        %2153 = vmatpush1.bf16.msra.mxu0 %v1611
        %2154 = vmatprep.subr.bf16.mxu0 %v1628
        %2155 = vmatpush1.bf16.msra.mxu0 %v1627
        %2156 = vmatprep.subr.bf16.mxu0 %v1644
        %2157 = vmatpush1.bf16.msra.mxu0 %v1643
        %2158 = vmatprep.subr.bf16.mxu0 %v1660
        %2159 = vmatpush1.bf16.msra.mxu0 %v1659
        %2160 = vmatprep.subr.bf16.mxu0 %v1676
        %2161 = vmatpush1.bf16.msra.mxu0 %v1675
        %2162 = vmatprep.subr.bf16.mxu0 %v1692
        %2163 = vmatpush1.bf16.msra.mxu0 %v1691
        %2164 = vmatprep.subr.bf16.mxu0 %v1708
        %2165 = vmatpush1.bf16.msra.mxu0 %v1707
        %2166 = vmatprep.subr.bf16.mxu0 %v1724
        %2167 = vmatpush1.bf16.msra.mxu0 %v1723
        %2168 = vmatprep.subr.bf16.mxu0 %v1740
        %2169 = vmatpush1.bf16.msra.mxu0 %v1739
        %2170 = vmatprep.subr.bf16.mxu0 %v1756
        %2171 = vmatpush1.bf16.msra.mxu0 %v1755
        %2172 = vmatprep.subr.bf16.mxu0 %v1772
        %2173 = vmatpush1.bf16.msra.mxu0 %v1771
        %2174 = vmatprep.subr.bf16.mxu0 %v1788
        %2175 = vmatpush1.bf16.msra.mxu0 %v1787
        %2176 = vmatprep.subr.bf16.mxu0 %v1804
        %2177 = vmatpush1.bf16.msra.mxu0 %v1803
        %2178 = vmatprep.subr.bf16.mxu0 %v1820
        %2179 = vmatpush1.bf16.msra.mxu0 %v1819
        %2180 = vmatprep.mubr.bf16.mxu0 %v1852
        %2181 = vmatmul.mubr.bf16.gmra.mrb[0].mxu0 %v1851
        %v2182 = vpop.f32.mrb[0].mxu0
        %v2183 = vadd.f32 %v2142, %v2182
        %v2184 = vpop.f32.mrb[0].mxu0
        %v2185 = vadd.f32 %v2144, %v2184
        %v2186 = vpop.f32.mrb[0].mxu0
        %v2187 = vpop.f32.mrb[0].mxu0
        %2188 = vdwg.mxu0
        %2189 = vmatprep.subr.bf16.mxu0 %v814
        %2190 = vmatpush1.bf16.msra.mxu0 %v813
        %2191 = vmatprep.subr.bf16.mxu0 %v830
        %2192 = vmatpush1.bf16.msra.mxu0 %v829
        %2193 = vmatprep.subr.bf16.mxu0 %v846
        %2194 = vmatpush1.bf16.msra.mxu0 %v845
        %2195 = vmatprep.subr.bf16.mxu0 %v862
        %2196 = vmatpush1.bf16.msra.mxu0 %v861
        %2197 = vmatprep.subr.bf16.mxu0 %v878
        %2198 = vmatpush1.bf16.msra.mxu0 %v877
        %2199 = vmatprep.subr.bf16.mxu0 %v894
        %2200 = vmatpush1.bf16.msra.mxu0 %v893
        %2201 = vmatprep.subr.bf16.mxu0 %v910
        %2202 = vmatpush1.bf16.msra.mxu0 %v909
        %2203 = vmatprep.subr.bf16.mxu0 %v926
        %2204 = vmatpush1.bf16.msra.mxu0 %v925
        %2205 = vmatprep.subr.bf16.mxu0 %v942
        %2206 = vmatpush1.bf16.msra.mxu0 %v941
        %2207 = vmatprep.subr.bf16.mxu0 %v958
        %2208 = vmatpush1.bf16.msra.mxu0 %v957
        %2209 = vmatprep.subr.bf16.mxu0 %v974
        %2210 = vmatpush1.bf16.msra.mxu0 %v973
        %2211 = vmatprep.subr.bf16.mxu0 %v990
        %2212 = vmatpush1.bf16.msra.mxu0 %v989
        %2213 = vmatprep.subr.bf16.mxu0 %v1006
        %2214 = vmatpush1.bf16.msra.mxu0 %v1005
        %2215 = vmatprep.subr.bf16.mxu0 %v1022
        %2216 = vmatpush1.bf16.msra.mxu0 %v1021
        %2217 = vmatprep.subr.bf16.mxu0 %v1038
        %2218 = vmatpush1.bf16.msra.mxu0 %v1037
        %2219 = vmatprep.subr.bf16.mxu0 %v1054
        %2220 = vmatpush1.bf16.msra.mxu0 %v1053
        %2221 = vmatprep.mubr.bf16.mxu0 %v1846
        %2222 = vmatmul.mubr.bf16.gmra.mrb[0].mxu0 %v1845
        %v2223 = vpop.f32.mrb[0].mxu0
        %v2224 = vadd.f32 0.0, %v2223
        %v2225 = vpop.f32.mrb[0].mxu0
        %v2226 = vadd.f32 0.0, %v2225
        %v2227 = vpop.f32.mrb[0].mxu0
        %v2228 = vpop.f32.mrb[0].mxu0
        %2229 = vdwg.mxu0
        %2230 = vmatprep.subr.bf16.mxu0 %v1070
        %2231 = vmatpush1.bf16.msra.mxu0 %v1069
        %2232 = vmatprep.subr.bf16.mxu0 %v1086
        %2233 = vmatpush1.bf16.msra.mxu0 %v1085
        %2234 = vmatprep.subr.bf16.mxu0 %v1102
        %2235 = vmatpush1.bf16.msra.mxu0 %v1101
        %2236 = vmatprep.subr.bf16.mxu0 %v1118
        %2237 = vmatpush1.bf16.msra.mxu0 %v1117
        %2238 = vmatprep.subr.bf16.mxu0 %v1134
        %2239 = vmatpush1.bf16.msra.mxu0 %v1133
        %2240 = vmatprep.subr.bf16.mxu0 %v1150
        %2241 = vmatpush1.bf16.msra.mxu0 %v1149
        %2242 = vmatprep.subr.bf16.mxu0 %v1166
        %2243 = vmatpush1.bf16.msra.mxu0 %v1165
        %2244 = vmatprep.subr.bf16.mxu0 %v1182
        %2245 = vmatpush1.bf16.msra.mxu0 %v1181
        %2246 = vmatprep.subr.bf16.mxu0 %v1198
        %2247 = vmatpush1.bf16.msra.mxu0 %v1197
        %2248 = vmatprep.subr.bf16.mxu0 %v1214
        %2249 = vmatpush1.bf16.msra.mxu0 %v1213
        %2250 = vmatprep.subr.bf16.mxu0 %v1230
        %2251 = vmatpush1.bf16.msra.mxu0 %v1229
        %2252 = vmatprep.subr.bf16.mxu0 %v1246
        %2253 = vmatpush1.bf16.msra.mxu0 %v1245
        %2254 = vmatprep.subr.bf16.mxu0 %v1262
        %2255 = vmatpush1.bf16.msra.mxu0 %v1261
        %2256 = vmatprep.subr.bf16.mxu0 %v1278
        %2257 = vmatpush1.bf16.msra.mxu0 %v1277
        %2258 = vmatprep.subr.bf16.mxu0 %v1294
        %2259 = vmatpush1.bf16.msra.mxu0 %v1293
        %2260 = vmatprep.subr.bf16.mxu0 %v1310
        %2261 = vmatpush1.bf16.msra.mxu0 %v1309
        %2262 = vmatprep.mubr.bf16.mxu0 %v1848
        %2263 = vmatmul.mubr.bf16.gmra.mrb[0].mxu0 %v1847
        %v2264 = vpop.f32.mrb[0].mxu0
        %v2265 = vadd.f32 %v2224, %v2264
        %v2266 = vpop.f32.mrb[0].mxu0
        %v2267 = vadd.f32 %v2226, %v2266
        %v2268 = vpop.f32.mrb[0].mxu0
        %v2269 = vpop.f32.mrb[0].mxu0
        %2270 = vdwg.mxu0
        %2271 = vmatprep.subr.bf16.mxu0 %v1326
        %2272 = vmatpush1.bf16.msra.mxu0 %v1325
        %2273 = vmatprep.subr.bf16.mxu0 %v1342
        %2274 = vmatpush1.bf16.msra.mxu0 %v1341
        %2275 = vmatprep.subr.bf16.mxu0 %v1358
        %2276 = vmatpush1.bf16.msra.mxu0 %v1357
        %2277 = vmatprep.subr.bf16.mxu0 %v1374
        %2278 = vmatpush1.bf16.msra.mxu0 %v1373
        %2279 = vmatprep.subr.bf16.mxu0 %v1390
        %2280 = vmatpush1.bf16.msra.mxu0 %v1389
        %2281 = vmatprep.subr.bf16.mxu0 %v1406
        %2282 = vmatpush1.bf16.msra.mxu0 %v1405
        %2283 = vmatprep.subr.bf16.mxu0 %v1422
        %2284 = vmatpush1.bf16.msra.mxu0 %v1421
        %2285 = vmatprep.subr.bf16.mxu0 %v1438
        %2286 = vmatpush1.bf16.msra.mxu0 %v1437
        %2287 = vmatprep.subr.bf16.mxu0 %v1454
        %2288 = vmatpush1.bf16.msra.mxu0 %v1453
        %2289 = vmatprep.subr.bf16.mxu0 %v1470
        %2290 = vmatpush1.bf16.msra.mxu0 %v1469
        %2291 = vmatprep.subr.bf16.mxu0 %v1486
        %2292 = vmatpush1.bf16.msra.mxu0 %v1485
        %2293 = vmatprep.subr.bf16.mxu0 %v1502
        %2294 = vmatpush1.bf16.msra.mxu0 %v1501
        %2295 = vmatprep.subr.bf16.mxu0 %v1518
        %2296 = vmatpush1.bf16.msra.mxu0 %v1517
        %2297 = vmatprep.subr.bf16.mxu0 %v1534
        %2298 = vmatpush1.bf16.msra.mxu0 %v1533
        %2299 = vmatprep.subr.bf16.mxu0 %v1550
        %2300 = vmatpush1.bf16.msra.mxu0 %v1549
        %2301 = vmatprep.subr.bf16.mxu0 %v1566
        %2302 = vmatpush1.bf16.msra.mxu0 %v1565
        %2303 = vmatprep.mubr.bf16.mxu0 %v1850
        %2304 = vmatmul.mubr.bf16.gmra.mrb[0].mxu0 %v1849
        %v2305 = vpop.f32.mrb[0].mxu0
        %v2306 = vadd.f32 %v2265, %v2305
        %v2307 = vpop.f32.mrb[0].mxu0
        %v2308 = vadd.f32 %v2267, %v2307
        %v2309 = vpop.f32.mrb[0].mxu0
        %v2310 = vpop.f32.mrb[0].mxu0
        %2311 = vdwg.mxu0
        %2312 = vmatprep.subr.bf16.mxu0 %v1582
        %2313 = vmatpush1.bf16.msra.mxu0 %v1581
        %2314 = vmatprep.subr.bf16.mxu0 %v1598
        %2315 = vmatpush1.bf16.msra.mxu0 %v1597
        %2316 = vmatprep.subr.bf16.mxu0 %v1614
        %2317 = vmatpush1.bf16.msra.mxu0 %v1613
        %2318 = vmatprep.subr.bf16.mxu0 %v1630
        %2319 = vmatpush1.bf16.msra.mxu0 %v1629
        %2320 = vmatprep.subr.bf16.mxu0 %v1646
        %2321 = vmatpush1.bf16.msra.mxu0 %v1645
        %2322 = vmatprep.subr.bf16.mxu0 %v1662
        %2323 = vmatpush1.bf16.msra.mxu0 %v1661
        %2324 = vmatprep.subr.bf16.mxu0 %v1678
        %2325 = vmatpush1.bf16.msra.mxu0 %v1677
        %2326 = vmatprep.subr.bf16.mxu0 %v1694
        %2327 = vmatpush1.bf16.msra.mxu0 %v1693
        %2328 = vmatprep.subr.bf16.mxu0 %v1710
        %2329 = vmatpush1.bf16.msra.mxu0 %v1709
        %2330 = vmatprep.subr.bf16.mxu0 %v1726
        %2331 = vmatpush1.bf16.msra.mxu0 %v1725
        %2332 = vmatprep.subr.bf16.mxu0 %v1742
        %2333 = vmatpush1.bf16.msra.mxu0 %v1741
        %2334 = vmatprep.subr.bf16.mxu0 %v1758
        %2335 = vmatpush1.bf16.msra.mxu0 %v1757
        %2336 = vmatprep.subr.bf16.mxu0 %v1774
        %2337 = vmatpush1.bf16.msra.mxu0 %v1773
        %2338 = vmatprep.subr.bf16.mxu0 %v1790
        %2339 = vmatpush1.bf16.msra.mxu0 %v1789
        %2340 = vmatprep.subr.bf16.mxu0 %v1806
        %2341 = vmatpush1.bf16.msra.mxu0 %v1805
        %2342 = vmatprep.subr.bf16.mxu0 %v1822
        %2343 = vmatpush1.bf16.msra.mxu0 %v1821
        %2344 = vmatprep.mubr.bf16.mxu0 %v1852
        %2345 = vmatmul.mubr.bf16.gmra.mrb[0].mxu0 %v1851
        %v2346 = vpop.f32.mrb[0].mxu0
        %v2347 = vadd.f32 %v2306, %v2346
        %v2348 = vpop.f32.mrb[0].mxu0
        %v2349 = vadd.f32 %v2308, %v2348
        %v2350 = vpop.f32.mrb[0].mxu0
        %v2351 = vpop.f32.mrb[0].mxu0
        %2352 = vdwg.mxu0
        %2353 = vmatprep.subr.bf16.mxu0 %v816
        %2354 = vmatpush1.bf16.msra.mxu0 %v815
        %2355 = vmatprep.subr.bf16.mxu0 %v832
        %2356 = vmatpush1.bf16.msra.mxu0 %v831
        %2357 = vmatprep.subr.bf16.mxu0 %v848
        %2358 = vmatpush1.bf16.msra.mxu0 %v847
        %2359 = vmatprep.subr.bf16.mxu0 %v864
        %2360 = vmatpush1.bf16.msra.mxu0 %v863
        %2361 = vmatprep.subr.bf16.mxu0 %v880
        %2362 = vmatpush1.bf16.msra.mxu0 %v879
        %2363 = vmatprep.subr.bf16.mxu0 %v896
        %2364 = vmatpush1.bf16.msra.mxu0 %v895
        %2365 = vmatprep.subr.bf16.mxu0 %v912
        %2366 = vmatpush1.bf16.msra.mxu0 %v911
        %2367 = vmatprep.subr.bf16.mxu0 %v928
        %2368 = vmatpush1.bf16.msra.mxu0 %v927
        %2369 = vmatprep.subr.bf16.mxu0 %v944
        %2370 = vmatpush1.bf16.msra.mxu0 %v943
        %2371 = vmatprep.subr.bf16.mxu0 %v960
        %2372 = vmatpush1.bf16.msra.mxu0 %v959
        %2373 = vmatprep.subr.bf16.mxu0 %v976
        %2374 = vmatpush1.bf16.msra.mxu0 %v975
        %2375 = vmatprep.subr.bf16.mxu0 %v992
        %2376 = vmatpush1.bf16.msra.mxu0 %v991
        %2377 = vmatprep.subr.bf16.mxu0 %v1008
        %2378 = vmatpush1.bf16.msra.mxu0 %v1007
        %2379 = vmatprep.subr.bf16.mxu0 %v1024
        %2380 = vmatpush1.bf16.msra.mxu0 %v1023
        %2381 = vmatprep.subr.bf16.mxu0 %v1040
        %2382 = vmatpush1.bf16.msra.mxu0 %v1039
        %2383 = vmatprep.subr.bf16.mxu0 %v1056
        %2384 = vmatpush1.bf16.msra.mxu0 %v1055
        %2385 = vmatprep.mubr.bf16.mxu0 %v1846
        %2386 = vmatmul.mubr.bf16.gmra.mrb[0].mxu0 %v1845
        %v2387 = vpop.f32.mrb[0].mxu0
        %v2388 = vadd.f32 0.0, %v2387
        %v2389 = vpop.f32.mrb[0].mxu0
        %v2390 = vadd.f32 0.0, %v2389
        %v2391 = vpop.f32.mrb[0].mxu0
        %v2392 = vpop.f32.mrb[0].mxu0
        %2393 = vdwg.mxu0
        %2394 = vmatprep.subr.bf16.mxu0 %v1072
        %2395 = vmatpush1.bf16.msra.mxu0 %v1071
        %2396 = vmatprep.subr.bf16.mxu0 %v1088
        %2397 = vmatpush1.bf16.msra.mxu0 %v1087
        %2398 = vmatprep.subr.bf16.mxu0 %v1104
        %2399 = vmatpush1.bf16.msra.mxu0 %v1103
        %2400 = vmatprep.subr.bf16.mxu0 %v1120
        %2401 = vmatpush1.bf16.msra.mxu0 %v1119
        %2402 = vmatprep.subr.bf16.mxu0 %v1136
        %2403 = vmatpush1.bf16.msra.mxu0 %v1135
        %2404 = vmatprep.subr.bf16.mxu0 %v1152
        %2405 = vmatpush1.bf16.msra.mxu0 %v1151
        %2406 = vmatprep.subr.bf16.mxu0 %v1168
        %2407 = vmatpush1.bf16.msra.mxu0 %v1167
        %2408 = vmatprep.subr.bf16.mxu0 %v1184
        %2409 = vmatpush1.bf16.msra.mxu0 %v1183
        %2410 = vmatprep.subr.bf16.mxu0 %v1200
        %2411 = vmatpush1.bf16.msra.mxu0 %v1199
        %2412 = vmatprep.subr.bf16.mxu0 %v1216
        %2413 = vmatpush1.bf16.msra.mxu0 %v1215
        %2414 = vmatprep.subr.bf16.mxu0 %v1232
        %2415 = vmatpush1.bf16.msra.mxu0 %v1231
        %2416 = vmatprep.subr.bf16.mxu0 %v1248
        %2417 = vmatpush1.bf16.msra.mxu0 %v1247
        %2418 = vmatprep.subr.bf16.mxu0 %v1264
        %2419 = vmatpush1.bf16.msra.mxu0 %v1263
        %2420 = vmatprep.subr.bf16.mxu0 %v1280
        %2421 = vmatpush1.bf16.msra.mxu0 %v1279
        %2422 = vmatprep.subr.bf16.mxu0 %v1296
        %2423 = vmatpush1.bf16.msra.mxu0 %v1295
        %2424 = vmatprep.subr.bf16.mxu0 %v1312
        %2425 = vmatpush1.bf16.msra.mxu0 %v1311
        %2426 = vmatprep.mubr.bf16.mxu0 %v1848
        %2427 = vmatmul.mubr.bf16.gmra.mrb[0].mxu0 %v1847
        %v2428 = vpop.f32.mrb[0].mxu0
        %v2429 = vadd.f32 %v2388, %v2428
        %v2430 = vpop.f32.mrb[0].mxu0
        %v2431 = vadd.f32 %v2390, %v2430
        %v2432 = vpop.f32.mrb[0].mxu0
        %v2433 = vpop.f32.mrb[0].mxu0
        %2434 = vdwg.mxu0
        %2435 = vmatprep.subr.bf16.mxu0 %v1328
        %2436 = vmatpush1.bf16.msra.mxu0 %v1327
        %2437 = vmatprep.subr.bf16.mxu0 %v1344
        %2438 = vmatpush1.bf16.msra.mxu0 %v1343
        %2439 = vmatprep.subr.bf16.mxu0 %v1360
        %2440 = vmatpush1.bf16.msra.mxu0 %v1359
        %2441 = vmatprep.subr.bf16.mxu0 %v1376
        %2442 = vmatpush1.bf16.msra.mxu0 %v1375
        %2443 = vmatprep.subr.bf16.mxu0 %v1392
        %2444 = vmatpush1.bf16.msra.mxu0 %v1391
        %2445 = vmatprep.subr.bf16.mxu0 %v1408
        %2446 = vmatpush1.bf16.msra.mxu0 %v1407
        %2447 = vmatprep.subr.bf16.mxu0 %v1424
        %2448 = vmatpush1.bf16.msra.mxu0 %v1423
        %2449 = vmatprep.subr.bf16.mxu0 %v1440
        %2450 = vmatpush1.bf16.msra.mxu0 %v1439
        %2451 = vmatprep.subr.bf16.mxu0 %v1456
        %2452 = vmatpush1.bf16.msra.mxu0 %v1455
        %2453 = vmatprep.subr.bf16.mxu0 %v1472
        %2454 = vmatpush1.bf16.msra.mxu0 %v1471
        %2455 = vmatprep.subr.bf16.mxu0 %v1488
        %2456 = vmatpush1.bf16.msra.mxu0 %v1487
        %2457 = vmatprep.subr.bf16.mxu0 %v1504
        %2458 = vmatpush1.bf16.msra.mxu0 %v1503
        %2459 = vmatprep.subr.bf16.mxu0 %v1520
        %2460 = vmatpush1.bf16.msra.mxu0 %v1519
        %2461 = vmatprep.subr.bf16.mxu0 %v1536
        %2462 = vmatpush1.bf16.msra.mxu0 %v1535
        %2463 = vmatprep.subr.bf16.mxu0 %v1552
        %2464 = vmatpush1.bf16.msra.mxu0 %v1551
        %2465 = vmatprep.subr.bf16.mxu0 %v1568
        %2466 = vmatpush1.bf16.msra.mxu0 %v1567
        %2467 = vmatprep.mubr.bf16.mxu0 %v1850
        %2468 = vmatmul.mubr.bf16.gmra.mrb[0].mxu0 %v1849
        %v2469 = vpop.f32.mrb[0].mxu0
        %v2470 = vadd.f32 %v2429, %v2469
        %v2471 = vpop.f32.mrb[0].mxu0
        %v2472 = vadd.f32 %v2431, %v2471
        %v2473 = vpop.f32.mrb[0].mxu0
        %v2474 = vpop.f32.mrb[0].mxu0
        %2475 = vdwg.mxu0
        %2476 = vmatprep.subr.bf16.mxu0 %v1584
        %2477 = vmatpush1.bf16.msra.mxu0 %v1583
        %2478 = vmatprep.subr.bf16.mxu0 %v1600
        %2479 = vmatpush1.bf16.msra.mxu0 %v1599
        %2480 = vmatprep.subr.bf16.mxu0 %v1616
        %2481 = vmatpush1.bf16.msra.mxu0 %v1615
        %2482 = vmatprep.subr.bf16.mxu0 %v1632
        %2483 = vmatpush1.bf16.msra.mxu0 %v1631
        %2484 = vmatprep.subr.bf16.mxu0 %v1648
        %2485 = vmatpush1.bf16.msra.mxu0 %v1647
        %2486 = vmatprep.subr.bf16.mxu0 %v1664
        %2487 = vmatpush1.bf16.msra.mxu0 %v1663
        %2488 = vmatprep.subr.bf16.mxu0 %v1680
        %2489 = vmatpush1.bf16.msra.mxu0 %v1679
        %2490 = vmatprep.subr.bf16.mxu0 %v1696
        %2491 = vmatpush1.bf16.msra.mxu0 %v1695
        %2492 = vmatprep.subr.bf16.mxu0 %v1712
        %2493 = vmatpush1.bf16.msra.mxu0 %v1711
        %2494 = vmatprep.subr.bf16.mxu0 %v1728
        %2495 = vmatpush1.bf16.msra.mxu0 %v1727
        %2496 = vmatprep.subr.bf16.mxu0 %v1744
        %2497 = vmatpush1.bf16.msra.mxu0 %v1743
        %2498 = vmatprep.subr.bf16.mxu0 %v1760
        %2499 = vmatpush1.bf16.msra.mxu0 %v1759
        %2500 = vmatprep.subr.bf16.mxu0 %v1776
        %2501 = vmatpush1.bf16.msra.mxu0 %v1775
        %2502 = vmatprep.subr.bf16.mxu0 %v1792
        %2503 = vmatpush1.bf16.msra.mxu0 %v1791
        %2504 = vmatprep.subr.bf16.mxu0 %v1808
        %2505 = vmatpush1.bf16.msra.mxu0 %v1807
        %2506 = vmatprep.subr.bf16.mxu0 %v1824
        %2507 = vmatpush1.bf16.msra.mxu0 %v1823
        %2508 = vmatprep.mubr.bf16.mxu0 %v1852
        %2509 = vmatmul.mubr.bf16.gmra.mrb[0].mxu0 %v1851
        %v2510 = vpop.f32.mrb[0].mxu0
        %v2511 = vadd.f32 %v2470, %v2510
        %v2512 = vpop.f32.mrb[0].mxu0
        %v2513 = vadd.f32 %v2472, %v2512
        %v2514 = vpop.f32.mrb[0].mxu0
        %v2515 = vpop.f32.mrb[0].mxu0
        %2516 = vdwg.mxu0
        %2517 = vmatprep.subr.bf16.mxu0 %v818
        %2518 = vmatpush1.bf16.msra.mxu0 %v817
        %2519 = vmatprep.subr.bf16.mxu0 %v834
        %2520 = vmatpush1.bf16.msra.mxu0 %v833
        %2521 = vmatprep.subr.bf16.mxu0 %v850
        %2522 = vmatpush1.bf16.msra.mxu0 %v849
        %2523 = vmatprep.subr.bf16.mxu0 %v866
        %2524 = vmatpush1.bf16.msra.mxu0 %v865
        %2525 = vmatprep.subr.bf16.mxu0 %v882
        %2526 = vmatpush1.bf16.msra.mxu0 %v881
        %2527 = vmatprep.subr.bf16.mxu0 %v898
        %2528 = vmatpush1.bf16.msra.mxu0 %v897
        %2529 = vmatprep.subr.bf16.mxu0 %v914
        %2530 = vmatpush1.bf16.msra.mxu0 %v913
        %2531 = vmatprep.subr.bf16.mxu0 %v930
        %2532 = vmatpush1.bf16.msra.mxu0 %v929
        %2533 = vmatprep.subr.bf16.mxu0 %v946
        %2534 = vmatpush1.bf16.msra.mxu0 %v945
        %2535 = vmatprep.subr.bf16.mxu0 %v962
        %2536 = vmatpush1.bf16.msra.mxu0 %v961
        %2537 = vmatprep.subr.bf16.mxu0 %v978
        %2538 = vmatpush1.bf16.msra.mxu0 %v977
        %2539 = vmatprep.subr.bf16.mxu0 %v994
        %2540 = vmatpush1.bf16.msra.mxu0 %v993
        %2541 = vmatprep.subr.bf16.mxu0 %v1010
        %2542 = vmatpush1.bf16.msra.mxu0 %v1009
        %2543 = vmatprep.subr.bf16.mxu0 %v1026
        %2544 = vmatpush1.bf16.msra.mxu0 %v1025
        %2545 = vmatprep.subr.bf16.mxu0 %v1042
        %2546 = vmatpush1.bf16.msra.mxu0 %v1041
        %2547 = vmatprep.subr.bf16.mxu0 %v1058
        %2548 = vmatpush1.bf16.msra.mxu0 %v1057
        %2549 = vmatprep.mubr.bf16.mxu0 %v1846
        %2550 = vmatmul.mubr.bf16.gmra.mrb[0].mxu0 %v1845
        %v2551 = vpop.f32.mrb[0].mxu0
        %v2552 = vadd.f32 0.0, %v2551
        %v2553 = vpop.f32.mrb[0].mxu0
        %v2554 = vadd.f32 0.0, %v2553
        %v2555 = vpop.f32.mrb[0].mxu0
        %v2556 = vpop.f32.mrb[0].mxu0
        %2557 = vdwg.mxu0
        %2558 = vmatprep.subr.bf16.mxu0 %v1074
        %2559 = vmatpush1.bf16.msra.mxu0 %v1073
        %2560 = vmatprep.subr.bf16.mxu0 %v1090
        %2561 = vmatpush1.bf16.msra.mxu0 %v1089
        %2562 = vmatprep.subr.bf16.mxu0 %v1106
        %2563 = vmatpush1.bf16.msra.mxu0 %v1105
        %2564 = vmatprep.subr.bf16.mxu0 %v1122
        %2565 = vmatpush1.bf16.msra.mxu0 %v1121
        %2566 = vmatprep.subr.bf16.mxu0 %v1138
        %2567 = vmatpush1.bf16.msra.mxu0 %v1137
        %2568 = vmatprep.subr.bf16.mxu0 %v1154
        %2569 = vmatpush1.bf16.msra.mxu0 %v1153
        %2570 = vmatprep.subr.bf16.mxu0 %v1170
        %2571 = vmatpush1.bf16.msra.mxu0 %v1169
        %2572 = vmatprep.subr.bf16.mxu0 %v1186
        %2573 = vmatpush1.bf16.msra.mxu0 %v1185
        %2574 = vmatprep.subr.bf16.mxu0 %v1202
        %2575 = vmatpush1.bf16.msra.mxu0 %v1201
        %2576 = vmatprep.subr.bf16.mxu0 %v1218
        %2577 = vmatpush1.bf16.msra.mxu0 %v1217
        %2578 = vmatprep.subr.bf16.mxu0 %v1234
        %2579 = vmatpush1.bf16.msra.mxu0 %v1233
        %2580 = vmatprep.subr.bf16.mxu0 %v1250
        %2581 = vmatpush1.bf16.msra.mxu0 %v1249
        %2582 = vmatprep.subr.bf16.mxu0 %v1266
        %2583 = vmatpush1.bf16.msra.mxu0 %v1265
        %2584 = vmatprep.subr.bf16.mxu0 %v1282
        %2585 = vmatpush1.bf16.msra.mxu0 %v1281
        %2586 = vmatprep.subr.bf16.mxu0 %v1298
        %2587 = vmatpush1.bf16.msra.mxu0 %v1297
        %2588 = vmatprep.subr.bf16.mxu0 %v1314
        %2589 = vmatpush1.bf16.msra.mxu0 %v1313
        %2590 = vmatprep.mubr.bf16.mxu0 %v1848
        %2591 = vmatmul.mubr.bf16.gmra.mrb[0].mxu0 %v1847
        %v2592 = vpop.f32.mrb[0].mxu0
        %v2593 = vadd.f32 %v2552, %v2592
        %v2594 = vpop.f32.mrb[0].mxu0
        %v2595 = vadd.f32 %v2554, %v2594
        %v2596 = vpop.f32.mrb[0].mxu0
        %v2597 = vpop.f32.mrb[0].mxu0
        %2598 = vdwg.mxu0
        %2599 = vmatprep.subr.bf16.mxu0 %v1330
        %2600 = vmatpush1.bf16.msra.mxu0 %v1329
        %2601 = vmatprep.subr.bf16.mxu0 %v1346
        %2602 = vmatpush1.bf16.msra.mxu0 %v1345
        %2603 = vmatprep.subr.bf16.mxu0 %v1362
        %2604 = vmatpush1.bf16.msra.mxu0 %v1361
        %2605 = vmatprep.subr.bf16.mxu0 %v1378
        %2606 = vmatpush1.bf16.msra.mxu0 %v1377
        %2607 = vmatprep.subr.bf16.mxu0 %v1394
        %2608 = vmatpush1.bf16.msra.mxu0 %v1393
        %2609 = vmatprep.subr.bf16.mxu0 %v1410
        %2610 = vmatpush1.bf16.msra.mxu0 %v1409
        %2611 = vmatprep.subr.bf16.mxu0 %v1426
        %2612 = vmatpush1.bf16.msra.mxu0 %v1425
        %2613 = vmatprep.subr.bf16.mxu0 %v1442
        %2614 = vmatpush1.bf16.msra.mxu0 %v1441
        %2615 = vmatprep.subr.bf16.mxu0 %v1458
        %2616 = vmatpush1.bf16.msra.mxu0 %v1457
        %2617 = vmatprep.subr.bf16.mxu0 %v1474
        %2618 = vmatpush1.bf16.msra.mxu0 %v1473
        %2619 = vmatprep.subr.bf16.mxu0 %v1490
        %2620 = vmatpush1.bf16.msra.mxu0 %v1489
        %2621 = vmatprep.subr.bf16.mxu0 %v1506
        %2622 = vmatpush1.bf16.msra.mxu0 %v1505
        %2623 = vmatprep.subr.bf16.mxu0 %v1522
        %2624 = vmatpush1.bf16.msra.mxu0 %v1521
        %2625 = vmatprep.subr.bf16.mxu0 %v1538
        %2626 = vmatpush1.bf16.msra.mxu0 %v1537
        %2627 = vmatprep.subr.bf16.mxu0 %v1554
        %2628 = vmatpush1.bf16.msra.mxu0 %v1553
        %2629 = vmatprep.subr.bf16.mxu0 %v1570
        %2630 = vmatpush1.bf16.msra.mxu0 %v1569
        %2631 = vmatprep.mubr.bf16.mxu0 %v1850
        %2632 = vmatmul.mubr.bf16.gmra.mrb[0].mxu0 %v1849
        %v2633 = vpop.f32.mrb[0].mxu0
        %v2634 = vadd.f32 %v2593, %v2633
        %v2635 = vpop.f32.mrb[0].mxu0
        %v2636 = vadd.f32 %v2595, %v2635
        %v2637 = vpop.f32.mrb[0].mxu0
        %v2638 = vpop.f32.mrb[0].mxu0
        %2639 = vdwg.mxu0
        %2640 = vmatprep.subr.bf16.mxu0 %v1586
        %2641 = vmatpush1.bf16.msra.mxu0 %v1585
        %2642 = vmatprep.subr.bf16.mxu0 %v1602
        %2643 = vmatpush1.bf16.msra.mxu0 %v1601
        %2644 = vmatprep.subr.bf16.mxu0 %v1618
        %2645 = vmatpush1.bf16.msra.mxu0 %v1617
        %2646 = vmatprep.subr.bf16.mxu0 %v1634
        %2647 = vmatpush1.bf16.msra.mxu0 %v1633
        %2648 = vmatprep.subr.bf16.mxu0 %v1650
        %2649 = vmatpush1.bf16.msra.mxu0 %v1649
        %2650 = vmatprep.subr.bf16.mxu0 %v1666
        %2651 = vmatpush1.bf16.msra.mxu0 %v1665
        %2652 = vmatprep.subr.bf16.mxu0 %v1682
        %2653 = vmatpush1.bf16.msra.mxu0 %v1681
        %2654 = vmatprep.subr.bf16.mxu0 %v1698
        %2655 = vmatpush1.bf16.msra.mxu0 %v1697
        %2656 = vmatprep.subr.bf16.mxu0 %v1714
        %2657 = vmatpush1.bf16.msra.mxu0 %v1713
        %2658 = vmatprep.subr.bf16.mxu0 %v1730
        %2659 = vmatpush1.bf16.msra.mxu0 %v1729
        %2660 = vmatprep.subr.bf16.mxu0 %v1746
        %2661 = vmatpush1.bf16.msra.mxu0 %v1745
        %2662 = vmatprep.subr.bf16.mxu0 %v1762
        %2663 = vmatpush1.bf16.msra.mxu0 %v1761
        %2664 = vmatprep.subr.bf16.mxu0 %v1778
        %2665 = vmatpush1.bf16.msra.mxu0 %v1777
        %2666 = vmatprep.subr.bf16.mxu0 %v1794
        %2667 = vmatpush1.bf16.msra.mxu0 %v1793
        %2668 = vmatprep.subr.bf16.mxu0 %v1810
        %2669 = vmatpush1.bf16.msra.mxu0 %v1809
        %2670 = vmatprep.subr.bf16.mxu0 %v1826
        %2671 = vmatpush1.bf16.msra.mxu0 %v1825
        %2672 = vmatprep.mubr.bf16.mxu0 %v1852
        %2673 = vmatmul.mubr.bf16.gmra.mrb[0].mxu0 %v1851
        %v2674 = vpop.f32.mrb[0].mxu0
        %v2675 = vadd.f32 %v2634, %v2674
        %v2676 = vpop.f32.mrb[0].mxu0
        %v2677 = vadd.f32 %v2636, %v2676
        %v2678 = vpop.f32.mrb[0].mxu0
        %v2679 = vpop.f32.mrb[0].mxu0
        %2680 = vdwg.mxu0
        %2681 = vmatprep.subr.bf16.mxu0 %v820
        %2682 = vmatpush1.bf16.msra.mxu0 %v819
        %2683 = vmatprep.subr.bf16.mxu0 %v836
        %2684 = vmatpush1.bf16.msra.mxu0 %v835
        %2685 = vmatprep.subr.bf16.mxu0 %v852
        %2686 = vmatpush1.bf16.msra.mxu0 %v851
        %2687 = vmatprep.subr.bf16.mxu0 %v868
        %2688 = vmatpush1.bf16.msra.mxu0 %v867
        %2689 = vmatprep.subr.bf16.mxu0 %v884
        %2690 = vmatpush1.bf16.msra.mxu0 %v883
        %2691 = vmatprep.subr.bf16.mxu0 %v900
        %2692 = vmatpush1.bf16.msra.mxu0 %v899
        %2693 = vmatprep.subr.bf16.mxu0 %v916
        %2694 = vmatpush1.bf16.msra.mxu0 %v915
        %2695 = vmatprep.subr.bf16.mxu0 %v932
        %2696 = vmatpush1.bf16.msra.mxu0 %v931
        %2697 = vmatprep.subr.bf16.mxu0 %v948
        %2698 = vmatpush1.bf16.msra.mxu0 %v947
        %2699 = vmatprep.subr.bf16.mxu0 %v964
        %2700 = vmatpush1.bf16.msra.mxu0 %v963
        %2701 = vmatprep.subr.bf16.mxu0 %v980
        %2702 = vmatpush1.bf16.msra.mxu0 %v979
        %2703 = vmatprep.subr.bf16.mxu0 %v996
        %2704 = vmatpush1.bf16.msra.mxu0 %v995
        %2705 = vmatprep.subr.bf16.mxu0 %v1012
        %2706 = vmatpush1.bf16.msra.mxu0 %v1011
        %2707 = vmatprep.subr.bf16.mxu0 %v1028
        %2708 = vmatpush1.bf16.msra.mxu0 %v1027
        %2709 = vmatprep.subr.bf16.mxu0 %v1044
        %2710 = vmatpush1.bf16.msra.mxu0 %v1043
        %2711 = vmatprep.subr.bf16.mxu0 %v1060
        %2712 = vmatpush1.bf16.msra.mxu0 %v1059
        %2713 = vmatprep.mubr.bf16.mxu0 %v1846
        %2714 = vmatmul.mubr.bf16.gmra.mrb[0].mxu0 %v1845
        %v2715 = vpop.f32.mrb[0].mxu0
        %v2716 = vadd.f32 0.0, %v2715
        %v2717 = vpop.f32.mrb[0].mxu0
        %v2718 = vadd.f32 0.0, %v2717
        %v2719 = vpop.f32.mrb[0].mxu0
        %v2720 = vpop.f32.mrb[0].mxu0
        %2721 = vdwg.mxu0
        %2722 = vmatprep.subr.bf16.mxu0 %v1076
        %2723 = vmatpush1.bf16.msra.mxu0 %v1075
        %2724 = vmatprep.subr.bf16.mxu0 %v1092
        %2725 = vmatpush1.bf16.msra.mxu0 %v1091
        %2726 = vmatprep.subr.bf16.mxu0 %v1108
        %2727 = vmatpush1.bf16.msra.mxu0 %v1107
        %2728 = vmatprep.subr.bf16.mxu0 %v1124
        %2729 = vmatpush1.bf16.msra.mxu0 %v1123
        %2730 = vmatprep.subr.bf16.mxu0 %v1140
        %2731 = vmatpush1.bf16.msra.mxu0 %v1139
        %2732 = vmatprep.subr.bf16.mxu0 %v1156
        %2733 = vmatpush1.bf16.msra.mxu0 %v1155
        %2734 = vmatprep.subr.bf16.mxu0 %v1172
        %2735 = vmatpush1.bf16.msra.mxu0 %v1171
        %2736 = vmatprep.subr.bf16.mxu0 %v1188
        %2737 = vmatpush1.bf16.msra.mxu0 %v1187
        %2738 = vmatprep.subr.bf16.mxu0 %v1204
        %2739 = vmatpush1.bf16.msra.mxu0 %v1203
        %2740 = vmatprep.subr.bf16.mxu0 %v1220
        %2741 = vmatpush1.bf16.msra.mxu0 %v1219
        %2742 = vmatprep.subr.bf16.mxu0 %v1236
        %2743 = vmatpush1.bf16.msra.mxu0 %v1235
        %2744 = vmatprep.subr.bf16.mxu0 %v1252
        %2745 = vmatpush1.bf16.msra.mxu0 %v1251
        %2746 = vmatprep.subr.bf16.mxu0 %v1268
        %2747 = vmatpush1.bf16.msra.mxu0 %v1267
        %2748 = vmatprep.subr.bf16.mxu0 %v1284
        %2749 = vmatpush1.bf16.msra.mxu0 %v1283
        %2750 = vmatprep.subr.bf16.mxu0 %v1300
        %2751 = vmatpush1.bf16.msra.mxu0 %v1299
        %2752 = vmatprep.subr.bf16.mxu0 %v1316
        %2753 = vmatpush1.bf16.msra.mxu0 %v1315
        %2754 = vmatprep.mubr.bf16.mxu0 %v1848
        %2755 = vmatmul.mubr.bf16.gmra.mrb[0].mxu0 %v1847
        %v2756 = vpop.f32.mrb[0].mxu0
        %v2757 = vadd.f32 %v2716, %v2756
        %v2758 = vpop.f32.mrb[0].mxu0
        %v2759 = vadd.f32 %v2718, %v2758
        %v2760 = vpop.f32.mrb[0].mxu0
        %v2761 = vpop.f32.mrb[0].mxu0
        %2762 = vdwg.mxu0
        %2763 = vmatprep.subr.bf16.mxu0 %v1332
        %2764 = vmatpush1.bf16.msra.mxu0 %v1331
        %2765 = vmatprep.subr.bf16.mxu0 %v1348
        %2766 = vmatpush1.bf16.msra.mxu0 %v1347
        %2767 = vmatprep.subr.bf16.mxu0 %v1364
        %2768 = vmatpush1.bf16.msra.mxu0 %v1363
        %2769 = vmatprep.subr.bf16.mxu0 %v1380
        %2770 = vmatpush1.bf16.msra.mxu0 %v1379
        %2771 = vmatprep.subr.bf16.mxu0 %v1396
        %2772 = vmatpush1.bf16.msra.mxu0 %v1395
        %2773 = vmatprep.subr.bf16.mxu0 %v1412
        %2774 = vmatpush1.bf16.msra.mxu0 %v1411
        %2775 = vmatprep.subr.bf16.mxu0 %v1428
        %2776 = vmatpush1.bf16.msra.mxu0 %v1427
        %2777 = vmatprep.subr.bf16.mxu0 %v1444
        %2778 = vmatpush1.bf16.msra.mxu0 %v1443
        %2779 = vmatprep.subr.bf16.mxu0 %v1460
        %2780 = vmatpush1.bf16.msra.mxu0 %v1459
        %2781 = vmatprep.subr.bf16.mxu0 %v1476
        %2782 = vmatpush1.bf16.msra.mxu0 %v1475
        %2783 = vmatprep.subr.bf16.mxu0 %v1492
        %2784 = vmatpush1.bf16.msra.mxu0 %v1491
        %2785 = vmatprep.subr.bf16.mxu0 %v1508
        %2786 = vmatpush1.bf16.msra.mxu0 %v1507
        %2787 = vmatprep.subr.bf16.mxu0 %v1524
        %2788 = vmatpush1.bf16.msra.mxu0 %v1523
        %2789 = vmatprep.subr.bf16.mxu0 %v1540
        %2790 = vmatpush1.bf16.msra.mxu0 %v1539
        %2791 = vmatprep.subr.bf16.mxu0 %v1556
        %2792 = vmatpush1.bf16.msra.mxu0 %v1555
        %2793 = vmatprep.subr.bf16.mxu0 %v1572
        %2794 = vmatpush1.bf16.msra.mxu0 %v1571
        %2795 = vmatprep.mubr.bf16.mxu0 %v1850
        %2796 = vmatmul.mubr.bf16.gmra.mrb[0].mxu0 %v1849
        %v2797 = vpop.f32.mrb[0].mxu0
        %v2798 = vadd.f32 %v2757, %v2797
        %v2799 = vpop.f32.mrb[0].mxu0
        %v2800 = vadd.f32 %v2759, %v2799
        %v2801 = vpop.f32.mrb[0].mxu0
        %v2802 = vpop.f32.mrb[0].mxu0
        %2803 = vdwg.mxu0
        %2804 = vmatprep.subr.bf16.mxu0 %v1588
        %2805 = vmatpush1.bf16.msra.mxu0 %v1587
        %2806 = vmatprep.subr.bf16.mxu0 %v1604
        %2807 = vmatpush1.bf16.msra.mxu0 %v1603
        %2808 = vmatprep.subr.bf16.mxu0 %v1620
        %2809 = vmatpush1.bf16.msra.mxu0 %v1619
        %2810 = vmatprep.subr.bf16.mxu0 %v1636
        %2811 = vmatpush1.bf16.msra.mxu0 %v1635
        %2812 = vmatprep.subr.bf16.mxu0 %v1652
        %2813 = vmatpush1.bf16.msra.mxu0 %v1651
        %2814 = vmatprep.subr.bf16.mxu0 %v1668
        %2815 = vmatpush1.bf16.msra.mxu0 %v1667
        %2816 = vmatprep.subr.bf16.mxu0 %v1684
        %2817 = vmatpush1.bf16.msra.mxu0 %v1683
        %2818 = vmatprep.subr.bf16.mxu0 %v1700
        %2819 = vmatpush1.bf16.msra.mxu0 %v1699
        %2820 = vmatprep.subr.bf16.mxu0 %v1716
        %2821 = vmatpush1.bf16.msra.mxu0 %v1715
        %2822 = vmatprep.subr.bf16.mxu0 %v1732
        %2823 = vmatpush1.bf16.msra.mxu0 %v1731
        %2824 = vmatprep.subr.bf16.mxu0 %v1748
        %2825 = vmatpush1.bf16.msra.mxu0 %v1747
        %2826 = vmatprep.subr.bf16.mxu0 %v1764
        %2827 = vmatpush1.bf16.msra.mxu0 %v1763
        %2828 = vmatprep.subr.bf16.mxu0 %v1780
        %2829 = vmatpush1.bf16.msra.mxu0 %v1779
        %2830 = vmatprep.subr.bf16.mxu0 %v1796
        %2831 = vmatpush1.bf16.msra.mxu0 %v1795
        %2832 = vmatprep.subr.bf16.mxu0 %v1812
        %2833 = vmatpush1.bf16.msra.mxu0 %v1811
        %2834 = vmatprep.subr.bf16.mxu0 %v1828
        %2835 = vmatpush1.bf16.msra.mxu0 %v1827
        %2836 = vmatprep.mubr.bf16.mxu0 %v1852
        %2837 = vmatmul.mubr.bf16.gmra.mrb[0].mxu0 %v1851
        %v2838 = vpop.f32.mrb[0].mxu0
        %v2839 = vadd.f32 %v2798, %v2838
        %v2840 = vpop.f32.mrb[0].mxu0
        %v2841 = vadd.f32 %v2800, %v2840
        %v2842 = vpop.f32.mrb[0].mxu0
        %v2843 = vpop.f32.mrb[0].mxu0
        %2844 = vdwg.mxu0
        %2845 = vmatprep.subr.bf16.mxu0 %v822
        %2846 = vmatpush1.bf16.msra.mxu0 %v821
        %2847 = vmatprep.subr.bf16.mxu0 %v838
        %2848 = vmatpush1.bf16.msra.mxu0 %v837
        %2849 = vmatprep.subr.bf16.mxu0 %v854
        %2850 = vmatpush1.bf16.msra.mxu0 %v853
        %2851 = vmatprep.subr.bf16.mxu0 %v870
        %2852 = vmatpush1.bf16.msra.mxu0 %v869
        %2853 = vmatprep.subr.bf16.mxu0 %v886
        %2854 = vmatpush1.bf16.msra.mxu0 %v885
        %2855 = vmatprep.subr.bf16.mxu0 %v902
        %2856 = vmatpush1.bf16.msra.mxu0 %v901
        %2857 = vmatprep.subr.bf16.mxu0 %v918
        %2858 = vmatpush1.bf16.msra.mxu0 %v917
        %2859 = vmatprep.subr.bf16.mxu0 %v934
        %2860 = vmatpush1.bf16.msra.mxu0 %v933
        %2861 = vmatprep.subr.bf16.mxu0 %v950
        %2862 = vmatpush1.bf16.msra.mxu0 %v949
        %2863 = vmatprep.subr.bf16.mxu0 %v966
        %2864 = vmatpush1.bf16.msra.mxu0 %v965
        %2865 = vmatprep.subr.bf16.mxu0 %v982
        %2866 = vmatpush1.bf16.msra.mxu0 %v981
        %2867 = vmatprep.subr.bf16.mxu0 %v998
        %2868 = vmatpush1.bf16.msra.mxu0 %v997
        %2869 = vmatprep.subr.bf16.mxu0 %v1014
        %2870 = vmatpush1.bf16.msra.mxu0 %v1013
        %2871 = vmatprep.subr.bf16.mxu0 %v1030
        %2872 = vmatpush1.bf16.msra.mxu0 %v1029
        %2873 = vmatprep.subr.bf16.mxu0 %v1046
        %2874 = vmatpush1.bf16.msra.mxu0 %v1045
        %2875 = vmatprep.subr.bf16.mxu0 %v1062
        %2876 = vmatpush1.bf16.msra.mxu0 %v1061
        %2877 = vmatprep.mubr.bf16.mxu0 %v1846
        %2878 = vmatmul.mubr.bf16.gmra.mrb[0].mxu0 %v1845
        %v2879 = vpop.f32.mrb[0].mxu0
        %v2880 = vadd.f32 0.0, %v2879
        %v2881 = vpop.f32.mrb[0].mxu0
        %v2882 = vadd.f32 0.0, %v2881
        %v2883 = vpop.f32.mrb[0].mxu0
        %v2884 = vpop.f32.mrb[0].mxu0
        %2885 = vdwg.mxu0
        %2886 = vmatprep.subr.bf16.mxu0 %v1078
        %2887 = vmatpush1.bf16.msra.mxu0 %v1077
        %2888 = vmatprep.subr.bf16.mxu0 %v1094
        %2889 = vmatpush1.bf16.msra.mxu0 %v1093
        %2890 = vmatprep.subr.bf16.mxu0 %v1110
        %2891 = vmatpush1.bf16.msra.mxu0 %v1109
        %2892 = vmatprep.subr.bf16.mxu0 %v1126
        %2893 = vmatpush1.bf16.msra.mxu0 %v1125
        %2894 = vmatprep.subr.bf16.mxu0 %v1142
        %2895 = vmatpush1.bf16.msra.mxu0 %v1141
        %2896 = vmatprep.subr.bf16.mxu0 %v1158
        %2897 = vmatpush1.bf16.msra.mxu0 %v1157
        %2898 = vmatprep.subr.bf16.mxu0 %v1174
        %2899 = vmatpush1.bf16.msra.mxu0 %v1173
        %2900 = vmatprep.subr.bf16.mxu0 %v1190
        %2901 = vmatpush1.bf16.msra.mxu0 %v1189
        %2902 = vmatprep.subr.bf16.mxu0 %v1206
        %2903 = vmatpush1.bf16.msra.mxu0 %v1205
        %2904 = vmatprep.subr.bf16.mxu0 %v1222
        %2905 = vmatpush1.bf16.msra.mxu0 %v1221
        %2906 = vmatprep.subr.bf16.mxu0 %v1238
        %2907 = vmatpush1.bf16.msra.mxu0 %v1237
        %2908 = vmatprep.subr.bf16.mxu0 %v1254
        %2909 = vmatpush1.bf16.msra.mxu0 %v1253
        %2910 = vmatprep.subr.bf16.mxu0 %v1270
        %2911 = vmatpush1.bf16.msra.mxu0 %v1269
        %2912 = vmatprep.subr.bf16.mxu0 %v1286
        %2913 = vmatpush1.bf16.msra.mxu0 %v1285
        %2914 = vmatprep.subr.bf16.mxu0 %v1302
        %2915 = vmatpush1.bf16.msra.mxu0 %v1301
        %2916 = vmatprep.subr.bf16.mxu0 %v1318
        %2917 = vmatpush1.bf16.msra.mxu0 %v1317
        %2918 = vmatprep.mubr.bf16.mxu0 %v1848
        %2919 = vmatmul.mubr.bf16.gmra.mrb[0].mxu0 %v1847
        %v2920 = vpop.f32.mrb[0].mxu0
        %v2921 = vadd.f32 %v2880, %v2920
        %v2922 = vpop.f32.mrb[0].mxu0
        %v2923 = vadd.f32 %v2882, %v2922
        %v2924 = vpop.f32.mrb[0].mxu0
        %v2925 = vpop.f32.mrb[0].mxu0
        %2926 = vdwg.mxu0
        %2927 = vmatprep.subr.bf16.mxu0 %v1334
        %2928 = vmatpush1.bf16.msra.mxu0 %v1333
        %2929 = vmatprep.subr.bf16.mxu0 %v1350
        %2930 = vmatpush1.bf16.msra.mxu0 %v1349
        %2931 = vmatprep.subr.bf16.mxu0 %v1366
        %2932 = vmatpush1.bf16.msra.mxu0 %v1365
        %2933 = vmatprep.subr.bf16.mxu0 %v1382
        %2934 = vmatpush1.bf16.msra.mxu0 %v1381
        %2935 = vmatprep.subr.bf16.mxu0 %v1398
        %2936 = vmatpush1.bf16.msra.mxu0 %v1397
        %2937 = vmatprep.subr.bf16.mxu0 %v1414
        %2938 = vmatpush1.bf16.msra.mxu0 %v1413
        %2939 = vmatprep.subr.bf16.mxu0 %v1430
        %2940 = vmatpush1.bf16.msra.mxu0 %v1429
        %2941 = vmatprep.subr.bf16.mxu0 %v1446
        %2942 = vmatpush1.bf16.msra.mxu0 %v1445
        %2943 = vmatprep.subr.bf16.mxu0 %v1462
        %2944 = vmatpush1.bf16.msra.mxu0 %v1461
        %2945 = vmatprep.subr.bf16.mxu0 %v1478
        %2946 = vmatpush1.bf16.msra.mxu0 %v1477
        %2947 = vmatprep.subr.bf16.mxu0 %v1494
        %2948 = vmatpush1.bf16.msra.mxu0 %v1493
        %2949 = vmatprep.subr.bf16.mxu0 %v1510
        %2950 = vmatpush1.bf16.msra.mxu0 %v1509
        %2951 = vmatprep.subr.bf16.mxu0 %v1526
        %2952 = vmatpush1.bf16.msra.mxu0 %v1525
        %2953 = vmatprep.subr.bf16.mxu0 %v1542
        %2954 = vmatpush1.bf16.msra.mxu0 %v1541
        %2955 = vmatprep.subr.bf16.mxu0 %v1558
        %2956 = vmatpush1.bf16.msra.mxu0 %v1557
        %2957 = vmatprep.subr.bf16.mxu0 %v1574
        %2958 = vmatpush1.bf16.msra.mxu0 %v1573
        %2959 = vmatprep.mubr.bf16.mxu0 %v1850
        %2960 = vmatmul.mubr.bf16.gmra.mrb[0].mxu0 %v1849
        %v2961 = vpop.f32.mrb[0].mxu0
        %v2962 = vadd.f32 %v2921, %v2961
        %v2963 = vpop.f32.mrb[0].mxu0
        %v2964 = vadd.f32 %v2923, %v2963
        %v2965 = vpop.f32.mrb[0].mxu0
        %v2966 = vpop.f32.mrb[0].mxu0
        %2967 = vdwg.mxu0
        %2968 = vmatprep.subr.bf16.mxu0 %v1590
        %2969 = vmatpush1.bf16.msra.mxu0 %v1589
        %2970 = vmatprep.subr.bf16.mxu0 %v1606
        %2971 = vmatpush1.bf16.msra.mxu0 %v1605
        %2972 = vmatprep.subr.bf16.mxu0 %v1622
        %2973 = vmatpush1.bf16.msra.mxu0 %v1621
        %2974 = vmatprep.subr.bf16.mxu0 %v1638
        %2975 = vmatpush1.bf16.msra.mxu0 %v1637
        %2976 = vmatprep.subr.bf16.mxu0 %v1654
        %2977 = vmatpush1.bf16.msra.mxu0 %v1653
        %2978 = vmatprep.subr.bf16.mxu0 %v1670
        %2979 = vmatpush1.bf16.msra.mxu0 %v1669
        %2980 = vmatprep.subr.bf16.mxu0 %v1686
        %2981 = vmatpush1.bf16.msra.mxu0 %v1685
        %2982 = vmatprep.subr.bf16.mxu0 %v1702
        %2983 = vmatpush1.bf16.msra.mxu0 %v1701
        %2984 = vmatprep.subr.bf16.mxu0 %v1718
        %2985 = vmatpush1.bf16.msra.mxu0 %v1717
        %2986 = vmatprep.subr.bf16.mxu0 %v1734
        %2987 = vmatpush1.bf16.msra.mxu0 %v1733
        %2988 = vmatprep.subr.bf16.mxu0 %v1750
        %2989 = vmatpush1.bf16.msra.mxu0 %v1749
        %2990 = vmatprep.subr.bf16.mxu0 %v1766
        %2991 = vmatpush1.bf16.msra.mxu0 %v1765
        %2992 = vmatprep.subr.bf16.mxu0 %v1782
        %2993 = vmatpush1.bf16.msra.mxu0 %v1781
        %2994 = vmatprep.subr.bf16.mxu0 %v1798
        %2995 = vmatpush1.bf16.msra.mxu0 %v1797
        %2996 = vmatprep.subr.bf16.mxu0 %v1814
        %2997 = vmatpush1.bf16.msra.mxu0 %v1813
        %2998 = vmatprep.subr.bf16.mxu0 %v1830
        %2999 = vmatpush1.bf16.msra.mxu0 %v1829
        %3000 = vmatprep.mubr.bf16.mxu0 %v1852
        %3001 = vmatmul.mubr.bf16.gmra.mrb[0].mxu0 %v1851
        %v3002 = vpop.f32.mrb[0].mxu0
        %v3003 = vadd.f32 %v2962, %v3002
        %v3004 = vpop.f32.mrb[0].mxu0
        %v3005 = vadd.f32 %v2964, %v3004
        %v3006 = vpop.f32.mrb[0].mxu0
        %v3007 = vpop.f32.mrb[0].mxu0
        %3008 = vdwg.mxu0
        %3009 = vmatprep.subr.bf16.mxu0 %v824
        %3010 = vmatpush1.bf16.msra.mxu0 %v823
        %3011 = vmatprep.subr.bf16.mxu0 %v840
        %3012 = vmatpush1.bf16.msra.mxu0 %v839
        %3013 = vmatprep.subr.bf16.mxu0 %v856
        %3014 = vmatpush1.bf16.msra.mxu0 %v855
        %3015 = vmatprep.subr.bf16.mxu0 %v872
        %3016 = vmatpush1.bf16.msra.mxu0 %v871
        %3017 = vmatprep.subr.bf16.mxu0 %v888
        %3018 = vmatpush1.bf16.msra.mxu0 %v887
        %3019 = vmatprep.subr.bf16.mxu0 %v904
        %3020 = vmatpush1.bf16.msra.mxu0 %v903
        %3021 = vmatprep.subr.bf16.mxu0 %v920
        %3022 = vmatpush1.bf16.msra.mxu0 %v919
        %3023 = vmatprep.subr.bf16.mxu0 %v936
        %3024 = vmatpush1.bf16.msra.mxu0 %v935
        %3025 = vmatprep.subr.bf16.mxu0 %v952
        %3026 = vmatpush1.bf16.msra.mxu0 %v951
        %3027 = vmatprep.subr.bf16.mxu0 %v968
        %3028 = vmatpush1.bf16.msra.mxu0 %v967
        %3029 = vmatprep.subr.bf16.mxu0 %v984
        %3030 = vmatpush1.bf16.msra.mxu0 %v983
        %3031 = vmatprep.subr.bf16.mxu0 %v1000
        %3032 = vmatpush1.bf16.msra.mxu0 %v999
        %3033 = vmatprep.subr.bf16.mxu0 %v1016
        %3034 = vmatpush1.bf16.msra.mxu0 %v1015
        %3035 = vmatprep.subr.bf16.mxu0 %v1032
        %3036 = vmatpush1.bf16.msra.mxu0 %v1031
        %3037 = vmatprep.subr.bf16.mxu0 %v1048
        %3038 = vmatpush1.bf16.msra.mxu0 %v1047
        %3039 = vmatprep.subr.bf16.mxu0 %v1064
        %3040 = vmatpush1.bf16.msra.mxu0 %v1063
        %3041 = vmatprep.mubr.bf16.mxu0 %v1846
        %3042 = vmatmul.mubr.bf16.gmra.mrb[0].mxu0 %v1845
        %v3043 = vpop.f32.mrb[0].mxu0
        %v3044 = vadd.f32 0.0, %v3043
        %v3045 = vpop.f32.mrb[0].mxu0
        %v3046 = vadd.f32 0.0, %v3045
        %v3047 = vpop.f32.mrb[0].mxu0
        %v3048 = vpop.f32.mrb[0].mxu0
        %3049 = vdwg.mxu0
        %3050 = vmatprep.subr.bf16.mxu0 %v1080
        %3051 = vmatpush1.bf16.msra.mxu0 %v1079
        %3052 = vmatprep.subr.bf16.mxu0 %v1096
        %3053 = vmatpush1.bf16.msra.mxu0 %v1095
        %3054 = vmatprep.subr.bf16.mxu0 %v1112
        %3055 = vmatpush1.bf16.msra.mxu0 %v1111
        %3056 = vmatprep.subr.bf16.mxu0 %v1128
        %3057 = vmatpush1.bf16.msra.mxu0 %v1127
        %3058 = vmatprep.subr.bf16.mxu0 %v1144
        %3059 = vmatpush1.bf16.msra.mxu0 %v1143
        %3060 = vmatprep.subr.bf16.mxu0 %v1160
        %3061 = vmatpush1.bf16.msra.mxu0 %v1159
        %3062 = vmatprep.subr.bf16.mxu0 %v1176
        %3063 = vmatpush1.bf16.msra.mxu0 %v1175
        %3064 = vmatprep.subr.bf16.mxu0 %v1192
        %3065 = vmatpush1.bf16.msra.mxu0 %v1191
        %3066 = vmatprep.subr.bf16.mxu0 %v1208
        %3067 = vmatpush1.bf16.msra.mxu0 %v1207
        %3068 = vmatprep.subr.bf16.mxu0 %v1224
        %3069 = vmatpush1.bf16.msra.mxu0 %v1223
        %3070 = vmatprep.subr.bf16.mxu0 %v1240
        %3071 = vmatpush1.bf16.msra.mxu0 %v1239
        %3072 = vmatprep.subr.bf16.mxu0 %v1256
        %3073 = vmatpush1.bf16.msra.mxu0 %v1255
        %3074 = vmatprep.subr.bf16.mxu0 %v1272
        %3075 = vmatpush1.bf16.msra.mxu0 %v1271
        %3076 = vmatprep.subr.bf16.mxu0 %v1288
        %3077 = vmatpush1.bf16.msra.mxu0 %v1287
        %3078 = vmatprep.subr.bf16.mxu0 %v1304
        %3079 = vmatpush1.bf16.msra.mxu0 %v1303
        %3080 = vmatprep.subr.bf16.mxu0 %v1320
        %3081 = vmatpush1.bf16.msra.mxu0 %v1319
        %3082 = vmatprep.mubr.bf16.mxu0 %v1848
        %3083 = vmatmul.mubr.bf16.gmra.mrb[0].mxu0 %v1847
        %v3084 = vpop.f32.mrb[0].mxu0
        %v3085 = vadd.f32 %v3044, %v3084
        %v3086 = vpop.f32.mrb[0].mxu0
        %v3087 = vadd.f32 %v3046, %v3086
        %v3088 = vpop.f32.mrb[0].mxu0
        %v3089 = vpop.f32.mrb[0].mxu0
        %3090 = vdwg.mxu0
        %3091 = vmatprep.subr.bf16.mxu0 %v1336
        %3092 = vmatpush1.bf16.msra.mxu0 %v1335
        %3093 = vmatprep.subr.bf16.mxu0 %v1352
        %3094 = vmatpush1.bf16.msra.mxu0 %v1351
        %3095 = vmatprep.subr.bf16.mxu0 %v1368
        %3096 = vmatpush1.bf16.msra.mxu0 %v1367
        %3097 = vmatprep.subr.bf16.mxu0 %v1384
        %3098 = vmatpush1.bf16.msra.mxu0 %v1383
        %3099 = vmatprep.subr.bf16.mxu0 %v1400
        %3100 = vmatpush1.bf16.msra.mxu0 %v1399
        %3101 = vmatprep.subr.bf16.mxu0 %v1416
        %3102 = vmatpush1.bf16.msra.mxu0 %v1415
        %3103 = vmatprep.subr.bf16.mxu0 %v1432
        %3104 = vmatpush1.bf16.msra.mxu0 %v1431
        %3105 = vmatprep.subr.bf16.mxu0 %v1448
        %3106 = vmatpush1.bf16.msra.mxu0 %v1447
        %3107 = vmatprep.subr.bf16.mxu0 %v1464
        %3108 = vmatpush1.bf16.msra.mxu0 %v1463
        %3109 = vmatprep.subr.bf16.mxu0 %v1480
        %3110 = vmatpush1.bf16.msra.mxu0 %v1479
        %3111 = vmatprep.subr.bf16.mxu0 %v1496
        %3112 = vmatpush1.bf16.msra.mxu0 %v1495
        %3113 = vmatprep.subr.bf16.mxu0 %v1512
        %3114 = vmatpush1.bf16.msra.mxu0 %v1511
        %3115 = vmatprep.subr.bf16.mxu0 %v1528
        %3116 = vmatpush1.bf16.msra.mxu0 %v1527
        %3117 = vmatprep.subr.bf16.mxu0 %v1544
        %3118 = vmatpush1.bf16.msra.mxu0 %v1543
        %3119 = vmatprep.subr.bf16.mxu0 %v1560
        %3120 = vmatpush1.bf16.msra.mxu0 %v1559
        %3121 = vmatprep.subr.bf16.mxu0 %v1576
        %3122 = vmatpush1.bf16.msra.mxu0 %v1575
        %3123 = vmatprep.mubr.bf16.mxu0 %v1850
        %3124 = vmatmul.mubr.bf16.gmra.mrb[0].mxu0 %v1849
        %v3125 = vpop.f32.mrb[0].mxu0
        %v3126 = vadd.f32 %v3085, %v3125
        %v3127 = vpop.f32.mrb[0].mxu0
        %v3128 = vadd.f32 %v3087, %v3127
        %v3129 = vpop.f32.mrb[0].mxu0
        %v3130 = vpop.f32.mrb[0].mxu0
        %3131 = vdwg.mxu0
        %3132 = vmatprep.subr.bf16.mxu0 %v1592
        %3133 = vmatpush1.bf16.msra.mxu0 %v1591
        %3134 = vmatprep.subr.bf16.mxu0 %v1608
        %3135 = vmatpush1.bf16.msra.mxu0 %v1607
        %3136 = vmatprep.subr.bf16.mxu0 %v1624
        %3137 = vmatpush1.bf16.msra.mxu0 %v1623
        %3138 = vmatprep.subr.bf16.mxu0 %v1640
        %3139 = vmatpush1.bf16.msra.mxu0 %v1639
        %3140 = vmatprep.subr.bf16.mxu0 %v1656
        %3141 = vmatpush1.bf16.msra.mxu0 %v1655
        %3142 = vmatprep.subr.bf16.mxu0 %v1672
        %3143 = vmatpush1.bf16.msra.mxu0 %v1671
        %3144 = vmatprep.subr.bf16.mxu0 %v1688
        %3145 = vmatpush1.bf16.msra.mxu0 %v1687
        %3146 = vmatprep.subr.bf16.mxu0 %v1704
        %3147 = vmatpush1.bf16.msra.mxu0 %v1703
        %3148 = vmatprep.subr.bf16.mxu0 %v1720
        %3149 = vmatpush1.bf16.msra.mxu0 %v1719
        %3150 = vmatprep.subr.bf16.mxu0 %v1736
        %3151 = vmatpush1.bf16.msra.mxu0 %v1735
        %3152 = vmatprep.subr.bf16.mxu0 %v1752
        %3153 = vmatpush1.bf16.msra.mxu0 %v1751
        %3154 = vmatprep.subr.bf16.mxu0 %v1768
        %3155 = vmatpush1.bf16.msra.mxu0 %v1767
        %3156 = vmatprep.subr.bf16.mxu0 %v1784
        %3157 = vmatpush1.bf16.msra.mxu0 %v1783
        %3158 = vmatprep.subr.bf16.mxu0 %v1800
        %3159 = vmatpush1.bf16.msra.mxu0 %v1799
        %3160 = vmatprep.subr.bf16.mxu0 %v1816
        %3161 = vmatpush1.bf16.msra.mxu0 %v1815
        %3162 = vmatprep.subr.bf16.mxu0 %v1832
        %3163 = vmatpush1.bf16.msra.mxu0 %v1831
        %3164 = vmatprep.mubr.bf16.mxu0 %v1852
        %3165 = vmatmul.mubr.bf16.gmra.mrb[0].mxu0 %v1851
        %v3166 = vpop.f32.mrb[0].mxu0
        %v3167 = vadd.f32 %v3126, %v3166
        %v3168 = vpop.f32.mrb[0].mxu0
        %v3169 = vadd.f32 %v3128, %v3168
        %v3170 = vpop.f32.mrb[0].mxu0
        %v3171 = vpop.f32.mrb[0].mxu0
        %3172 = vdwg.mxu0
        %v3173 = vld [vmem:[%s245] sm:$0xff]
        %v3174 = vld [vmem:[%s245 + $0x8] sm:$0xff]
        %v3177 = vlaneseq
        %v3178 = vshrl.u32 %v3177, 7
        %v3179 = vsub.s32 0, %v3178
        %v3180 = vrot.slane %v3173, %v3179
        %v3181 = vlaneseq
        %v3182 = vshrl.u32 %v3181, 7
        %v3183 = vsub.s32 1, %v3182
        %v3184 = vrot.slane %v3173, %v3183
        %v3185 = vlaneseq
        %v3186 = vshrl.u32 %v3185, 7
        %v3187 = vsub.s32 2, %v3186
        %v3188 = vrot.slane %v3173, %v3187
        %v3189 = vlaneseq
        %v3190 = vshrl.u32 %v3189, 7
        %v3191 = vsub.s32 3, %v3190
        %v3192 = vrot.slane %v3173, %v3191
        %v3193 = vlaneseq
        %v3194 = vshrl.u32 %v3193, 7
        %v3195 = vsub.s32 4, %v3194
        %v3196 = vrot.slane %v3173, %v3195
        %v3197 = vlaneseq
        %v3198 = vshrl.u32 %v3197, 7
        %v3199 = vsub.s32 5, %v3198
        %v3200 = vrot.slane %v3173, %v3199
        %v3201 = vlaneseq
        %v3202 = vshrl.u32 %v3201, 7
        %v3203 = vsub.s32 6, %v3202
        %v3204 = vrot.slane %v3173, %v3203
        %v3205 = vlaneseq
        %v3206 = vshrl.u32 %v3205, 7
        %v3207 = vsub.s32 7, %v3206
        %v3208 = vrot.slane %v3173, %v3207
        %v3209 = vlaneseq
        %v3210 = vshrl.u32 %v3209, 7
        %v3211 = vsub.s32 0, %v3210
        %v3212 = vrot.slane %v3174, %v3211
        %v3213 = vlaneseq
        %v3214 = vshrl.u32 %v3213, 7
        %v3215 = vsub.s32 1, %v3214
        %v3216 = vrot.slane %v3174, %v3215
        %v3217 = vlaneseq
        %v3218 = vshrl.u32 %v3217, 7
        %v3219 = vsub.s32 2, %v3218
        %v3220 = vrot.slane %v3174, %v3219
        %v3221 = vlaneseq
        %v3222 = vshrl.u32 %v3221, 7
        %v3223 = vsub.s32 3, %v3222
        %v3224 = vrot.slane %v3174, %v3223
        %v3225 = vlaneseq
        %v3226 = vshrl.u32 %v3225, 7
        %v3227 = vsub.s32 4, %v3226
        %v3228 = vrot.slane %v3174, %v3227
        %v3229 = vlaneseq
        %v3230 = vshrl.u32 %v3229, 7
        %v3231 = vsub.s32 5, %v3230
        %v3232 = vrot.slane %v3174, %v3231
        %v3233 = vlaneseq
        %v3234 = vshrl.u32 %v3233, 7
        %v3235 = vsub.s32 6, %v3234
        %v3236 = vrot.slane %v3174, %v3235
        %v3237 = vlaneseq
        %v3238 = vshrl.u32 %v3237, 7
        %v3239 = vsub.s32 7, %v3238
        %v3240 = vrot.slane %v3174, %v3239
        %v3257 = vmul.f32 %v2019, %v3180
        %v3258 = vmul.f32 %v2021, %v3184
        %v3259 = vmul.f32 %v2183, %v3188
        %v3260 = vmul.f32 %v2185, %v3192
        %v3261 = vmul.f32 %v2347, %v3196
        %v3262 = vmul.f32 %v2349, %v3200
        %v3263 = vmul.f32 %v2511, %v3204
        %v3264 = vmul.f32 %v2513, %v3208
        %v3265 = vmul.f32 %v2675, %v3212
        %v3266 = vmul.f32 %v2677, %v3216
        %v3267 = vmul.f32 %v2839, %v3220
        %v3268 = vmul.f32 %v2841, %v3224
        %v3269 = vmul.f32 %v3003, %v3228
        %v3270 = vmul.f32 %v3005, %v3232
        %v3271 = vmul.f32 %v3167, %v3236
        %v3272 = vmul.f32 %v3169, %v3240
        %v3273 = vld [vmem:[%s254] sm:$0xff]
        %v3274 = vld [vmem:[%s254 + $0x8] sm:$0xff]
        %v3277 = vlaneseq
        %v3278 = vshrl.u32 %v3277, 7
        %v3279 = vsub.s32 0, %v3278
        %v3280 = vrot.slane %v3273, %v3279
        %v3281 = vlaneseq
        %v3282 = vshrl.u32 %v3281, 7
        %v3283 = vsub.s32 1, %v3282
        %v3284 = vrot.slane %v3273, %v3283
        %v3285 = vlaneseq
        %v3286 = vshrl.u32 %v3285, 7
        %v3287 = vsub.s32 2, %v3286
        %v3288 = vrot.slane %v3273, %v3287
        %v3289 = vlaneseq
        %v3290 = vshrl.u32 %v3289, 7
        %v3291 = vsub.s32 3, %v3290
        %v3292 = vrot.slane %v3273, %v3291
        %v3293 = vlaneseq
        %v3294 = vshrl.u32 %v3293, 7
        %v3295 = vsub.s32 4, %v3294
        %v3296 = vrot.slane %v3273, %v3295
        %v3297 = vlaneseq
        %v3298 = vshrl.u32 %v3297, 7
        %v3299 = vsub.s32 5, %v3298
        %v3300 = vrot.slane %v3273, %v3299
        %v3301 = vlaneseq
        %v3302 = vshrl.u32 %v3301, 7
        %v3303 = vsub.s32 6, %v3302
        %v3304 = vrot.slane %v3273, %v3303
        %v3305 = vlaneseq
        %v3306 = vshrl.u32 %v3305, 7
        %v3307 = vsub.s32 7, %v3306
        %v3308 = vrot.slane %v3273, %v3307
        %v3309 = vlaneseq
        %v3310 = vshrl.u32 %v3309, 7
        %v3311 = vsub.s32 0, %v3310
        %v3312 = vrot.slane %v3274, %v3311
        %v3313 = vlaneseq
        %v3314 = vshrl.u32 %v3313, 7
        %v3315 = vsub.s32 1, %v3314
        %v3316 = vrot.slane %v3274, %v3315
        %v3317 = vlaneseq
        %v3318 = vshrl.u32 %v3317, 7
        %v3319 = vsub.s32 2, %v3318
        %v3320 = vrot.slane %v3274, %v3319
        %v3321 = vlaneseq
        %v3322 = vshrl.u32 %v3321, 7
        %v3323 = vsub.s32 3, %v3322
        %v3324 = vrot.slane %v3274, %v3323
        %v3325 = vlaneseq
        %v3326 = vshrl.u32 %v3325, 7
        %v3327 = vsub.s32 4, %v3326
        %v3328 = vrot.slane %v3274, %v3327
        %v3329 = vlaneseq
        %v3330 = vshrl.u32 %v3329, 7
        %v3331 = vsub.s32 5, %v3330
        %v3332 = vrot.slane %v3274, %v3331
        %v3333 = vlaneseq
        %v3334 = vshrl.u32 %v3333, 7
        %v3335 = vsub.s32 6, %v3334
        %v3336 = vrot.slane %v3274, %v3335
        %v3337 = vlaneseq
        %v3338 = vshrl.u32 %v3337, 7
        %v3339 = vsub.s32 7, %v3338
        %v3340 = vrot.slane %v3274, %v3339
        %v3357 = vadd.f32 %v3257, %v3280
        %v3358 = vadd.f32 %v3258, %v3284
        %v3359 = vadd.f32 %v3259, %v3288
        %v3360 = vadd.f32 %v3260, %v3292
        %v3361 = vadd.f32 %v3261, %v3296
        %v3362 = vadd.f32 %v3262, %v3300
        %v3363 = vadd.f32 %v3263, %v3304
        %v3364 = vadd.f32 %v3264, %v3308
        %v3365 = vadd.f32 %v3265, %v3312
        %v3366 = vadd.f32 %v3266, %v3316
        %v3367 = vadd.f32 %v3267, %v3320
        %v3368 = vadd.f32 %v3268, %v3324
        %v3369 = vadd.f32 %v3269, %v3328
        %v3370 = vadd.f32 %v3270, %v3332
        %v3371 = vadd.f32 %v3271, %v3336
        %v3372 = vadd.f32 %v3272, %v3340
        %v3373 = vtanh.pop %v3357
        %v3374 = vtanh.pop %v3358
        %v3375 = vtanh.pop %v3359
        %v3376 = vtanh.pop %v3360
        %v3377 = vtanh.pop %v3361
        %v3378 = vtanh.pop %v3362
        %v3379 = vtanh.pop %v3363
        %v3380 = vtanh.pop %v3364
        %v3381 = vtanh.pop %v3365
        %v3382 = vtanh.pop %v3366
        %v3383 = vtanh.pop %v3367
        %v3384 = vtanh.pop %v3368
        %v3385 = vtanh.pop %v3369
        %v3386 = vtanh.pop %v3370
        %v3387 = vtanh.pop %v3371
        %v3388 = vtanh.pop %v3372
        %3389 = vst [vmem:[%s288] sm:$0xff] %v3373
        %3390 = vst [vmem:[%s288 + $0x8] sm:$0xff] %v3374
        %3391 = vst [vmem:[%s288 + $0x10] sm:$0xff] %v3375
        %3392 = vst [vmem:[%s288 + $0x18] sm:$0xff] %v3376
        %3393 = vst [vmem:[%s288 + $0x20] sm:$0xff] %v3377
        %3394 = vst [vmem:[%s288 + $0x28] sm:$0xff] %v3378
        %3395 = vst [vmem:[%s288 + $0x30] sm:$0xff] %v3379
        %3396 = vst [vmem:[%s288 + $0x38] sm:$0xff] %v3380
        %3397 = vst [vmem:[%s288 + $0x40] sm:$0xff] %v3381
        %3398 = vst [vmem:[%s288 + $0x48] sm:$0xff] %v3382
        %3399 = vst [vmem:[%s288 + $0x50] sm:$0xff] %v3383
        %3400 = vst [vmem:[%s288 + $0x58] sm:$0xff] %v3384
        %3401 = vst [vmem:[%s288 + $0x60] sm:$0xff] %v3385
        %3402 = vst [vmem:[%s288 + $0x68] sm:$0xff] %v3386
        %3403 = vst [vmem:[%s288 + $0x70] sm:$0xff] %v3387
        %3404 = vst [vmem:[%s288 + $0x78] sm:$0xff] %v3388
        %s3405 = sand.u32 %s131, 1
        %s3406 = scalar_lea.sflag [#allocation4], %s3405
        %s3407 = sand.u32 %s131, 1
        %s3408 = smul.addr %s3407, 128
        %s3409 = scalar_lea.vmem [#allocation8], %s3408
        // Predicated region
        $region49: #{generator_forward.3} parent=35 // pred_check
          %p3410 = pneg %p141
        $region50: #{generator_forward.3} parent=35 // pred_check_branch
          %3412 = sbr.rel (%p3410) target = $region52
        $region51: #{generator_forward.3} parent=35 // pred_region
          %s3413 = smul.u32 16, %s24
          %s3415 = ssub.s32 2048, 2048
          %3416 = vsyncadd %s3406, %s3415
          %s3417 = smul.addr %s3413, 128
          %s3418 = scalar_lea.hbm %s4, %s3417
          %s3420 = sshll.u32 %s3409, 4
          %s3421 = int_to_ptr.vmem [resolvable:$true] %s3420
          %3423 = dma.vmem_to_hbm [thread:$0]  %s3421, 2048, %s3418, %s3406
        $region52: #{generator_forward.3} parent=35 // pred_fallthru
          _
      $region36: #{generator_forward.3} parent=5 // pred_fallthru
        _
      %p3424 = scmp.le.s32.totalorder 2, %s19
      // Predicated region
      $region53: #{generator_forward.3} parent=5 // pred_check
        %p3425 = pneg %p3424
      $region54: #{generator_forward.3} parent=5 // pred_check_branch
        %3427 = sbr.rel (%p3425) target = $region56
      $region55: #{generator_forward.3} parent=5 // pred_region
        %s3428 = ssub.s32 %s19, 2
        // Predicated region
        $region57: #{generator_forward.3} parent=55 // pred_check
          %p3429 = pneg %p147
        $region58: #{generator_forward.3} parent=55 // pred_check_branch
          %3431 = sbr.rel (%p3429) target = $region60
        $region59: #{generator_forward.3} parent=55 // pred_region
          %s3432 = sand.u32 %s132, 1
          %s3433 = scalar_lea.sflag [#allocation4], %s3432
          %s3434 = sand.u32 %s132, 1
          %s3435 = smul.addr %s3434, 128
          %s3436 = scalar_lea.vmem [#allocation8], %s3435
          %3437 = dma.done %s3433, 2048
        $region60: #{generator_forward.3} parent=55 // pred_fallthru
          _
      $region56: #{generator_forward.3} parent=5 // pred_fallthru
        _
    $region6: #{generator_forward.3} parent=1 // loop_footer
      %s23 = sadd.s32 1, %s19
    $region7: #{generator_forward.3} parent=1 // loop_footer_branch
      %18 = sbr.rel target = $region3
    $region8: #{generator_forward.3} parent=1 // loop_exit
      _
    %3438 = vsyncpa [#allocation3], 1
    %s3439 = scalar_lea.sflag [#allocation3], 1
    %3440 = vsyncpa %s3439, 1
    %3441 = vsyncpa [#allocation6], 1
    %s3442 = scalar_lea.sflag [#allocation6], 1
    %3443 = vsyncpa %s3442, 1
    %3444 = vsyncpa [#allocation4], 1
    %s3445 = scalar_lea.sflag [#allocation4], 1
    %3446 = vsyncpa %s3445, 1

// kernel: generator_forward.2
$region0: #{generator_forward.2}
  #allocation0 [shape = 'u32[]', space=smem, size = 0x4, offset = 0x4, fixed_abs, tag = 'smem constant byte address 0x4 - core index']
  #allocation1 [shape = 'u32[144,128]{1,0:T(1,128)}', space=vmem, size = 0x12000, scoped, tag = 'internal scratch']
  %s0 = inlined_call_operand.vmem [shape: bf16[8,128], index: 0, kind: input, shape index: {}]
  %s1 = inlined_call_operand.hbm [shape: bf16[128,256], index: 1, kind: input, shape index: {}]
  %s2 = inlined_call_operand.hbm [shape: f32[1,256], index: 2, kind: input, shape index: {}]
  %s3 = inlined_call_operand.hbm [shape: bf16[256,512], index: 3, kind: input, shape index: {}]
  %s4 = inlined_call_operand.hbm [shape: f32[1,512], index: 4, kind: input, shape index: {}]
  %s5 = inlined_call_operand.hbm [shape: bf16[512,1024], index: 5, kind: input, shape index: {}]
  %s6 = inlined_call_operand.hbm [shape: f32[1,1024], index: 6, kind: input, shape index: {}]
  %s7 = inlined_call_operand.vmem [shape: bf16[8,1024], index: 7, kind: output, shape index: {}]
  %s8 = sld [smem:[#allocation0]]
  $region62: #{generator_forward.2} parent=0
    _
  %s10 = ssub.s32 1, %s8
  %s11 = scalar_select 0, %s10, %s8
  $region1: #{generator_forward.2} parent=0
    #allocation2 [shape = 'u8[65536]{0}', space=vmem, size = 0x10000, scoped, tag = 'input window, operand 1, single buffered']
    #allocation3 [shape = 's32[1]{0}', space=sflag, size = 0x4, scoped, tag = 'scoped memory for generator_forward.2']
    #allocation4 [shape = 'u8[1024]{0}', space=vmem, size = 0x400, scoped, tag = 'input window, operand 2, single buffered']
    #allocation5 [shape = 's32[1]{0}', space=sflag, size = 0x4, scoped, tag = 'scoped memory for generator_forward.2']
    #allocation6 [shape = 'u8[262144]{0}', space=vmem, size = 0x40000, scoped, tag = 'input window, operand 3, single buffered']
    #allocation7 [shape = 'u8[2048]{0}', space=vmem, size = 0x800, scoped, tag = 'input window, operand 4, single buffered']
    #allocation8 [shape = 's32[1]{0}', space=sflag, size = 0x4, scoped, tag = 'scoped memory for generator_forward.2']
    #allocation9 [shape = 'u8[1048576]{0}', space=vmem, size = 0x100000, scoped, tag = 'input window, operand 5, single buffered']
    #allocation10 [shape = 'u8[4096]{0}', space=vmem, size = 0x1000, scoped, tag = 'input window, operand 6, single buffered']
    #allocation11 [shape = 's32[1]{0}', space=sflag, size = 0x4, scoped, tag = 'scoped memory for generator_forward.2']
    %12 = vsyncpa [#allocation3], 0
    %13 = vsyncpa [#allocation5], 0
    %14 = vsyncpa [#allocation8], 0
    %15 = vsyncpa [#allocation11], 0
    // Predicated region
    $region2: #{generator_forward.2} parent=1 // pred_check
      _
    $region3: #{generator_forward.2} parent=1 // pred_check_branch
      %17 = sbr.rel (0) target = $region5
    $region4: #{generator_forward.2} parent=1 // pred_region
      _
    $region5: #{generator_forward.2} parent=1 // pred_fallthru
      _
    // Predicated region
    $region6: #{generator_forward.2} parent=1 // pred_check
      _
    $region7: #{generator_forward.2} parent=1 // pred_check_branch
      %19 = sbr.rel (0) target = $region9
    $region8: #{generator_forward.2} parent=1 // pred_region
      %s21 = ssub.s32 2048, 2048
      %22 = vsyncadd [#allocation3], %s21
      %s23 = sshll.u32 [#allocation2], 4
      %s24 = int_to_ptr.vmem [resolvable:$true] %s23
      %29 = dma.hbm_to_vmem [thread:$0]  %s1, 2048, %s24, [#allocation3], 128, 128, 8
    $region9: #{generator_forward.2} parent=1 // pred_fallthru
      _
    // Predicated region
    $region10: #{generator_forward.2} parent=1 // pred_check
      _
    $region11: #{generator_forward.2} parent=1 // pred_check_branch
      %31 = sbr.rel (0) target = $region13
    $region12: #{generator_forward.2} parent=1 // pred_region
      %s33 = ssub.s32 32, 32
      %34 = vsyncadd [#allocation5], %s33
      %s36 = sshll.u32 [#allocation4], 4
      %s37 = int_to_ptr.vmem [resolvable:$true] %s36
      %39 = dma.hbm_to_vmem [thread:$0]  %s2, 32, %s37, [#allocation5]
    $region13: #{generator_forward.2} parent=1 // pred_fallthru
      _
    // Predicated region
    $region14: #{generator_forward.2} parent=1 // pred_check
      _
    $region15: #{generator_forward.2} parent=1 // pred_check_branch
      %41 = sbr.rel (0) target = $region17
    $region16: #{generator_forward.2} parent=1 // pred_region
      %s43 = ssub.s32 8192, 8192
      %44 = vsyncadd [#allocation5], %s43
      %s45 = sshll.u32 [#allocation6], 4
      %s46 = int_to_ptr.vmem [resolvable:$true] %s45
      %51 = dma.hbm_to_vmem [thread:$0]  %s3, 8192, %s46, [#allocation5], 256, 256, 16
    $region17: #{generator_forward.2} parent=1 // pred_fallthru
      _
    // Predicated region
    $region18: #{generator_forward.2} parent=1 // pred_check
      _
    $region19: #{generator_forward.2} parent=1 // pred_check_branch
      %53 = sbr.rel (0) target = $region21
    $region20: #{generator_forward.2} parent=1 // pred_region
      %s55 = ssub.s32 64, 64
      %56 = vsyncadd [#allocation8], %s55
      %s58 = sshll.u32 [#allocation7], 4
      %s59 = int_to_ptr.vmem [resolvable:$true] %s58
      %61 = dma.hbm_to_vmem [thread:$0]  %s4, 64, %s59, [#allocation8]
    $region21: #{generator_forward.2} parent=1 // pred_fallthru
      _
    // Predicated region
    $region22: #{generator_forward.2} parent=1 // pred_check
      _
    $region23: #{generator_forward.2} parent=1 // pred_check_branch
      %63 = sbr.rel (0) target = $region25
    $region24: #{generator_forward.2} parent=1 // pred_region
      %s65 = ssub.s32 32768, 32768
      %66 = vsyncadd [#allocation8], %s65
      %s67 = sshll.u32 [#allocation9], 4
      %s68 = int_to_ptr.vmem [resolvable:$true] %s67
      %73 = dma.hbm_to_vmem [thread:$0]  %s5, 32768, %s68, [#allocation8], 512, 512, 32
    $region25: #{generator_forward.2} parent=1 // pred_fallthru
      _
    // Predicated region
    $region26: #{generator_forward.2} parent=1 // pred_check
      _
    $region27: #{generator_forward.2} parent=1 // pred_check_branch
      %75 = sbr.rel (0) target = $region29
    $region28: #{generator_forward.2} parent=1 // pred_region
      %s77 = ssub.s32 128, 128
      %78 = vsyncadd [#allocation11], %s77
      %s80 = sshll.u32 [#allocation10], 4
      %s81 = int_to_ptr.vmem [resolvable:$true] %s80
      %83 = dma.hbm_to_vmem [thread:$0]  %s6, 128, %s81, [#allocation11]
    $region29: #{generator_forward.2} parent=1 // pred_fallthru
      _
    // Predicated region
    $region30: #{generator_forward.2} parent=1 // pred_check
      _
    $region31: #{generator_forward.2} parent=1 // pred_check_branch
      %85 = sbr.rel (0) target = $region33
    $region32: #{generator_forward.2} parent=1 // pred_region
      %86 = dma.done [#allocation3], 2048
    $region33: #{generator_forward.2} parent=1 // pred_fallthru
      _
    // Predicated region
    $region34: #{generator_forward.2} parent=1 // pred_check
      _
    $region35: #{generator_forward.2} parent=1 // pred_check_branch
      %88 = sbr.rel (0) target = $region37
    $region36: #{generator_forward.2} parent=1 // pred_region
      %89 = dma.done [#allocation5], 32
    $region37: #{generator_forward.2} parent=1 // pred_fallthru
      _
    // Predicated region
    $region38: #{generator_forward.2} parent=1 // pred_check
      _
    $region39: #{generator_forward.2} parent=1 // pred_check_branch
      %91 = sbr.rel (0) target = $region41
    $region40: #{generator_forward.2} parent=1 // pred_region
      %92 = dma.done [#allocation5], 8192
    $region41: #{generator_forward.2} parent=1 // pred_fallthru
      _
    // Predicated region
    $region42: #{generator_forward.2} parent=1 // pred_check
      _
    $region43: #{generator_forward.2} parent=1 // pred_check_branch
      %94 = sbr.rel (0) target = $region45
    $region44: #{generator_forward.2} parent=1 // pred_region
      %95 = dma.done [#allocation8], 64
    $region45: #{generator_forward.2} parent=1 // pred_fallthru
      _
    // Predicated region
    $region46: #{generator_forward.2} parent=1 // pred_check
      _
    $region47: #{generator_forward.2} parent=1 // pred_check_branch
      %97 = sbr.rel (0) target = $region49
    $region48: #{generator_forward.2} parent=1 // pred_region
      %98 = dma.done [#allocation8], 32768
    $region49: #{generator_forward.2} parent=1 // pred_fallthru
      _
    // Predicated region
    $region50: #{generator_forward.2} parent=1 // pred_check
      _
    $region51: #{generator_forward.2} parent=1 // pred_check_branch
      %100 = sbr.rel (0) target = $region53
    $region52: #{generator_forward.2} parent=1 // pred_region
      %101 = dma.done [#allocation11], 128
    $region53: #{generator_forward.2} parent=1 // pred_fallthru
      _
    %v103 = vld [vmem:[%s0] sm:$0xf]
    %v104 = vld [vmem:[#allocation2] sm:$0xff]
    %v105 = vld [vmem:[#allocation2 + $0x8] sm:$0xff]
    %v106 = vld [vmem:[#allocation2 + $0x10] sm:$0xff]
    %v107 = vld [vmem:[#allocation2 + $0x18] sm:$0xff]
    %v108 = vld [vmem:[#allocation2 + $0x20] sm:$0xff]
    %v109 = vld [vmem:[#allocation2 + $0x28] sm:$0xff]
    %v110 = vld [vmem:[#allocation2 + $0x30] sm:$0xff]
    %v111 = vld [vmem:[#allocation2 + $0x38] sm:$0xff]
    %v112 = vld [vmem:[#allocation2 + $0x40] sm:$0xff]
    %v113 = vld [vmem:[#allocation2 + $0x48] sm:$0xff]
    %v114 = vld [vmem:[#allocation2 + $0x50] sm:$0xff]
    %v115 = vld [vmem:[#allocation2 + $0x58] sm:$0xff]
    %v116 = vld [vmem:[#allocation2 + $0x60] sm:$0xff]
    %v117 = vld [vmem:[#allocation2 + $0x68] sm:$0xff]
    %v118 = vld [vmem:[#allocation2 + $0x70] sm:$0xff]
    %v119 = vld [vmem:[#allocation2 + $0x78] sm:$0xff]
    %v120 = vld [vmem:[#allocation4] sm:$0x3]
    %v122 = vlaneseq
    %v123 = vshrl.u32 %v122, 7
    %v124 = vsub.s32 0, %v123
    %v125 = vrot.slane %v120, %v124
    %v126 = vlaneseq
    %v127 = vshrl.u32 %v126, 7
    %v128 = vsub.s32 1, %v127
    %v129 = vrot.slane %v120, %v128
    %v148 = vunpack.c.l.b16 %v104
    %v149 = vunpack.c.h.b16 %v104
    %v150 = vunpack.c.l.b16 %v105
    %v151 = vunpack.c.h.b16 %v105
    %v152 = vunpack.c.l.b16 %v106
    %v153 = vunpack.c.h.b16 %v106
    %v154 = vunpack.c.l.b16 %v107
    %v155 = vunpack.c.h.b16 %v107
    %v156 = vunpack.c.l.b16 %v108
    %v157 = vunpack.c.h.b16 %v108
    %v158 = vunpack.c.l.b16 %v109
    %v159 = vunpack.c.h.b16 %v109
    %v160 = vunpack.c.l.b16 %v110
    %v161 = vunpack.c.h.b16 %v110
    %v162 = vunpack.c.l.b16 %v111
    %v163 = vunpack.c.h.b16 %v111
    %v164 = vunpack.c.l.b16 %v112
    %v165 = vunpack.c.h.b16 %v112
    %v166 = vunpack.c.l.b16 %v113
    %v167 = vunpack.c.h.b16 %v113
    %v168 = vunpack.c.l.b16 %v114
    %v169 = vunpack.c.h.b16 %v114
    %v170 = vunpack.c.l.b16 %v115
    %v171 = vunpack.c.h.b16 %v115
    %v172 = vunpack.c.l.b16 %v116
    %v173 = vunpack.c.h.b16 %v116
    %v174 = vunpack.c.l.b16 %v117
    %v175 = vunpack.c.h.b16 %v117
    %v176 = vunpack.c.l.b16 %v118
    %v177 = vunpack.c.h.b16 %v118
    %v178 = vunpack.c.l.b16 %v119
    %v179 = vunpack.c.h.b16 %v119
    %v180 = vpack.c.b16 %v150, %v148
    %v181 = vpack.c.b16 %v151, %v149
    %v182 = vpack.c.b16 %v154, %v152
    %v183 = vpack.c.b16 %v155, %v153
    %v184 = vpack.c.b16 %v158, %v156
    %v185 = vpack.c.b16 %v159, %v157
    %v186 = vpack.c.b16 %v162, %v160
    %v187 = vpack.c.b16 %v163, %v161
    %v188 = vpack.c.b16 %v166, %v164
    %v189 = vpack.c.b16 %v167, %v165
    %v190 = vpack.c.b16 %v170, %v168
    %v191 = vpack.c.b16 %v171, %v169
    %v192 = vpack.c.b16 %v174, %v172
    %v193 = vpack.c.b16 %v175, %v173
    %v194 = vpack.c.b16 %v178, %v176
    %v195 = vpack.c.b16 %v179, %v177
    %212 = vmatprep.subr.bf16.mxu0 %v181
    %213 = vmatpush1.bf16.msra.mxu0 %v180
    %214 = vmatprep.subr.bf16.mxu0 %v183
    %215 = vmatpush1.bf16.msra.mxu0 %v182
    %216 = vmatprep.subr.bf16.mxu0 %v185
    %217 = vmatpush1.bf16.msra.mxu0 %v184
    %218 = vmatprep.subr.bf16.mxu0 %v187
    %219 = vmatpush1.bf16.msra.mxu0 %v186
    %220 = vmatprep.subr.bf16.mxu0 %v189
    %221 = vmatpush1.bf16.msra.mxu0 %v188
    %222 = vmatprep.subr.bf16.mxu0 %v191
    %223 = vmatpush1.bf16.msra.mxu0 %v190
    %224 = vmatprep.subr.bf16.mxu0 %v193
    %225 = vmatpush1.bf16.msra.mxu0 %v192
    %226 = vmatprep.subr.bf16.mxu0 %v195
    %227 = vmatpush1.bf16.msra.mxu0 %v194
    %228 = vmatprep.subr.bf16.mxu0 0
    %229 = vmatpush1.bf16.msra.mxu0 0
    %230 = vmatprep.subr.bf16.mxu0 0
    %231 = vmatpush1.bf16.msra.mxu0 0
    %232 = vmatprep.subr.bf16.mxu0 0
    %233 = vmatpush1.bf16.msra.mxu0 0
    %234 = vmatprep.subr.bf16.mxu0 0
    %235 = vmatpush1.bf16.msra.mxu0 0
    %236 = vmatprep.subr.bf16.mxu0 0
    %237 = vmatpush1.bf16.msra.mxu0 0
    %238 = vmatprep.subr.bf16.mxu0 0
    %239 = vmatpush1.bf16.msra.mxu0 0
    %240 = vmatprep.subr.bf16.mxu0 0
    %241 = vmatpush1.bf16.msra.mxu0 0
    %242 = vmatprep.subr.bf16.mxu0 0
    %243 = vmatpush1.bf16.msra.mxu0 0
    %244 = vmatprep.mubr.bf16.mxu0 0
    %245 = vmatmul.mubr.bf16.gmra.mrb[0].mxu0 %v103
    %v246 = vpop.f32.mrb[0].mxu0
    %v247 = vadd.f32 %v125, %v246
    %v248 = vpop.f32.mrb[0].mxu0
    %v249 = vadd.f32 %v129, %v248
    %v250 = vpop.f32.mrb[0].mxu0
    %v251 = vpop.f32.mrb[0].mxu0
    %252 = vdwg.mxu0
    %vm253 = vcmp.gt.f32.partialorder %v247, 0.0
    %vm254 = vcmp.gt.f32.partialorder %v249, 0.0
    %v255 = vmul.f32 %v247, 0.2
    %v256 = vmul.f32 %v249, 0.2
    %v257 = vsel %vm253, %v247, %v255
    %v258 = vsel %vm254, %v249, %v256
    %v259 = vpack.c.bf16 %v257, %v257
    %v260 = vpack.c.bf16 %v258, %v258
    %v261 = vld [vmem:[#allocation6] sm:$0xff]
    %v262 = vld [vmem:[#allocation6 + $0x8] sm:$0xff]
    %v263 = vld [vmem:[#allocation6 + $0x10] sm:$0xff]
    %v264 = vld [vmem:[#allocation6 + $0x18] sm:$0xff]
    %v265 = vld [vmem:[#allocation6 + $0x20] sm:$0xff]
    %v266 = vld [vmem:[#allocation6 + $0x28] sm:$0xff]
    %v267 = vld [vmem:[#allocation6 + $0x30] sm:$0xff]
    %v268 = vld [vmem:[#allocation6 + $0x38] sm:$0xff]
    %v269 = vld [vmem:[#allocation6 + $0x40] sm:$0xff]
    %v270 = vld [vmem:[#allocation6 + $0x48] sm:$0xff]
    %v271 = vld [vmem:[#allocation6 + $0x50] sm:$0xff]
    %v272 = vld [vmem:[#allocation6 + $0x58] sm:$0xff]
    %v273 = vld [vmem:[#allocation6 + $0x60] sm:$0xff]
    %v274 = vld [vmem:[#allocation6 + $0x68] sm:$0xff]
    %v275 = vld [vmem:[#allocation6 + $0x70] sm:$0xff]
    %v276 = vld [vmem:[#allocation6 + $0x78] sm:$0xff]
    %v277 = vld [vmem:[#allocation6 + $0x80] sm:$0xff]
    %v278 = vld [vmem:[#allocation6 + $0x88] sm:$0xff]
    %v279 = vld [vmem:[#allocation6 + $0x90] sm:$0xff]
    %v280 = vld [vmem:[#allocation6 + $0x98] sm:$0xff]
    %v281 = vld [vmem:[#allocation6 + $0xa0] sm:$0xff]
    %v282 = vld [vmem:[#allocation6 + $0xa8] sm:$0xff]
    %v283 = vld [vmem:[#allocation6 + $0xb0] sm:$0xff]
    %v284 = vld [vmem:[#allocation6 + $0xb8] sm:$0xff]
    %v285 = vld [vmem:[#allocation6 + $0xc0] sm:$0xff]
    %v286 = vld [vmem:[#allocation6 + $0xc8] sm:$0xff]
    %v287 = vld [vmem:[#allocation6 + $0xd0] sm:$0xff]
    %v288 = vld [vmem:[#allocation6 + $0xd8] sm:$0xff]
    %v289 = vld [vmem:[#allocation6 + $0xe0] sm:$0xff]
    %v290 = vld [vmem:[#allocation6 + $0xe8] sm:$0xff]
    %v291 = vld [vmem:[#allocation6 + $0xf0] sm:$0xff]
    %v292 = vld [vmem:[#allocation6 + $0xf8] sm:$0xff]
    %v293 = vld [vmem:[#allocation6 + $0x100] sm:$0xff]
    %v294 = vld [vmem:[#allocation6 + $0x108] sm:$0xff]
    %v295 = vld [vmem:[#allocation6 + $0x110] sm:$0xff]
    %v296 = vld [vmem:[#allocation6 + $0x118] sm:$0xff]
    %v297 = vld [vmem:[#allocation6 + $0x120] sm:$0xff]
    %v298 = vld [vmem:[#allocation6 + $0x128] sm:$0xff]
    %v299 = vld [vmem:[#allocation6 + $0x130] sm:$0xff]
    %v300 = vld [vmem:[#allocation6 + $0x138] sm:$0xff]
    %v301 = vld [vmem:[#allocation6 + $0x140] sm:$0xff]
    %v302 = vld [vmem:[#allocation6 + $0x148] sm:$0xff]
    %v303 = vld [vmem:[#allocation6 + $0x150] sm:$0xff]
    %v304 = vld [vmem:[#allocation6 + $0x158] sm:$0xff]
    %v305 = vld [vmem:[#allocation6 + $0x160] sm:$0xff]
    %v306 = vld [vmem:[#allocation6 + $0x168] sm:$0xff]
    %v307 = vld [vmem:[#allocation6 + $0x170] sm:$0xff]
    %v308 = vld [vmem:[#allocation6 + $0x178] sm:$0xff]
    %v309 = vld [vmem:[#allocation6 + $0x180] sm:$0xff]
    %v310 = vld [vmem:[#allocation6 + $0x188] sm:$0xff]
    %v311 = vld [vmem:[#allocation6 + $0x190] sm:$0xff]
    %v312 = vld [vmem:[#allocation6 + $0x198] sm:$0xff]
    %v313 = vld [vmem:[#allocation6 + $0x1a0] sm:$0xff]
    %v314 = vld [vmem:[#allocation6 + $0x1a8] sm:$0xff]
    %v315 = vld [vmem:[#allocation6 + $0x1b0] sm:$0xff]
    %v316 = vld [vmem:[#allocation6 + $0x1b8] sm:$0xff]
    %v317 = vld [vmem:[#allocation6 + $0x1c0] sm:$0xff]
    %v318 = vld [vmem:[#allocation6 + $0x1c8] sm:$0xff]
    %v319 = vld [vmem:[#allocation6 + $0x1d0] sm:$0xff]
    %v320 = vld [vmem:[#allocation6 + $0x1d8] sm:$0xff]
    %v321 = vld [vmem:[#allocation6 + $0x1e0] sm:$0xff]
    %v322 = vld [vmem:[#allocation6 + $0x1e8] sm:$0xff]
    %v323 = vld [vmem:[#allocation6 + $0x1f0] sm:$0xff]
    %v324 = vld [vmem:[#allocation6 + $0x1f8] sm:$0xff]
    %v325 = vld [vmem:[#allocation7] sm:$0xf]
    %v327 = vlaneseq
    %v328 = vshrl.u32 %v327, 7
    %v329 = vsub.s32 0, %v328
    %v330 = vrot.slane %v325, %v329
    %v331 = vlaneseq
    %v332 = vshrl.u32 %v331, 7
    %v333 = vsub.s32 1, %v332
    %v334 = vrot.slane %v325, %v333
    %v335 = vlaneseq
    %v336 = vshrl.u32 %v335, 7
    %v337 = vsub.s32 2, %v336
    %v338 = vrot.slane %v325, %v337
    %v339 = vlaneseq
    %v340 = vshrl.u32 %v339, 7
    %v341 = vsub.s32 3, %v340
    %v342 = vrot.slane %v325, %v341
    %v411 = vunpack.c.l.b16 %v261
    %v412 = vunpack.c.h.b16 %v261
    %v413 = vunpack.c.l.b16 %v262
    %v414 = vunpack.c.h.b16 %v262
    %v415 = vunpack.c.l.b16 %v263
    %v416 = vunpack.c.h.b16 %v263
    %v417 = vunpack.c.l.b16 %v264
    %v418 = vunpack.c.h.b16 %v264
    %v419 = vunpack.c.l.b16 %v265
    %v420 = vunpack.c.h.b16 %v265
    %v421 = vunpack.c.l.b16 %v266
    %v422 = vunpack.c.h.b16 %v266
    %v423 = vunpack.c.l.b16 %v267
    %v424 = vunpack.c.h.b16 %v267
    %v425 = vunpack.c.l.b16 %v268
    %v426 = vunpack.c.h.b16 %v268
    %v427 = vunpack.c.l.b16 %v269
    %v428 = vunpack.c.h.b16 %v269
    %v429 = vunpack.c.l.b16 %v270
    %v430 = vunpack.c.h.b16 %v270
    %v431 = vunpack.c.l.b16 %v271
    %v432 = vunpack.c.h.b16 %v271
    %v433 = vunpack.c.l.b16 %v272
    %v434 = vunpack.c.h.b16 %v272
    %v435 = vunpack.c.l.b16 %v273
    %v436 = vunpack.c.h.b16 %v273
    %v437 = vunpack.c.l.b16 %v274
    %v438 = vunpack.c.h.b16 %v274
    %v439 = vunpack.c.l.b16 %v275
    %v440 = vunpack.c.h.b16 %v275
    %v441 = vunpack.c.l.b16 %v276
    %v442 = vunpack.c.h.b16 %v276
    %v443 = vunpack.c.l.b16 %v277
    %v444 = vunpack.c.h.b16 %v277
    %v445 = vunpack.c.l.b16 %v278
    %v446 = vunpack.c.h.b16 %v278
    %v447 = vunpack.c.l.b16 %v279
    %v448 = vunpack.c.h.b16 %v279
    %v449 = vunpack.c.l.b16 %v280
    %v450 = vunpack.c.h.b16 %v280
    %v451 = vunpack.c.l.b16 %v281
    %v452 = vunpack.c.h.b16 %v281
    %v453 = vunpack.c.l.b16 %v282
    %v454 = vunpack.c.h.b16 %v282
    %v455 = vunpack.c.l.b16 %v283
    %v456 = vunpack.c.h.b16 %v283
    %v457 = vunpack.c.l.b16 %v284
    %v458 = vunpack.c.h.b16 %v284
    %v459 = vunpack.c.l.b16 %v285
    %v460 = vunpack.c.h.b16 %v285
    %v461 = vunpack.c.l.b16 %v286
    %v462 = vunpack.c.h.b16 %v286
    %v463 = vunpack.c.l.b16 %v287
    %v464 = vunpack.c.h.b16 %v287
    %v465 = vunpack.c.l.b16 %v288
    %v466 = vunpack.c.h.b16 %v288
    %v467 = vunpack.c.l.b16 %v289
    %v468 = vunpack.c.h.b16 %v289
    %v469 = vunpack.c.l.b16 %v290
    %v470 = vunpack.c.h.b16 %v290
    %v471 = vunpack.c.l.b16 %v291
    %v472 = vunpack.c.h.b16 %v291
    %v473 = vunpack.c.l.b16 %v292
    %v474 = vunpack.c.h.b16 %v292
    %v475 = vunpack.c.l.b16 %v293
    %v476 = vunpack.c.h.b16 %v293
    %v477 = vunpack.c.l.b16 %v294
    %v478 = vunpack.c.h.b16 %v294
    %v479 = vunpack.c.l.b16 %v295
    %v480 = vunpack.c.h.b16 %v295
    %v481 = vunpack.c.l.b16 %v296
    %v482 = vunpack.c.h.b16 %v296
    %v483 = vunpack.c.l.b16 %v297
    %v484 = vunpack.c.h.b16 %v297
    %v485 = vunpack.c.l.b16 %v298
    %v486 = vunpack.c.h.b16 %v298
    %v487 = vunpack.c.l.b16 %v299
    %v488 = vunpack.c.h.b16 %v299
    %v489 = vunpack.c.l.b16 %v300
    %v490 = vunpack.c.h.b16 %v300
    %v491 = vunpack.c.l.b16 %v301
    %v492 = vunpack.c.h.b16 %v301
    %v493 = vunpack.c.l.b16 %v302
    %v494 = vunpack.c.h.b16 %v302
    %v495 = vunpack.c.l.b16 %v303
    %v496 = vunpack.c.h.b16 %v303
    %v497 = vunpack.c.l.b16 %v304
    %v498 = vunpack.c.h.b16 %v304
    %v499 = vunpack.c.l.b16 %v305
    %v500 = vunpack.c.h.b16 %v305
    %v501 = vunpack.c.l.b16 %v306
    %v502 = vunpack.c.h.b16 %v306
    %v503 = vunpack.c.l.b16 %v307
    %v504 = vunpack.c.h.b16 %v307
    %v505 = vunpack.c.l.b16 %v308
    %v506 = vunpack.c.h.b16 %v308
    %v507 = vunpack.c.l.b16 %v309
    %v508 = vunpack.c.h.b16 %v309
    %v509 = vunpack.c.l.b16 %v310
    %v510 = vunpack.c.h.b16 %v310
    %v511 = vunpack.c.l.b16 %v311
    %v512 = vunpack.c.h.b16 %v311
    %v513 = vunpack.c.l.b16 %v312
    %v514 = vunpack.c.h.b16 %v312
    %v515 = vunpack.c.l.b16 %v313
    %v516 = vunpack.c.h.b16 %v313
    %v517 = vunpack.c.l.b16 %v314
    %v518 = vunpack.c.h.b16 %v314
    %v519 = vunpack.c.l.b16 %v315
    %v520 = vunpack.c.h.b16 %v315
    %v521 = vunpack.c.l.b16 %v316
    %v522 = vunpack.c.h.b16 %v316
    %v523 = vunpack.c.l.b16 %v317
    %v524 = vunpack.c.h.b16 %v317
    %v525 = vunpack.c.l.b16 %v318
    %v526 = vunpack.c.h.b16 %v318
    %v527 = vunpack.c.l.b16 %v319
    %v528 = vunpack.c.h.b16 %v319
    %v529 = vunpack.c.l.b16 %v320
    %v530 = vunpack.c.h.b16 %v320
    %v531 = vunpack.c.l.b16 %v321
    %v532 = vunpack.c.h.b16 %v321
    %v533 = vunpack.c.l.b16 %v322
    %v534 = vunpack.c.h.b16 %v322
    %v535 = vunpack.c.l.b16 %v323
    %v536 = vunpack.c.h.b16 %v323
    %v537 = vunpack.c.l.b16 %v324
    %v538 = vunpack.c.h.b16 %v324
    %v539 = vpack.c.b16 %v415, %v411
    %v540 = vpack.c.b16 %v416, %v412
    %v541 = vpack.c.b16 %v417, %v413
    %v542 = vpack.c.b16 %v418, %v414
    %v543 = vpack.c.b16 %v423, %v419
    %v544 = vpack.c.b16 %v424, %v420
    %v545 = vpack.c.b16 %v425, %v421
    %v546 = vpack.c.b16 %v426, %v422
    %v547 = vpack.c.b16 %v431, %v427
    %v548 = vpack.c.b16 %v432, %v428
    %v549 = vpack.c.b16 %v433, %v429
    %v550 = vpack.c.b16 %v434, %v430
    %v551 = vpack.c.b16 %v439, %v435
    %v552 = vpack.c.b16 %v440, %v436
    %v553 = vpack.c.b16 %v441, %v437
    %v554 = vpack.c.b16 %v442, %v438
    %v555 = vpack.c.b16 %v447, %v443
    %v556 = vpack.c.b16 %v448, %v444
    %v557 = vpack.c.b16 %v449, %v445
    %v558 = vpack.c.b16 %v450, %v446
    %v559 = vpack.c.b16 %v455, %v451
    %v560 = vpack.c.b16 %v456, %v452
    %v561 = vpack.c.b16 %v457, %v453
    %v562 = vpack.c.b16 %v458, %v454
    %v563 = vpack.c.b16 %v463, %v459
    %v564 = vpack.c.b16 %v464, %v460
    %v565 = vpack.c.b16 %v465, %v461
    %v566 = vpack.c.b16 %v466, %v462
    %v567 = vpack.c.b16 %v471, %v467
    %v568 = vpack.c.b16 %v472, %v468
    %v569 = vpack.c.b16 %v473, %v469
    %v570 = vpack.c.b16 %v474, %v470
    %v571 = vpack.c.b16 %v479, %v475
    %v572 = vpack.c.b16 %v480, %v476
    %v573 = vpack.c.b16 %v481, %v477
    %v574 = vpack.c.b16 %v482, %v478
    %v575 = vpack.c.b16 %v487, %v483
    %v576 = vpack.c.b16 %v488, %v484
    %v577 = vpack.c.b16 %v489, %v485
    %v578 = vpack.c.b16 %v490, %v486
    %v579 = vpack.c.b16 %v495, %v491
    %v580 = vpack.c.b16 %v496, %v492
    %v581 = vpack.c.b16 %v497, %v493
    %v582 = vpack.c.b16 %v498, %v494
    %v583 = vpack.c.b16 %v503, %v499
    %v584 = vpack.c.b16 %v504, %v500
    %v585 = vpack.c.b16 %v505, %v501
    %v586 = vpack.c.b16 %v506, %v502
    %v587 = vpack.c.b16 %v511, %v507
    %v588 = vpack.c.b16 %v512, %v508
    %v589 = vpack.c.b16 %v513, %v509
    %v590 = vpack.c.b16 %v514, %v510
    %v591 = vpack.c.b16 %v519, %v515
    %v592 = vpack.c.b16 %v520, %v516
    %v593 = vpack.c.b16 %v521, %v517
    %v594 = vpack.c.b16 %v522, %v518
    %v595 = vpack.c.b16 %v527, %v523
    %v596 = vpack.c.b16 %v528, %v524
    %v597 = vpack.c.b16 %v529, %v525
    %v598 = vpack.c.b16 %v530, %v526
    %v599 = vpack.c.b16 %v535, %v531
    %v600 = vpack.c.b16 %v536, %v532
    %v601 = vpack.c.b16 %v537, %v533
    %v602 = vpack.c.b16 %v538, %v534
    %667 = vmatprep.subr.bf16.mxu0 %v540
    %668 = vmatpush1.bf16.msra.mxu0 %v539
    %669 = vmatprep.subr.bf16.mxu0 %v544
    %670 = vmatpush1.bf16.msra.mxu0 %v543
    %671 = vmatprep.subr.bf16.mxu0 %v548
    %672 = vmatpush1.bf16.msra.mxu0 %v547
    %673 = vmatprep.subr.bf16.mxu0 %v552
    %674 = vmatpush1.bf16.msra.mxu0 %v551
    %675 = vmatprep.subr.bf16.mxu0 %v556
    %676 = vmatpush1.bf16.msra.mxu0 %v555
    %677 = vmatprep.subr.bf16.mxu0 %v560
    %678 = vmatpush1.bf16.msra.mxu0 %v559
    %679 = vmatprep.subr.bf16.mxu0 %v564
    %680 = vmatpush1.bf16.msra.mxu0 %v563
    %681 = vmatprep.subr.bf16.mxu0 %v568
    %682 = vmatpush1.bf16.msra.mxu0 %v567
    %683 = vmatprep.subr.bf16.mxu0 %v572
    %684 = vmatpush1.bf16.msra.mxu0 %v571
    %685 = vmatprep.subr.bf16.mxu0 %v576
    %686 = vmatpush1.bf16.msra.mxu0 %v575
    %687 = vmatprep.subr.bf16.mxu0 %v580
    %688 = vmatpush1.bf16.msra.mxu0 %v579
    %689 = vmatprep.subr.bf16.mxu0 %v584
    %690 = vmatpush1.bf16.msra.mxu0 %v583
    %691 = vmatprep.subr.bf16.mxu0 %v588
    %692 = vmatpush1.bf16.msra.mxu0 %v587
    %693 = vmatprep.subr.bf16.mxu0 %v592
    %694 = vmatpush1.bf16.msra.mxu0 %v591
    %695 = vmatprep.subr.bf16.mxu0 %v596
    %696 = vmatpush1.bf16.msra.mxu0 %v595
    %697 = vmatprep.subr.bf16.mxu0 %v600
    %698 = vmatpush1.bf16.msra.mxu0 %v599
    %699 = vmatprep.mubr.bf16.mxu0 %v260
    %700 = vmatmul.mubr.bf16.gmra.mrb[0].mxu0 %v259
    %v701 = vpop.f32.mrb[0].mxu0
    %v702 = vadd.f32 %v330, %v701
    %v703 = vpop.f32.mrb[0].mxu0
    %v704 = vadd.f32 %v334, %v703
    %v705 = vpop.f32.mrb[0].mxu0
    %v706 = vpop.f32.mrb[0].mxu0
    %707 = vdwg.mxu0
    %708 = vmatprep.subr.bf16.mxu0 %v542
    %709 = vmatpush1.bf16.msra.mxu0 %v541
    %710 = vmatprep.subr.bf16.mxu0 %v546
    %711 = vmatpush1.bf16.msra.mxu0 %v545
    %712 = vmatprep.subr.bf16.mxu0 %v550
    %713 = vmatpush1.bf16.msra.mxu0 %v549
    %714 = vmatprep.subr.bf16.mxu0 %v554
    %715 = vmatpush1.bf16.msra.mxu0 %v553
    %716 = vmatprep.subr.bf16.mxu0 %v558
    %717 = vmatpush1.bf16.msra.mxu0 %v557
    %718 = vmatprep.subr.bf16.mxu0 %v562
    %719 = vmatpush1.bf16.msra.mxu0 %v561
    %720 = vmatprep.subr.bf16.mxu0 %v566
    %721 = vmatpush1.bf16.msra.mxu0 %v565
    %722 = vmatprep.subr.bf16.mxu0 %v570
    %723 = vmatpush1.bf16.msra.mxu0 %v569
    %724 = vmatprep.subr.bf16.mxu0 %v574
    %725 = vmatpush1.bf16.msra.mxu0 %v573
    %726 = vmatprep.subr.bf16.mxu0 %v578
    %727 = vmatpush1.bf16.msra.mxu0 %v577
    %728 = vmatprep.subr.bf16.mxu0 %v582
    %729 = vmatpush1.bf16.msra.mxu0 %v581
    %730 = vmatprep.subr.bf16.mxu0 %v586
    %731 = vmatpush1.bf16.msra.mxu0 %v585
    %732 = vmatprep.subr.bf16.mxu0 %v590
    %733 = vmatpush1.bf16.msra.mxu0 %v589
    %734 = vmatprep.subr.bf16.mxu0 %v594
    %735 = vmatpush1.bf16.msra.mxu0 %v593
    %736 = vmatprep.subr.bf16.mxu0 %v598
    %737 = vmatpush1.bf16.msra.mxu0 %v597
    %738 = vmatprep.subr.bf16.mxu0 %v602
    %739 = vmatpush1.bf16.msra.mxu0 %v601
    %740 = vmatprep.mubr.bf16.mxu0 %v260
    %741 = vmatmul.mubr.bf16.gmra.mrb[0].mxu0 %v259
    %v742 = vpop.f32.mrb[0].mxu0
    %v743 = vadd.f32 %v338, %v742
    %v744 = vpop.f32.mrb[0].mxu0
    %v745 = vadd.f32 %v342, %v744
    %v746 = vpop.f32.mrb[0].mxu0
    %v747 = vpop.f32.mrb[0].mxu0
    %748 = vdwg.mxu0
    %vm749 = vcmp.gt.f32.partialorder %v702, 0.0
    %vm750 = vcmp.gt.f32.partialorder %v704, 0.0
    %vm751 = vcmp.gt.f32.partialorder %v743, 0.0
    %vm752 = vcmp.gt.f32.partialorder %v745, 0.0
    %v753 = vmul.f32 %v702, 0.2
    %v754 = vmul.f32 %v704, 0.2
    %v755 = vmul.f32 %v743, 0.2
    %v756 = vmul.f32 %v745, 0.2
    %v757 = vsel %vm749, %v702, %v753
    %v758 = vsel %vm750, %v704, %v754
    %v759 = vsel %vm751, %v743, %v755
    %v760 = vsel %vm752, %v745, %v756
    %v761 = vpack.c.bf16 %v757, %v757
    %v762 = vpack.c.bf16 %v758, %v758
    %v763 = vpack.c.bf16 %v759, %v759
    %v764 = vpack.c.bf16 %v760, %v760
    %v765 = vld [vmem:[#allocation9] sm:$0xff]
    %v766 = vld [vmem:[#allocation9 + $0x8] sm:$0xff]
    %v767 = vld [vmem:[#allocation9 + $0x10] sm:$0xff]
    %v768 = vld [vmem:[#allocation9 + $0x18] sm:$0xff]
    %v769 = vld [vmem:[#allocation9 + $0x20] sm:$0xff]
    %v770 = vld [vmem:[#allocation9 + $0x28] sm:$0xff]
    %v771 = vld [vmem:[#allocation9 + $0x30] sm:$0xff]
    %v772 = vld [vmem:[#allocation9 + $0x38] sm:$0xff]
    %v773 = vld [vmem:[#allocation9 + $0x40] sm:$0xff]
    %v774 = vld [vmem:[#allocation9 + $0x48] sm:$0xff]
    %v775 = vld [vmem:[#allocation9 + $0x50] sm:$0xff]
    %v776 = vld [vmem:[#allocation9 + $0x58] sm:$0xff]
    %v777 = vld [vmem:[#allocation9 + $0x60] sm:$0xff]
    %v778 = vld [vmem:[#allocation9 + $0x68] sm:$0xff]
    %v779 = vld [vmem:[#allocation9 + $0x70] sm:$0xff]
    %v780 = vld [vmem:[#allocation9 + $0x78] sm:$0xff]
    %v781 = vld [vmem:[#allocation9 + $0x80] sm:$0xff]
    %v782 = vld [vmem:[#allocation9 + $0x88] sm:$0xff]
    %v783 = vld [vmem:[#allocation9 + $0x90] sm:$0xff]
    %v784 = vld [vmem:[#allocation9 + $0x98] sm:$0xff]
    %v785 = vld [vmem:[#allocation9 + $0xa0] sm:$0xff]
    %v786 = vld [vmem:[#allocation9 + $0xa8] sm:$0xff]
    %v787 = vld [vmem:[#allocation9 + $0xb0] sm:$0xff]
    %v788 = vld [vmem:[#allocation9 + $0xb8] sm:$0xff]
    %v789 = vld [vmem:[#allocation9 + $0xc0] sm:$0xff]
    %v790 = vld [vmem:[#allocation9 + $0xc8] sm:$0xff]
    %v791 = vld [vmem:[#allocation9 + $0xd0] sm:$0xff]
    %v792 = vld [vmem:[#allocation9 + $0xd8] sm:$0xff]
    %v793 = vld [vmem:[#allocation9 + $0xe0] sm:$0xff]
    %v794 = vld [vmem:[#allocation9 + $0xe8] sm:$0xff]
    %v795 = vld [vmem:[#allocation9 + $0xf0] sm:$0xff]
    %v796 = vld [vmem:[#allocation9 + $0xf8] sm:$0xff]
    %v797 = vld [vmem:[#allocation9 + $0x100] sm:$0xff]
    %v798 = vld [vmem:[#allocation9 + $0x108] sm:$0xff]
    %v799 = vld [vmem:[#allocation9 + $0x110] sm:$0xff]
    %v800 = vld [vmem:[#allocation9 + $0x118] sm:$0xff]
    %v801 = vld [vmem:[#allocation9 + $0x120] sm:$0xff]
    %v802 = vld [vmem:[#allocation9 + $0x128] sm:$0xff]
    %v803 = vld [vmem:[#allocation9 + $0x130] sm:$0xff]
    %v804 = vld [vmem:[#allocation9 + $0x138] sm:$0xff]
    %v805 = vld [vmem:[#allocation9 + $0x140] sm:$0xff]
    %v806 = vld [vmem:[#allocation9 + $0x148] sm:$0xff]
    %v807 = vld [vmem:[#allocation9 + $0x150] sm:$0xff]
    %v808 = vld [vmem:[#allocation9 + $0x158] sm:$0xff]
    %v809 = vld [vmem:[#allocation9 + $0x160] sm:$0xff]
    %v810 = vld [vmem:[#allocation9 + $0x168] sm:$0xff]
    %v811 = vld [vmem:[#allocation9 + $0x170] sm:$0xff]
    %v812 = vld [vmem:[#allocation9 + $0x178] sm:$0xff]
    %v813 = vld [vmem:[#allocation9 + $0x180] sm:$0xff]
    %v814 = vld [vmem:[#allocation9 + $0x188] sm:$0xff]
    %v815 = vld [vmem:[#allocation9 + $0x190] sm:$0xff]
    %v816 = vld [vmem:[#allocation9 + $0x198] sm:$0xff]
    %v817 = vld [vmem:[#allocation9 + $0x1a0] sm:$0xff]
    %v818 = vld [vmem:[#allocation9 + $0x1a8] sm:$0xff]
    %v819 = vld [vmem:[#allocation9 + $0x1b0] sm:$0xff]
    %v820 = vld [vmem:[#allocation9 + $0x1b8] sm:$0xff]
    %v821 = vld [vmem:[#allocation9 + $0x1c0] sm:$0xff]
    %v822 = vld [vmem:[#allocation9 + $0x1c8] sm:$0xff]
    %v823 = vld [vmem:[#allocation9 + $0x1d0] sm:$0xff]
    %v824 = vld [vmem:[#allocation9 + $0x1d8] sm:$0xff]
    %v825 = vld [vmem:[#allocation9 + $0x1e0] sm:$0xff]
    %v826 = vld [vmem:[#allocation9 + $0x1e8] sm:$0xff]
    %v827 = vld [vmem:[#allocation9 + $0x1f0] sm:$0xff]
    %v828 = vld [vmem:[#allocation9 + $0x1f8] sm:$0xff]
    %v829 = vld [vmem:[#allocation9 + $0x200] sm:$0xff]
    %v830 = vld [vmem:[#allocation9 + $0x208] sm:$0xff]
    %v831 = vld [vmem:[#allocation9 + $0x210] sm:$0xff]
    %v832 = vld [vmem:[#allocation9 + $0x218] sm:$0xff]
    %v833 = vld [vmem:[#allocation9 + $0x220] sm:$0xff]
    %v834 = vld [vmem:[#allocation9 + $0x228] sm:$0xff]
    %v835 = vld [vmem:[#allocation9 + $0x230] sm:$0xff]
    %v836 = vld [vmem:[#allocation9 + $0x238] sm:$0xff]
    %v837 = vld [vmem:[#allocation9 + $0x240] sm:$0xff]
    %v838 = vld [vmem:[#allocation9 + $0x248] sm:$0xff]
    %v839 = vld [vmem:[#allocation9 + $0x250] sm:$0xff]
    %v840 = vld [vmem:[#allocation9 + $0x258] sm:$0xff]
    %v841 = vld [vmem:[#allocation9 + $0x260] sm:$0xff]
    %v842 = vld [vmem:[#allocation9 + $0x268] sm:$0xff]
    %v843 = vld [vmem:[#allocation9 + $0x270] sm:$0xff]
    %v844 = vld [vmem:[#allocation9 + $0x278] sm:$0xff]
    %v845 = vld [vmem:[#allocation9 + $0x280] sm:$0xff]
    %v846 = vld [vmem:[#allocation9 + $0x288] sm:$0xff]
    %v847 = vld [vmem:[#allocation9 + $0x290] sm:$0xff]
    %v848 = vld [vmem:[#allocation9 + $0x298] sm:$0xff]
    %v849 = vld [vmem:[#allocation9 + $0x2a0] sm:$0xff]
    %v850 = vld [vmem:[#allocation9 + $0x2a8] sm:$0xff]
    %v851 = vld [vmem:[#allocation9 + $0x2b0] sm:$0xff]
    %v852 = vld [vmem:[#allocation9 + $0x2b8] sm:$0xff]
    %v853 = vld [vmem:[#allocation9 + $0x2c0] sm:$0xff]
    %v854 = vld [vmem:[#allocation9 + $0x2c8] sm:$0xff]
    %v855 = vld [vmem:[#allocation9 + $0x2d0] sm:$0xff]
    %v856 = vld [vmem:[#allocation9 + $0x2d8] sm:$0xff]
    %v857 = vld [vmem:[#allocation9 + $0x2e0] sm:$0xff]
    %v858 = vld [vmem:[#allocation9 + $0x2e8] sm:$0xff]
    %v859 = vld [vmem:[#allocation9 + $0x2f0] sm:$0xff]
    %v860 = vld [vmem:[#allocation9 + $0x2f8] sm:$0xff]
    %v861 = vld [vmem:[#allocation9 + $0x300] sm:$0xff]
    %v862 = vld [vmem:[#allocation9 + $0x308] sm:$0xff]
    %v863 = vld [vmem:[#allocation9 + $0x310] sm:$0xff]
    %v864 = vld [vmem:[#allocation9 + $0x318] sm:$0xff]
    %v865 = vld [vmem:[#allocation9 + $0x320] sm:$0xff]
    %v866 = vld [vmem:[#allocation9 + $0x328] sm:$0xff]
    %v867 = vld [vmem:[#allocation9 + $0x330] sm:$0xff]
    %v868 = vld [vmem:[#allocation9 + $0x338] sm:$0xff]
    %v869 = vld [vmem:[#allocation9 + $0x340] sm:$0xff]
    %v870 = vld [vmem:[#allocation9 + $0x348] sm:$0xff]
    %v871 = vld [vmem:[#allocation9 + $0x350] sm:$0xff]
    %v872 = vld [vmem:[#allocation9 + $0x358] sm:$0xff]
    %v873 = vld [vmem:[#allocation9 + $0x360] sm:$0xff]
    %v874 = vld [vmem:[#allocation9 + $0x368] sm:$0xff]
    %v875 = vld [vmem:[#allocation9 + $0x370] sm:$0xff]
    %v876 = vld [vmem:[#allocation9 + $0x378] sm:$0xff]
    %v877 = vld [vmem:[#allocation9 + $0x380] sm:$0xff]
    %v878 = vld [vmem:[#allocation9 + $0x388] sm:$0xff]
    %v879 = vld [vmem:[#allocation9 + $0x390] sm:$0xff]
    %v880 = vld [vmem:[#allocation9 + $0x398] sm:$0xff]
    %v881 = vld [vmem:[#allocation9 + $0x3a0] sm:$0xff]
    %v882 = vld [vmem:[#allocation9 + $0x3a8] sm:$0xff]
    %v883 = vld [vmem:[#allocation9 + $0x3b0] sm:$0xff]
    %v884 = vld [vmem:[#allocation9 + $0x3b8] sm:$0xff]
    %v885 = vld [vmem:[#allocation9 + $0x3c0] sm:$0xff]
    %v886 = vld [vmem:[#allocation9 + $0x3c8] sm:$0xff]
    %v887 = vld [vmem:[#allocation9 + $0x3d0] sm:$0xff]
    %v888 = vld [vmem:[#allocation9 + $0x3d8] sm:$0xff]
    %v889 = vld [vmem:[#allocation9 + $0x3e0] sm:$0xff]
    %v890 = vld [vmem:[#allocation9 + $0x3e8] sm:$0xff]
    %v891 = vld [vmem:[#allocation9 + $0x3f0] sm:$0xff]
    %v892 = vld [vmem:[#allocation9 + $0x3f8] sm:$0xff]
    %v893 = vld [vmem:[#allocation9 + $0x400] sm:$0xff]
    %v894 = vld [vmem:[#allocation9 + $0x408] sm:$0xff]
    %v895 = vld [vmem:[#allocation9 + $0x410] sm:$0xff]
    %v896 = vld [vmem:[#allocation9 + $0x418] sm:$0xff]
    %v897 = vld [vmem:[#allocation9 + $0x420] sm:$0xff]
    %v898 = vld [vmem:[#allocation9 + $0x428] sm:$0xff]
    %v899 = vld [vmem:[#allocation9 + $0x430] sm:$0xff]
    %v900 = vld [vmem:[#allocation9 + $0x438] sm:$0xff]
    %v901 = vld [vmem:[#allocation9 + $0x440] sm:$0xff]
    %v902 = vld [vmem:[#allocation9 + $0x448] sm:$0xff]
    %v903 = vld [vmem:[#allocation9 + $0x450] sm:$0xff]
    %v904 = vld [vmem:[#allocation9 + $0x458] sm:$0xff]
    %v905 = vld [vmem:[#allocation9 + $0x460] sm:$0xff]
    %v906 = vld [vmem:[#allocation9 + $0x468] sm:$0xff]
    %v907 = vld [vmem:[#allocation9 + $0x470] sm:$0xff]
    %v908 = vld [vmem:[#allocation9 + $0x478] sm:$0xff]
    %v909 = vld [vmem:[#allocation9 + $0x480] sm:$0xff]
    %v910 = vld [vmem:[#allocation9 + $0x488] sm:$0xff]
    %v911 = vld [vmem:[#allocation9 + $0x490] sm:$0xff]
    %v912 = vld [vmem:[#allocation9 + $0x498] sm:$0xff]
    %v913 = vld [vmem:[#allocation9 + $0x4a0] sm:$0xff]
    %v914 = vld [vmem:[#allocation9 + $0x4a8] sm:$0xff]
    %v915 = vld [vmem:[#allocation9 + $0x4b0] sm:$0xff]
    %v916 = vld [vmem:[#allocation9 + $0x4b8] sm:$0xff]
    %v917 = vld [vmem:[#allocation9 + $0x4c0] sm:$0xff]
    %v918 = vld [vmem:[#allocation9 + $0x4c8] sm:$0xff]
    %v919 = vld [vmem:[#allocation9 + $0x4d0] sm:$0xff]
    %v920 = vld [vmem:[#allocation9 + $0x4d8] sm:$0xff]
    %v921 = vld [vmem:[#allocation9 + $0x4e0] sm:$0xff]
    %v922 = vld [vmem:[#allocation9 + $0x4e8] sm:$0xff]
    %v923 = vld [vmem:[#allocation9 + $0x4f0] sm:$0xff]
    %v924 = vld [vmem:[#allocation9 + $0x4f8] sm:$0xff]
    %v925 = vld [vmem:[#allocation9 + $0x500] sm:$0xff]
    %v926 = vld [vmem:[#allocation9 + $0x508] sm:$0xff]
    %v927 = vld [vmem:[#allocation9 + $0x510] sm:$0xff]
    %v928 = vld [vmem:[#allocation9 + $0x518] sm:$0xff]
    %v929 = vld [vmem:[#allocation9 + $0x520] sm:$0xff]
    %v930 = vld [vmem:[#allocation9 + $0x528] sm:$0xff]
    %v931 = vld [vmem:[#allocation9 + $0x530] sm:$0xff]
    %v932 = vld [vmem:[#allocation9 + $0x538] sm:$0xff]
    %v933 = vld [vmem:[#allocation9 + $0x540] sm:$0xff]
    %v934 = vld [vmem:[#allocation9 + $0x548] sm:$0xff]
    %v935 = vld [vmem:[#allocation9 + $0x550] sm:$0xff]
    %v936 = vld [vmem:[#allocation9 + $0x558] sm:$0xff]
    %v937 = vld [vmem:[#allocation9 + $0x560] sm:$0xff]
    %v938 = vld [vmem:[#allocation9 + $0x568] sm:$0xff]
    %v939 = vld [vmem:[#allocation9 + $0x570] sm:$0xff]
    %v940 = vld [vmem:[#allocation9 + $0x578] sm:$0xff]
    %v941 = vld [vmem:[#allocation9 + $0x580] sm:$0xff]
    %v942 = vld [vmem:[#allocation9 + $0x588] sm:$0xff]
    %v943 = vld [vmem:[#allocation9 + $0x590] sm:$0xff]
    %v944 = vld [vmem:[#allocation9 + $0x598] sm:$0xff]
    %v945 = vld [vmem:[#allocation9 + $0x5a0] sm:$0xff]
    %v946 = vld [vmem:[#allocation9 + $0x5a8] sm:$0xff]
    %v947 = vld [vmem:[#allocation9 + $0x5b0] sm:$0xff]
    %v948 = vld [vmem:[#allocation9 + $0x5b8] sm:$0xff]
    %v949 = vld [vmem:[#allocation9 + $0x5c0] sm:$0xff]
    %v950 = vld [vmem:[#allocation9 + $0x5c8] sm:$0xff]
    %v951 = vld [vmem:[#allocation9 + $0x5d0] sm:$0xff]
    %v952 = vld [vmem:[#allocation9 + $0x5d8] sm:$0xff]
    %v953 = vld [vmem:[#allocation9 + $0x5e0] sm:$0xff]
    %v954 = vld [vmem:[#allocation9 + $0x5e8] sm:$0xff]
    %v955 = vld [vmem:[#allocation9 + $0x5f0] sm:$0xff]
    %v956 = vld [vmem:[#allocation9 + $0x5f8] sm:$0xff]
    %v957 = vld [vmem:[#allocation9 + $0x600] sm:$0xff]
    %v958 = vld [vmem:[#allocation9 + $0x608] sm:$0xff]
    %v959 = vld [vmem:[#allocation9 + $0x610] sm:$0xff]
    %v960 = vld [vmem:[#allocation9 + $0x618] sm:$0xff]
    %v961 = vld [vmem:[#allocation9 + $0x620] sm:$0xff]
    %v962 = vld [vmem:[#allocation9 + $0x628] sm:$0xff]
    %v963 = vld [vmem:[#allocation9 + $0x630] sm:$0xff]
    %v964 = vld [vmem:[#allocation9 + $0x638] sm:$0xff]
    %v965 = vld [vmem:[#allocation9 + $0x640] sm:$0xff]
    %v966 = vld [vmem:[#allocation9 + $0x648] sm:$0xff]
    %v967 = vld [vmem:[#allocation9 + $0x650] sm:$0xff]
    %v968 = vld [vmem:[#allocation9 + $0x658] sm:$0xff]
    %v969 = vld [vmem:[#allocation9 + $0x660] sm:$0xff]
    %v970 = vld [vmem:[#allocation9 + $0x668] sm:$0xff]
    %v971 = vld [vmem:[#allocation9 + $0x670] sm:$0xff]
    %v972 = vld [vmem:[#allocation9 + $0x678] sm:$0xff]
    %v973 = vld [vmem:[#allocation9 + $0x680] sm:$0xff]
    %v974 = vld [vmem:[#allocation9 + $0x688] sm:$0xff]
    %v975 = vld [vmem:[#allocation9 + $0x690] sm:$0xff]
    %v976 = vld [vmem:[#allocation9 + $0x698] sm:$0xff]
    %v977 = vld [vmem:[#allocation9 + $0x6a0] sm:$0xff]
    %v978 = vld [vmem:[#allocation9 + $0x6a8] sm:$0xff]
    %v979 = vld [vmem:[#allocation9 + $0x6b0] sm:$0xff]
    %v980 = vld [vmem:[#allocation9 + $0x6b8] sm:$0xff]
    %v981 = vld [vmem:[#allocation9 + $0x6c0] sm:$0xff]
    %v982 = vld [vmem:[#allocation9 + $0x6c8] sm:$0xff]
    %v983 = vld [vmem:[#allocation9 + $0x6d0] sm:$0xff]
    %v984 = vld [vmem:[#allocation9 + $0x6d8] sm:$0xff]
    %v985 = vld [vmem:[#allocation9 + $0x6e0] sm:$0xff]
    %v986 = vld [vmem:[#allocation9 + $0x6e8] sm:$0xff]
    %v987 = vld [vmem:[#allocation9 + $0x6f0] sm:$0xff]
    %v988 = vld [vmem:[#allocation9 + $0x6f8] sm:$0xff]
    %v989 = vld [vmem:[#allocation9 + $0x700] sm:$0xff]
    %v990 = vld [vmem:[#allocation9 + $0x708] sm:$0xff]
    %v991 = vld [vmem:[#allocation9 + $0x710] sm:$0xff]
    %v992 = vld [vmem:[#allocation9 + $0x718] sm:$0xff]
    %v993 = vld [vmem:[#allocation9 + $0x720] sm:$0xff]
    %v994 = vld [vmem:[#allocation9 + $0x728] sm:$0xff]
    %v995 = vld [vmem:[#allocation9 + $0x730] sm:$0xff]
    %v996 = vld [vmem:[#allocation9 + $0x738] sm:$0xff]
    %v997 = vld [vmem:[#allocation9 + $0x740] sm:$0xff]
    %v998 = vld [vmem:[#allocation9 + $0x748] sm:$0xff]
    %v999 = vld [vmem:[#allocation9 + $0x750] sm:$0xff]
    %v1000 = vld [vmem:[#allocation9 + $0x758] sm:$0xff]
    %v1001 = vld [vmem:[#allocation9 + $0x760] sm:$0xff]
    %v1002 = vld [vmem:[#allocation9 + $0x768] sm:$0xff]
    %v1003 = vld [vmem:[#allocation9 + $0x770] sm:$0xff]
    %v1004 = vld [vmem:[#allocation9 + $0x778] sm:$0xff]
    %v1005 = vld [vmem:[#allocation9 + $0x780] sm:$0xff]
    %v1006 = vld [vmem:[#allocation9 + $0x788] sm:$0xff]
    %v1007 = vld [vmem:[#allocation9 + $0x790] sm:$0xff]
    %v1008 = vld [vmem:[#allocation9 + $0x798] sm:$0xff]
    %v1009 = vld [vmem:[#allocation9 + $0x7a0] sm:$0xff]
    %v1010 = vld [vmem:[#allocation9 + $0x7a8] sm:$0xff]
    %v1011 = vld [vmem:[#allocation9 + $0x7b0] sm:$0xff]
    %v1012 = vld [vmem:[#allocation9 + $0x7b8] sm:$0xff]
    %v1013 = vld [vmem:[#allocation9 + $0x7c0] sm:$0xff]
    %v1014 = vld [vmem:[#allocation9 + $0x7c8] sm:$0xff]
    %v1015 = vld [vmem:[#allocation9 + $0x7d0] sm:$0xff]
    %v1016 = vld [vmem:[#allocation9 + $0x7d8] sm:$0xff]
    %v1017 = vld [vmem:[#allocation9 + $0x7e0] sm:$0xff]
    %v1018 = vld [vmem:[#allocation9 + $0x7e8] sm:$0xff]
    %v1019 = vld [vmem:[#allocation9 + $0x7f0] sm:$0xff]
    %v1020 = vld [vmem:[#allocation9 + $0x7f8] sm:$0xff]
    %v1021 = vld [vmem:[#allocation10] sm:$0xff]
    %v1023 = vlaneseq
    %v1024 = vshrl.u32 %v1023, 7
    %v1025 = vsub.s32 0, %v1024
    %v1026 = vrot.slane %v1021, %v1025
    %v1027 = vlaneseq
    %v1028 = vshrl.u32 %v1027, 7
    %v1029 = vsub.s32 1, %v1028
    %v1030 = vrot.slane %v1021, %v1029
    %v1031 = vlaneseq
    %v1032 = vshrl.u32 %v1031, 7
    %v1033 = vsub.s32 2, %v1032
    %v1034 = vrot.slane %v1021, %v1033
    %v1035 = vlaneseq
    %v1036 = vshrl.u32 %v1035, 7
    %v1037 = vsub.s32 3, %v1036
    %v1038 = vrot.slane %v1021, %v1037
    %v1039 = vlaneseq
    %v1040 = vshrl.u32 %v1039, 7
    %v1041 = vsub.s32 4, %v1040
    %v1042 = vrot.slane %v1021, %v1041
    %v1043 = vlaneseq
    %v1044 = vshrl.u32 %v1043, 7
    %v1045 = vsub.s32 5, %v1044
    %v1046 = vrot.slane %v1021, %v1045
    %v1047 = vlaneseq
    %v1048 = vshrl.u32 %v1047, 7
    %v1049 = vsub.s32 6, %v1048
    %v1050 = vrot.slane %v1021, %v1049
    %v1051 = vlaneseq
    %v1052 = vshrl.u32 %v1051, 7
    %v1053 = vsub.s32 7, %v1052
    %v1054 = vrot.slane %v1021, %v1053
    %v1319 = vunpack.c.l.b16 %v765
    %v1320 = vunpack.c.h.b16 %v765
    %v1321 = vunpack.c.l.b16 %v766
    %v1322 = vunpack.c.h.b16 %v766
    %v1323 = vunpack.c.l.b16 %v767
    %v1324 = vunpack.c.h.b16 %v767
    %v1325 = vunpack.c.l.b16 %v768
    %v1326 = vunpack.c.h.b16 %v768
    %v1327 = vunpack.c.l.b16 %v769
    %v1328 = vunpack.c.h.b16 %v769
    %v1329 = vunpack.c.l.b16 %v770
    %v1330 = vunpack.c.h.b16 %v770
    %v1331 = vunpack.c.l.b16 %v771
    %v1332 = vunpack.c.h.b16 %v771
    %v1333 = vunpack.c.l.b16 %v772
    %v1334 = vunpack.c.h.b16 %v772
    %v1335 = vunpack.c.l.b16 %v773
    %v1336 = vunpack.c.h.b16 %v773
    %v1337 = vunpack.c.l.b16 %v774
    %v1338 = vunpack.c.h.b16 %v774
    %v1339 = vunpack.c.l.b16 %v775
    %v1340 = vunpack.c.h.b16 %v775
    %v1341 = vunpack.c.l.b16 %v776
    %v1342 = vunpack.c.h.b16 %v776
    %v1343 = vunpack.c.l.b16 %v777
    %v1344 = vunpack.c.h.b16 %v777
    %v1345 = vunpack.c.l.b16 %v778
    %v1346 = vunpack.c.h.b16 %v778
    %v1347 = vunpack.c.l.b16 %v779
    %v1348 = vunpack.c.h.b16 %v779
    %v1349 = vunpack.c.l.b16 %v780
    %v1350 = vunpack.c.h.b16 %v780
    %v1351 = vunpack.c.l.b16 %v781
    %v1352 = vunpack.c.h.b16 %v781
    %v1353 = vunpack.c.l.b16 %v782
    %v1354 = vunpack.c.h.b16 %v782
    %v1355 = vunpack.c.l.b16 %v783
    %v1356 = vunpack.c.h.b16 %v783
    %v1357 = vunpack.c.l.b16 %v784
    %v1358 = vunpack.c.h.b16 %v784
    %v1359 = vunpack.c.l.b16 %v785
    %v1360 = vunpack.c.h.b16 %v785
    %v1361 = vunpack.c.l.b16 %v786
    %v1362 = vunpack.c.h.b16 %v786
    %v1363 = vunpack.c.l.b16 %v787
    %v1364 = vunpack.c.h.b16 %v787
    %v1365 = vunpack.c.l.b16 %v788
    %v1366 = vunpack.c.h.b16 %v788
    %v1367 = vunpack.c.l.b16 %v789
    %v1368 = vunpack.c.h.b16 %v789
    %v1369 = vunpack.c.l.b16 %v790
    %v1370 = vunpack.c.h.b16 %v790
    %v1371 = vunpack.c.l.b16 %v791
    %v1372 = vunpack.c.h.b16 %v791
    %v1373 = vunpack.c.l.b16 %v792
    %v1374 = vunpack.c.h.b16 %v792
    %v1375 = vunpack.c.l.b16 %v793
    %v1376 = vunpack.c.h.b16 %v793
    %v1377 = vunpack.c.l.b16 %v794
    %v1378 = vunpack.c.h.b16 %v794
    %v1379 = vunpack.c.l.b16 %v795
    %v1380 = vunpack.c.h.b16 %v795
    %v1381 = vunpack.c.l.b16 %v796
    %v1382 = vunpack.c.h.b16 %v796
    %v1383 = vunpack.c.l.b16 %v797
    %v1384 = vunpack.c.h.b16 %v797
    %v1385 = vunpack.c.l.b16 %v798
    %v1386 = vunpack.c.h.b16 %v798
    %v1387 = vunpack.c.l.b16 %v799
    %v1388 = vunpack.c.h.b16 %v799
    %v1389 = vunpack.c.l.b16 %v800
    %v1390 = vunpack.c.h.b16 %v800
    %v1391 = vunpack.c.l.b16 %v801
    %v1392 = vunpack.c.h.b16 %v801
    %v1393 = vunpack.c.l.b16 %v802
    %v1394 = vunpack.c.h.b16 %v802
    %v1395 = vunpack.c.l.b16 %v803
    %v1396 = vunpack.c.h.b16 %v803
    %v1397 = vunpack.c.l.b16 %v804
    %v1398 = vunpack.c.h.b16 %v804
    %v1399 = vunpack.c.l.b16 %v805
    %v1400 = vunpack.c.h.b16 %v805
    %v1401 = vunpack.c.l.b16 %v806
    %v1402 = vunpack.c.h.b16 %v806
    %v1403 = vunpack.c.l.b16 %v807
    %v1404 = vunpack.c.h.b16 %v807
    %v1405 = vunpack.c.l.b16 %v808
    %v1406 = vunpack.c.h.b16 %v808
    %v1407 = vunpack.c.l.b16 %v809
    %v1408 = vunpack.c.h.b16 %v809
    %v1409 = vunpack.c.l.b16 %v810
    %v1410 = vunpack.c.h.b16 %v810
    %v1411 = vunpack.c.l.b16 %v811
    %v1412 = vunpack.c.h.b16 %v811
    %v1413 = vunpack.c.l.b16 %v812
    %v1414 = vunpack.c.h.b16 %v812
    %v1415 = vunpack.c.l.b16 %v813
    %v1416 = vunpack.c.h.b16 %v813
    %v1417 = vunpack.c.l.b16 %v814
    %v1418 = vunpack.c.h.b16 %v814
    %v1419 = vunpack.c.l.b16 %v815
    %v1420 = vunpack.c.h.b16 %v815
    %v1421 = vunpack.c.l.b16 %v816
    %v1422 = vunpack.c.h.b16 %v816
    %v1423 = vunpack.c.l.b16 %v817
    %v1424 = vunpack.c.h.b16 %v817
    %v1425 = vunpack.c.l.b16 %v818
    %v1426 = vunpack.c.h.b16 %v818
    %v1427 = vunpack.c.l.b16 %v819
    %v1428 = vunpack.c.h.b16 %v819
    %v1429 = vunpack.c.l.b16 %v820
    %v1430 = vunpack.c.h.b16 %v820
    %v1431 = vunpack.c.l.b16 %v821
    %v1432 = vunpack.c.h.b16 %v821
    %v1433 = vunpack.c.l.b16 %v822
    %v1434 = vunpack.c.h.b16 %v822
    %v1435 = vunpack.c.l.b16 %v823
    %v1436 = vunpack.c.h.b16 %v823
    %v1437 = vunpack.c.l.b16 %v824
    %v1438 = vunpack.c.h.b16 %v824
    %v1439 = vunpack.c.l.b16 %v825
    %v1440 = vunpack.c.h.b16 %v825
    %v1441 = vunpack.c.l.b16 %v826
    %v1442 = vunpack.c.h.b16 %v826
    %v1443 = vunpack.c.l.b16 %v827
    %v1444 = vunpack.c.h.b16 %v827
    %v1445 = vunpack.c.l.b16 %v828
    %v1446 = vunpack.c.h.b16 %v828
    %v1447 = vunpack.c.l.b16 %v829
    %v1448 = vunpack.c.h.b16 %v829
    %v1449 = vunpack.c.l.b16 %v830
    %v1450 = vunpack.c.h.b16 %v830
    %v1451 = vunpack.c.l.b16 %v831
    %v1452 = vunpack.c.h.b16 %v831
    %v1453 = vunpack.c.l.b16 %v832
    %v1454 = vunpack.c.h.b16 %v832
    %v1455 = vunpack.c.l.b16 %v833
    %v1456 = vunpack.c.h.b16 %v833
    %v1457 = vunpack.c.l.b16 %v834
    %v1458 = vunpack.c.h.b16 %v834
    %v1459 = vunpack.c.l.b16 %v835
    %v1460 = vunpack.c.h.b16 %v835
    %v1461 = vunpack.c.l.b16 %v836
    %v1462 = vunpack.c.h.b16 %v836
    %v1463 = vunpack.c.l.b16 %v837
    %v1464 = vunpack.c.h.b16 %v837
    %v1465 = vunpack.c.l.b16 %v838
    %v1466 = vunpack.c.h.b16 %v838
    %v1467 = vunpack.c.l.b16 %v839
    %v1468 = vunpack.c.h.b16 %v839
    %v1469 = vunpack.c.l.b16 %v840
    %v1470 = vunpack.c.h.b16 %v840
    %v1471 = vunpack.c.l.b16 %v841
    %v1472 = vunpack.c.h.b16 %v841
    %v1473 = vunpack.c.l.b16 %v842
    %v1474 = vunpack.c.h.b16 %v842
    %v1475 = vunpack.c.l.b16 %v843
    %v1476 = vunpack.c.h.b16 %v843
    %v1477 = vunpack.c.l.b16 %v844
    %v1478 = vunpack.c.h.b16 %v844
    %v1479 = vunpack.c.l.b16 %v845
    %v1480 = vunpack.c.h.b16 %v845
    %v1481 = vunpack.c.l.b16 %v846
    %v1482 = vunpack.c.h.b16 %v846
    %v1483 = vunpack.c.l.b16 %v847
    %v1484 = vunpack.c.h.b16 %v847
    %v1485 = vunpack.c.l.b16 %v848
    %v1486 = vunpack.c.h.b16 %v848
    %v1487 = vunpack.c.l.b16 %v849
    %v1488 = vunpack.c.h.b16 %v849
    %v1489 = vunpack.c.l.b16 %v850
    %v1490 = vunpack.c.h.b16 %v850
    %v1491 = vunpack.c.l.b16 %v851
    %v1492 = vunpack.c.h.b16 %v851
    %v1493 = vunpack.c.l.b16 %v852
    %v1494 = vunpack.c.h.b16 %v852
    %v1495 = vunpack.c.l.b16 %v853
    %v1496 = vunpack.c.h.b16 %v853
    %v1497 = vunpack.c.l.b16 %v854
    %v1498 = vunpack.c.h.b16 %v854
    %v1499 = vunpack.c.l.b16 %v855
    %v1500 = vunpack.c.h.b16 %v855
    %v1501 = vunpack.c.l.b16 %v856
    %v1502 = vunpack.c.h.b16 %v856
    %v1503 = vunpack.c.l.b16 %v857
    %v1504 = vunpack.c.h.b16 %v857
    %v1505 = vunpack.c.l.b16 %v858
    %v1506 = vunpack.c.h.b16 %v858
    %v1507 = vunpack.c.l.b16 %v859
    %v1508 = vunpack.c.h.b16 %v859
    %v1509 = vunpack.c.l.b16 %v860
    %v1510 = vunpack.c.h.b16 %v860
    %v1511 = vunpack.c.l.b16 %v861
    %v1512 = vunpack.c.h.b16 %v861
    %v1513 = vunpack.c.l.b16 %v862
    %v1514 = vunpack.c.h.b16 %v862
    %v1515 = vunpack.c.l.b16 %v863
    %v1516 = vunpack.c.h.b16 %v863
    %v1517 = vunpack.c.l.b16 %v864
    %v1518 = vunpack.c.h.b16 %v864
    %v1519 = vunpack.c.l.b16 %v865
    %v1520 = vunpack.c.h.b16 %v865
    %v1521 = vunpack.c.l.b16 %v866
    %v1522 = vunpack.c.h.b16 %v866
    %v1523 = vunpack.c.l.b16 %v867
    %v1524 = vunpack.c.h.b16 %v867
    %v1525 = vunpack.c.l.b16 %v868
    %v1526 = vunpack.c.h.b16 %v868
    %v1527 = vunpack.c.l.b16 %v869
    %v1528 = vunpack.c.h.b16 %v869
    %v1529 = vunpack.c.l.b16 %v870
    %v1530 = vunpack.c.h.b16 %v870
    %v1531 = vunpack.c.l.b16 %v871
    %v1532 = vunpack.c.h.b16 %v871
    %v1533 = vunpack.c.l.b16 %v872
    %v1534 = vunpack.c.h.b16 %v872
    %v1535 = vunpack.c.l.b16 %v873
    %v1536 = vunpack.c.h.b16 %v873
    %v1537 = vunpack.c.l.b16 %v874
    %v1538 = vunpack.c.h.b16 %v874
    %v1539 = vunpack.c.l.b16 %v875
    %v1540 = vunpack.c.h.b16 %v875
    %v1541 = vunpack.c.l.b16 %v876
    %v1542 = vunpack.c.h.b16 %v876
    %v1543 = vunpack.c.l.b16 %v877
    %v1544 = vunpack.c.h.b16 %v877
    %v1545 = vunpack.c.l.b16 %v878
    %v1546 = vunpack.c.h.b16 %v878
    %v1547 = vunpack.c.l.b16 %v879
    %v1548 = vunpack.c.h.b16 %v879
    %v1549 = vunpack.c.l.b16 %v880
    %v1550 = vunpack.c.h.b16 %v880
    %v1551 = vunpack.c.l.b16 %v881
    %v1552 = vunpack.c.h.b16 %v881
    %v1553 = vunpack.c.l.b16 %v882
    %v1554 = vunpack.c.h.b16 %v882
    %v1555 = vunpack.c.l.b16 %v883
    %v1556 = vunpack.c.h.b16 %v883
    %v1557 = vunpack.c.l.b16 %v884
    %v1558 = vunpack.c.h.b16 %v884
    %v1559 = vunpack.c.l.b16 %v885
    %v1560 = vunpack.c.h.b16 %v885
    %v1561 = vunpack.c.l.b16 %v886
    %v1562 = vunpack.c.h.b16 %v886
    %v1563 = vunpack.c.l.b16 %v887
    %v1564 = vunpack.c.h.b16 %v887
    %v1565 = vunpack.c.l.b16 %v888
    %v1566 = vunpack.c.h.b16 %v888
    %v1567 = vunpack.c.l.b16 %v889
    %v1568 = vunpack.c.h.b16 %v889
    %v1569 = vunpack.c.l.b16 %v890
    %v1570 = vunpack.c.h.b16 %v890
    %v1571 = vunpack.c.l.b16 %v891
    %v1572 = vunpack.c.h.b16 %v891
    %v1573 = vunpack.c.l.b16 %v892
    %v1574 = vunpack.c.h.b16 %v892
    %v1575 = vunpack.c.l.b16 %v893
    %v1576 = vunpack.c.h.b16 %v893
    %v1577 = vunpack.c.l.b16 %v894
    %v1578 = vunpack.c.h.b16 %v894
    %v1579 = vunpack.c.l.b16 %v895
    %v1580 = vunpack.c.h.b16 %v895
    %v1581 = vunpack.c.l.b16 %v896
    %v1582 = vunpack.c.h.b16 %v896
    %v1583 = vunpack.c.l.b16 %v897
    %v1584 = vunpack.c.h.b16 %v897
    %v1585 = vunpack.c.l.b16 %v898
    %v1586 = vunpack.c.h.b16 %v898
    %v1587 = vunpack.c.l.b16 %v899
    %v1588 = vunpack.c.h.b16 %v899
    %v1589 = vunpack.c.l.b16 %v900
    %v1590 = vunpack.c.h.b16 %v900
    %v1591 = vunpack.c.l.b16 %v901
    %v1592 = vunpack.c.h.b16 %v901
    %v1593 = vunpack.c.l.b16 %v902
    %v1594 = vunpack.c.h.b16 %v902
    %v1595 = vunpack.c.l.b16 %v903
    %v1596 = vunpack.c.h.b16 %v903
    %v1597 = vunpack.c.l.b16 %v904
    %v1598 = vunpack.c.h.b16 %v904
    %v1599 = vunpack.c.l.b16 %v905
    %v1600 = vunpack.c.h.b16 %v905
    %v1601 = vunpack.c.l.b16 %v906
    %v1602 = vunpack.c.h.b16 %v906
    %v1603 = vunpack.c.l.b16 %v907
    %v1604 = vunpack.c.h.b16 %v907
    %v1605 = vunpack.c.l.b16 %v908
    %v1606 = vunpack.c.h.b16 %v908
    %v1607 = vunpack.c.l.b16 %v909
    %v1608 = vunpack.c.h.b16 %v909
    %v1609 = vunpack.c.l.b16 %v910
    %v1610 = vunpack.c.h.b16 %v910
    %v1611 = vunpack.c.l.b16 %v911
    %v1612 = vunpack.c.h.b16 %v911
    %v1613 = vunpack.c.l.b16 %v912
    %v1614 = vunpack.c.h.b16 %v912
    %v1615 = vunpack.c.l.b16 %v913
    %v1616 = vunpack.c.h.b16 %v913
    %v1617 = vunpack.c.l.b16 %v914
    %v1618 = vunpack.c.h.b16 %v914
    %v1619 = vunpack.c.l.b16 %v915
    %v1620 = vunpack.c.h.b16 %v915
    %v1621 = vunpack.c.l.b16 %v916
    %v1622 = vunpack.c.h.b16 %v916
    %v1623 = vunpack.c.l.b16 %v917
    %v1624 = vunpack.c.h.b16 %v917
    %v1625 = vunpack.c.l.b16 %v918
    %v1626 = vunpack.c.h.b16 %v918
    %v1627 = vunpack.c.l.b16 %v919
    %v1628 = vunpack.c.h.b16 %v919
    %v1629 = vunpack.c.l.b16 %v920
    %v1630 = vunpack.c.h.b16 %v920
    %v1631 = vunpack.c.l.b16 %v921
    %v1632 = vunpack.c.h.b16 %v921
    %v1633 = vunpack.c.l.b16 %v922
    %v1634 = vunpack.c.h.b16 %v922
    %v1635 = vunpack.c.l.b16 %v923
    %v1636 = vunpack.c.h.b16 %v923
    %v1637 = vunpack.c.l.b16 %v924
    %v1638 = vunpack.c.h.b16 %v924
    %v1639 = vunpack.c.l.b16 %v925
    %v1640 = vunpack.c.h.b16 %v925
    %v1641 = vunpack.c.l.b16 %v926
    %v1642 = vunpack.c.h.b16 %v926
    %v1643 = vunpack.c.l.b16 %v927
    %v1644 = vunpack.c.h.b16 %v927
    %v1645 = vunpack.c.l.b16 %v928
    %v1646 = vunpack.c.h.b16 %v928
    %v1647 = vunpack.c.l.b16 %v929
    %v1648 = vunpack.c.h.b16 %v929
    %v1649 = vunpack.c.l.b16 %v930
    %v1650 = vunpack.c.h.b16 %v930
    %v1651 = vunpack.c.l.b16 %v931
    %v1652 = vunpack.c.h.b16 %v931
    %v1653 = vunpack.c.l.b16 %v932
    %v1654 = vunpack.c.h.b16 %v932
    %v1655 = vunpack.c.l.b16 %v933
    %v1656 = vunpack.c.h.b16 %v933
    %v1657 = vunpack.c.l.b16 %v934
    %v1658 = vunpack.c.h.b16 %v934
    %v1659 = vunpack.c.l.b16 %v935
    %v1660 = vunpack.c.h.b16 %v935
    %v1661 = vunpack.c.l.b16 %v936
    %v1662 = vunpack.c.h.b16 %v936
    %v1663 = vunpack.c.l.b16 %v937
    %v1664 = vunpack.c.h.b16 %v937
    %v1665 = vunpack.c.l.b16 %v938
    %v1666 = vunpack.c.h.b16 %v938
    %v1667 = vunpack.c.l.b16 %v939
    %v1668 = vunpack.c.h.b16 %v939
    %v1669 = vunpack.c.l.b16 %v940
    %v1670 = vunpack.c.h.b16 %v940
    %v1671 = vunpack.c.l.b16 %v941
    %v1672 = vunpack.c.h.b16 %v941
    %v1673 = vunpack.c.l.b16 %v942
    %v1674 = vunpack.c.h.b16 %v942
    %v1675 = vunpack.c.l.b16 %v943
    %v1676 = vunpack.c.h.b16 %v943
    %v1677 = vunpack.c.l.b16 %v944
    %v1678 = vunpack.c.h.b16 %v944
    %v1679 = vunpack.c.l.b16 %v945
    %v1680 = vunpack.c.h.b16 %v945
    %v1681 = vunpack.c.l.b16 %v946
    %v1682 = vunpack.c.h.b16 %v946
    %v1683 = vunpack.c.l.b16 %v947
    %v1684 = vunpack.c.h.b16 %v947
    %v1685 = vunpack.c.l.b16 %v948
    %v1686 = vunpack.c.h.b16 %v948
    %v1687 = vunpack.c.l.b16 %v949
    %v1688 = vunpack.c.h.b16 %v949
    %v1689 = vunpack.c.l.b16 %v950
    %v1690 = vunpack.c.h.b16 %v950
    %v1691 = vunpack.c.l.b16 %v951
    %v1692 = vunpack.c.h.b16 %v951
    %v1693 = vunpack.c.l.b16 %v952
    %v1694 = vunpack.c.h.b16 %v952
    %v1695 = vunpack.c.l.b16 %v953
    %v1696 = vunpack.c.h.b16 %v953
    %v1697 = vunpack.c.l.b16 %v954
    %v1698 = vunpack.c.h.b16 %v954
    %v1699 = vunpack.c.l.b16 %v955
    %v1700 = vunpack.c.h.b16 %v955
    %v1701 = vunpack.c.l.b16 %v956
    %v1702 = vunpack.c.h.b16 %v956
    %v1703 = vunpack.c.l.b16 %v957
    %v1704 = vunpack.c.h.b16 %v957
    %v1705 = vunpack.c.l.b16 %v958
    %v1706 = vunpack.c.h.b16 %v958
    %v1707 = vunpack.c.l.b16 %v959
    %v1708 = vunpack.c.h.b16 %v959
    %v1709 = vunpack.c.l.b16 %v960
    %v1710 = vunpack.c.h.b16 %v960
    %v1711 = vunpack.c.l.b16 %v961
    %v1712 = vunpack.c.h.b16 %v961
    %v1713 = vunpack.c.l.b16 %v962
    %v1714 = vunpack.c.h.b16 %v962
    %v1715 = vunpack.c.l.b16 %v963
    %v1716 = vunpack.c.h.b16 %v963
    %v1717 = vunpack.c.l.b16 %v964
    %v1718 = vunpack.c.h.b16 %v964
    %v1719 = vunpack.c.l.b16 %v965
    %v1720 = vunpack.c.h.b16 %v965
    %v1721 = vunpack.c.l.b16 %v966
    %v1722 = vunpack.c.h.b16 %v966
    %v1723 = vunpack.c.l.b16 %v967
    %v1724 = vunpack.c.h.b16 %v967
    %v1725 = vunpack.c.l.b16 %v968
    %v1726 = vunpack.c.h.b16 %v968
    %v1727 = vunpack.c.l.b16 %v969
    %v1728 = vunpack.c.h.b16 %v969
    %v1729 = vunpack.c.l.b16 %v970
    %v1730 = vunpack.c.h.b16 %v970
    %v1731 = vunpack.c.l.b16 %v971
    %v1732 = vunpack.c.h.b16 %v971
    %v1733 = vunpack.c.l.b16 %v972
    %v1734 = vunpack.c.h.b16 %v972
    %v1735 = vunpack.c.l.b16 %v973
    %v1736 = vunpack.c.h.b16 %v973
    %v1737 = vunpack.c.l.b16 %v974
    %v1738 = vunpack.c.h.b16 %v974
    %v1739 = vunpack.c.l.b16 %v975
    %v1740 = vunpack.c.h.b16 %v975
    %v1741 = vunpack.c.l.b16 %v976
    %v1742 = vunpack.c.h.b16 %v976
    %v1743 = vunpack.c.l.b16 %v977
    %v1744 = vunpack.c.h.b16 %v977
    %v1745 = vunpack.c.l.b16 %v978
    %v1746 = vunpack.c.h.b16 %v978
    %v1747 = vunpack.c.l.b16 %v979
    %v1748 = vunpack.c.h.b16 %v979
    %v1749 = vunpack.c.l.b16 %v980
    %v1750 = vunpack.c.h.b16 %v980
    %v1751 = vunpack.c.l.b16 %v981
    %v1752 = vunpack.c.h.b16 %v981
    %v1753 = vunpack.c.l.b16 %v982
    %v1754 = vunpack.c.h.b16 %v982
    %v1755 = vunpack.c.l.b16 %v983
    %v1756 = vunpack.c.h.b16 %v983
    %v1757 = vunpack.c.l.b16 %v984
    %v1758 = vunpack.c.h.b16 %v984
    %v1759 = vunpack.c.l.b16 %v985
    %v1760 = vunpack.c.h.b16 %v985
    %v1761 = vunpack.c.l.b16 %v986
    %v1762 = vunpack.c.h.b16 %v986
    %v1763 = vunpack.c.l.b16 %v987
    %v1764 = vunpack.c.h.b16 %v987
    %v1765 = vunpack.c.l.b16 %v988
    %v1766 = vunpack.c.h.b16 %v988
    %v1767 = vunpack.c.l.b16 %v989
    %v1768 = vunpack.c.h.b16 %v989
    %v1769 = vunpack.c.l.b16 %v990
    %v1770 = vunpack.c.h.b16 %v990
    %v1771 = vunpack.c.l.b16 %v991
    %v1772 = vunpack.c.h.b16 %v991
    %v1773 = vunpack.c.l.b16 %v992
    %v1774 = vunpack.c.h.b16 %v992
    %v1775 = vunpack.c.l.b16 %v993
    %v1776 = vunpack.c.h.b16 %v993
    %v1777 = vunpack.c.l.b16 %v994
    %v1778 = vunpack.c.h.b16 %v994
    %v1779 = vunpack.c.l.b16 %v995
    %v1780 = vunpack.c.h.b16 %v995
    %v1781 = vunpack.c.l.b16 %v996
    %v1782 = vunpack.c.h.b16 %v996
    %v1783 = vunpack.c.l.b16 %v997
    %v1784 = vunpack.c.h.b16 %v997
    %v1785 = vunpack.c.l.b16 %v998
    %v1786 = vunpack.c.h.b16 %v998
    %v1787 = vunpack.c.l.b16 %v999
    %v1788 = vunpack.c.h.b16 %v999
    %v1789 = vunpack.c.l.b16 %v1000
    %v1790 = vunpack.c.h.b16 %v1000
    %v1791 = vunpack.c.l.b16 %v1001
    %v1792 = vunpack.c.h.b16 %v1001
    %v1793 = vunpack.c.l.b16 %v1002
    %v1794 = vunpack.c.h.b16 %v1002
    %v1795 = vunpack.c.l.b16 %v1003
    %v1796 = vunpack.c.h.b16 %v1003
    %v1797 = vunpack.c.l.b16 %v1004
    %v1798 = vunpack.c.h.b16 %v1004
    %v1799 = vunpack.c.l.b16 %v1005
    %v1800 = vunpack.c.h.b16 %v1005
    %v1801 = vunpack.c.l.b16 %v1006
    %v1802 = vunpack.c.h.b16 %v1006
    %v1803 = vunpack.c.l.b16 %v1007
    %v1804 = vunpack.c.h.b16 %v1007
    %v1805 = vunpack.c.l.b16 %v1008
    %v1806 = vunpack.c.h.b16 %v1008
    %v1807 = vunpack.c.l.b16 %v1009
    %v1808 = vunpack.c.h.b16 %v1009
    %v1809 = vunpack.c.l.b16 %v1010
    %v1810 = vunpack.c.h.b16 %v1010
    %v1811 = vunpack.c.l.b16 %v1011
    %v1812 = vunpack.c.h.b16 %v1011
    %v1813 = vunpack.c.l.b16 %v1012
    %v1814 = vunpack.c.h.b16 %v1012
    %v1815 = vunpack.c.l.b16 %v1013
    %v1816 = vunpack.c.h.b16 %v1013
    %v1817 = vunpack.c.l.b16 %v1014
    %v1818 = vunpack.c.h.b16 %v1014
    %v1819 = vunpack.c.l.b16 %v1015
    %v1820 = vunpack.c.h.b16 %v1015
    %v1821 = vunpack.c.l.b16 %v1016
    %v1822 = vunpack.c.h.b16 %v1016
    %v1823 = vunpack.c.l.b16 %v1017
    %v1824 = vunpack.c.h.b16 %v1017
    %v1825 = vunpack.c.l.b16 %v1018
    %v1826 = vunpack.c.h.b16 %v1018
    %v1827 = vunpack.c.l.b16 %v1019
    %v1828 = vunpack.c.h.b16 %v1019
    %v1829 = vunpack.c.l.b16 %v1020
    %v1830 = vunpack.c.h.b16 %v1020
    %v1831 = vpack.c.b16 %v1327, %v1319
    %v1832 = vpack.c.b16 %v1328, %v1320
    %v1833 = vpack.c.b16 %v1329, %v1321
    %v1834 = vpack.c.b16 %v1330, %v1322
    %v1835 = vpack.c.b16 %v1331, %v1323
    %v1836 = vpack.c.b16 %v1332, %v1324
    %v1837 = vpack.c.b16 %v1333, %v1325
    %v1838 = vpack.c.b16 %v1334, %v1326
    %v1839 = vpack.c.b16 %v1343, %v1335
    %v1840 = vpack.c.b16 %v1344, %v1336
    %v1841 = vpack.c.b16 %v1345, %v1337
    %v1842 = vpack.c.b16 %v1346, %v1338
    %v1843 = vpack.c.b16 %v1347, %v1339
    %v1844 = vpack.c.b16 %v1348, %v1340
    %v1845 = vpack.c.b16 %v1349, %v1341
    %v1846 = vpack.c.b16 %v1350, %v1342
    %v1847 = vpack.c.b16 %v1359, %v1351
    %v1848 = vpack.c.b16 %v1360, %v1352
    %v1849 = vpack.c.b16 %v1361, %v1353
    %v1850 = vpack.c.b16 %v1362, %v1354
    %v1851 = vpack.c.b16 %v1363, %v1355
    %v1852 = vpack.c.b16 %v1364, %v1356
    %v1853 = vpack.c.b16 %v1365, %v1357
    %v1854 = vpack.c.b16 %v1366, %v1358
    %v1855 = vpack.c.b16 %v1375, %v1367
    %v1856 = vpack.c.b16 %v1376, %v1368
    %v1857 = vpack.c.b16 %v1377, %v1369
    %v1858 = vpack.c.b16 %v1378, %v1370
    %v1859 = vpack.c.b16 %v1379, %v1371
    %v1860 = vpack.c.b16 %v1380, %v1372
    %v1861 = vpack.c.b16 %v1381, %v1373
    %v1862 = vpack.c.b16 %v1382, %v1374
    %v1863 = vpack.c.b16 %v1391, %v1383
    %v1864 = vpack.c.b16 %v1392, %v1384
    %v1865 = vpack.c.b16 %v1393, %v1385
    %v1866 = vpack.c.b16 %v1394, %v1386
    %v1867 = vpack.c.b16 %v1395, %v1387
    %v1868 = vpack.c.b16 %v1396, %v1388
    %v1869 = vpack.c.b16 %v1397, %v1389
    %v1870 = vpack.c.b16 %v1398, %v1390
    %v1871 = vpack.c.b16 %v1407, %v1399
    %v1872 = vpack.c.b16 %v1408, %v1400
    %v1873 = vpack.c.b16 %v1409, %v1401
    %v1874 = vpack.c.b16 %v1410, %v1402
    %v1875 = vpack.c.b16 %v1411, %v1403
    %v1876 = vpack.c.b16 %v1412, %v1404
    %v1877 = vpack.c.b16 %v1413, %v1405
    %v1878 = vpack.c.b16 %v1414, %v1406
    %v1879 = vpack.c.b16 %v1423, %v1415
    %v1880 = vpack.c.b16 %v1424, %v1416
    %v1881 = vpack.c.b16 %v1425, %v1417
    %v1882 = vpack.c.b16 %v1426, %v1418
    %v1883 = vpack.c.b16 %v1427, %v1419
    %v1884 = vpack.c.b16 %v1428, %v1420
    %v1885 = vpack.c.b16 %v1429, %v1421
    %v1886 = vpack.c.b16 %v1430, %v1422
    %v1887 = vpack.c.b16 %v1439, %v1431
    %v1888 = vpack.c.b16 %v1440, %v1432
    %v1889 = vpack.c.b16 %v1441, %v1433
    %v1890 = vpack.c.b16 %v1442, %v1434
    %v1891 = vpack.c.b16 %v1443, %v1435
    %v1892 = vpack.c.b16 %v1444, %v1436
    %v1893 = vpack.c.b16 %v1445, %v1437
    %v1894 = vpack.c.b16 %v1446, %v1438
    %v1895 = vpack.c.b16 %v1455, %v1447
    %v1896 = vpack.c.b16 %v1456, %v1448
    %v1897 = vpack.c.b16 %v1457, %v1449
    %v1898 = vpack.c.b16 %v1458, %v1450
    %v1899 = vpack.c.b16 %v1459, %v1451
    %v1900 = vpack.c.b16 %v1460, %v1452
    %v1901 = vpack.c.b16 %v1461, %v1453
    %v1902 = vpack.c.b16 %v1462, %v1454
    %v1903 = vpack.c.b16 %v1471, %v1463
    %v1904 = vpack.c.b16 %v1472, %v1464
    %v1905 = vpack.c.b16 %v1473, %v1465
    %v1906 = vpack.c.b16 %v1474, %v1466
    %v1907 = vpack.c.b16 %v1475, %v1467
    %v1908 = vpack.c.b16 %v1476, %v1468
    %v1909 = vpack.c.b16 %v1477, %v1469
    %v1910 = vpack.c.b16 %v1478, %v1470
    %v1911 = vpack.c.b16 %v1487, %v1479
    %v1912 = vpack.c.b16 %v1488, %v1480
    %v1913 = vpack.c.b16 %v1489, %v1481
    %v1914 = vpack.c.b16 %v1490, %v1482
    %v1915 = vpack.c.b16 %v1491, %v1483
    %v1916 = vpack.c.b16 %v1492, %v1484
    %v1917 = vpack.c.b16 %v1493, %v1485
    %v1918 = vpack.c.b16 %v1494, %v1486
    %v1919 = vpack.c.b16 %v1503, %v1495
    %v1920 = vpack.c.b16 %v1504, %v1496
    %v1921 = vpack.c.b16 %v1505, %v1497
    %v1922 = vpack.c.b16 %v1506, %v1498
    %v1923 = vpack.c.b16 %v1507, %v1499
    %v1924 = vpack.c.b16 %v1508, %v1500
    %v1925 = vpack.c.b16 %v1509, %v1501
    %v1926 = vpack.c.b16 %v1510, %v1502
    %v1927 = vpack.c.b16 %v1519, %v1511
    %v1928 = vpack.c.b16 %v1520, %v1512
    %v1929 = vpack.c.b16 %v1521, %v1513
    %v1930 = vpack.c.b16 %v1522, %v1514
    %v1931 = vpack.c.b16 %v1523, %v1515
    %v1932 = vpack.c.b16 %v1524, %v1516
    %v1933 = vpack.c.b16 %v1525, %v1517
    %v1934 = vpack.c.b16 %v1526, %v1518
    %v1935 = vpack.c.b16 %v1535, %v1527
    %v1936 = vpack.c.b16 %v1536, %v1528
    %v1937 = vpack.c.b16 %v1537, %v1529
    %v1938 = vpack.c.b16 %v1538, %v1530
    %v1939 = vpack.c.b16 %v1539, %v1531
    %v1940 = vpack.c.b16 %v1540, %v1532
    %v1941 = vpack.c.b16 %v1541, %v1533
    %v1942 = vpack.c.b16 %v1542, %v1534
    %v1943 = vpack.c.b16 %v1551, %v1543
    %v1944 = vpack.c.b16 %v1552, %v1544
    %v1945 = vpack.c.b16 %v1553, %v1545
    %v1946 = vpack.c.b16 %v1554, %v1546
    %v1947 = vpack.c.b16 %v1555, %v1547
    %v1948 = vpack.c.b16 %v1556, %v1548
    %v1949 = vpack.c.b16 %v1557, %v1549
    %v1950 = vpack.c.b16 %v1558, %v1550
    %v1951 = vpack.c.b16 %v1567, %v1559
    %v1952 = vpack.c.b16 %v1568, %v1560
    %v1953 = vpack.c.b16 %v1569, %v1561
    %v1954 = vpack.c.b16 %v1570, %v1562
    %v1955 = vpack.c.b16 %v1571, %v1563
    %v1956 = vpack.c.b16 %v1572, %v1564
    %v1957 = vpack.c.b16 %v1573, %v1565
    %v1958 = vpack.c.b16 %v1574, %v1566
    %v1959 = vpack.c.b16 %v1583, %v1575
    %v1960 = vpack.c.b16 %v1584, %v1576
    %v1961 = vpack.c.b16 %v1585, %v1577
    %v1962 = vpack.c.b16 %v1586, %v1578
    %v1963 = vpack.c.b16 %v1587, %v1579
    %v1964 = vpack.c.b16 %v1588, %v1580
    %v1965 = vpack.c.b16 %v1589, %v1581
    %v1966 = vpack.c.b16 %v1590, %v1582
    %v1967 = vpack.c.b16 %v1599, %v1591
    %v1968 = vpack.c.b16 %v1600, %v1592
    %v1969 = vpack.c.b16 %v1601, %v1593
    %v1970 = vpack.c.b16 %v1602, %v1594
    %v1971 = vpack.c.b16 %v1603, %v1595
    %v1972 = vpack.c.b16 %v1604, %v1596
    %v1973 = vpack.c.b16 %v1605, %v1597
    %v1974 = vpack.c.b16 %v1606, %v1598
    %v1975 = vpack.c.b16 %v1615, %v1607
    %v1976 = vpack.c.b16 %v1616, %v1608
    %v1977 = vpack.c.b16 %v1617, %v1609
    %v1978 = vpack.c.b16 %v1618, %v1610
    %v1979 = vpack.c.b16 %v1619, %v1611
    %v1980 = vpack.c.b16 %v1620, %v1612
    %v1981 = vpack.c.b16 %v1621, %v1613
    %v1982 = vpack.c.b16 %v1622, %v1614
    %v1983 = vpack.c.b16 %v1631, %v1623
    %v1984 = vpack.c.b16 %v1632, %v1624
    %v1985 = vpack.c.b16 %v1633, %v1625
    %v1986 = vpack.c.b16 %v1634, %v1626
    %v1987 = vpack.c.b16 %v1635, %v1627
    %v1988 = vpack.c.b16 %v1636, %v1628
    %v1989 = vpack.c.b16 %v1637, %v1629
    %v1990 = vpack.c.b16 %v1638, %v1630
    %v1991 = vpack.c.b16 %v1647, %v1639
    %v1992 = vpack.c.b16 %v1648, %v1640
    %v1993 = vpack.c.b16 %v1649, %v1641
    %v1994 = vpack.c.b16 %v1650, %v1642
    %v1995 = vpack.c.b16 %v1651, %v1643
    %v1996 = vpack.c.b16 %v1652, %v1644
    %v1997 = vpack.c.b16 %v1653, %v1645
    %v1998 = vpack.c.b16 %v1654, %v1646
    %v1999 = vpack.c.b16 %v1663, %v1655
    %v2000 = vpack.c.b16 %v1664, %v1656
    %v2001 = vpack.c.b16 %v1665, %v1657
    %v2002 = vpack.c.b16 %v1666, %v1658
    %v2003 = vpack.c.b16 %v1667, %v1659
    %v2004 = vpack.c.b16 %v1668, %v1660
    %v2005 = vpack.c.b16 %v1669, %v1661
    %v2006 = vpack.c.b16 %v1670, %v1662
    %v2007 = vpack.c.b16 %v1679, %v1671
    %v2008 = vpack.c.b16 %v1680, %v1672
    %v2009 = vpack.c.b16 %v1681, %v1673
    %v2010 = vpack.c.b16 %v1682, %v1674
    %v2011 = vpack.c.b16 %v1683, %v1675
    %v2012 = vpack.c.b16 %v1684, %v1676
    %v2013 = vpack.c.b16 %v1685, %v1677
    %v2014 = vpack.c.b16 %v1686, %v1678
    %v2015 = vpack.c.b16 %v1695, %v1687
    %v2016 = vpack.c.b16 %v1696, %v1688
    %v2017 = vpack.c.b16 %v1697, %v1689
    %v2018 = vpack.c.b16 %v1698, %v1690
    %v2019 = vpack.c.b16 %v1699, %v1691
    %v2020 = vpack.c.b16 %v1700, %v1692
    %v2021 = vpack.c.b16 %v1701, %v1693
    %v2022 = vpack.c.b16 %v1702, %v1694
    %v2023 = vpack.c.b16 %v1711, %v1703
    %v2024 = vpack.c.b16 %v1712, %v1704
    %v2025 = vpack.c.b16 %v1713, %v1705
    %v2026 = vpack.c.b16 %v1714, %v1706
    %v2027 = vpack.c.b16 %v1715, %v1707
    %v2028 = vpack.c.b16 %v1716, %v1708
    %v2029 = vpack.c.b16 %v1717, %v1709
    %v2030 = vpack.c.b16 %v1718, %v1710
    %v2031 = vpack.c.b16 %v1727, %v1719
    %v2032 = vpack.c.b16 %v1728, %v1720
    %v2033 = vpack.c.b16 %v1729, %v1721
    %v2034 = vpack.c.b16 %v1730, %v1722
    %v2035 = vpack.c.b16 %v1731, %v1723
    %v2036 = vpack.c.b16 %v1732, %v1724
    %v2037 = vpack.c.b16 %v1733, %v1725
    %v2038 = vpack.c.b16 %v1734, %v1726
    %v2039 = vpack.c.b16 %v1743, %v1735
    %v2040 = vpack.c.b16 %v1744, %v1736
    %v2041 = vpack.c.b16 %v1745, %v1737
    %v2042 = vpack.c.b16 %v1746, %v1738
    %v2043 = vpack.c.b16 %v1747, %v1739
    %v2044 = vpack.c.b16 %v1748, %v1740
    %v2045 = vpack.c.b16 %v1749, %v1741
    %v2046 = vpack.c.b16 %v1750, %v1742
    %v2047 = vpack.c.b16 %v1759, %v1751
    %v2048 = vpack.c.b16 %v1760, %v1752
    %v2049 = vpack.c.b16 %v1761, %v1753
    %v2050 = vpack.c.b16 %v1762, %v1754
    %v2051 = vpack.c.b16 %v1763, %v1755
    %v2052 = vpack.c.b16 %v1764, %v1756
    %v2053 = vpack.c.b16 %v1765, %v1757
    %v2054 = vpack.c.b16 %v1766, %v1758
    %v2055 = vpack.c.b16 %v1775, %v1767
    %v2056 = vpack.c.b16 %v1776, %v1768
    %v2057 = vpack.c.b16 %v1777, %v1769
    %v2058 = vpack.c.b16 %v1778, %v1770
    %v2059 = vpack.c.b16 %v1779, %v1771
    %v2060 = vpack.c.b16 %v1780, %v1772
    %v2061 = vpack.c.b16 %v1781, %v1773
    %v2062 = vpack.c.b16 %v1782, %v1774
    %v2063 = vpack.c.b16 %v1791, %v1783
    %v2064 = vpack.c.b16 %v1792, %v1784
    %v2065 = vpack.c.b16 %v1793, %v1785
    %v2066 = vpack.c.b16 %v1794, %v1786
    %v2067 = vpack.c.b16 %v1795, %v1787
    %v2068 = vpack.c.b16 %v1796, %v1788
    %v2069 = vpack.c.b16 %v1797, %v1789
    %v2070 = vpack.c.b16 %v1798, %v1790
    %v2071 = vpack.c.b16 %v1807, %v1799
    %v2072 = vpack.c.b16 %v1808, %v1800
    %v2073 = vpack.c.b16 %v1809, %v1801
    %v2074 = vpack.c.b16 %v1810, %v1802
    %v2075 = vpack.c.b16 %v1811, %v1803
    %v2076 = vpack.c.b16 %v1812, %v1804
    %v2077 = vpack.c.b16 %v1813, %v1805
    %v2078 = vpack.c.b16 %v1814, %v1806
    %v2079 = vpack.c.b16 %v1823, %v1815
    %v2080 = vpack.c.b16 %v1824, %v1816
    %v2081 = vpack.c.b16 %v1825, %v1817
    %v2082 = vpack.c.b16 %v1826, %v1818
    %v2083 = vpack.c.b16 %v1827, %v1819
    %v2084 = vpack.c.b16 %v1828, %v1820
    %v2085 = vpack.c.b16 %v1829, %v1821
    %v2086 = vpack.c.b16 %v1830, %v1822
    %2343 = vmatprep.subr.bf16.mxu0 %v1832
    %2344 = vmatpush1.bf16.msra.mxu0 %v1831
    %2345 = vmatprep.subr.bf16.mxu0 %v1840
    %2346 = vmatpush1.bf16.msra.mxu0 %v1839
    %2347 = vmatprep.subr.bf16.mxu0 %v1848
    %2348 = vmatpush1.bf16.msra.mxu0 %v1847
    %2349 = vmatprep.subr.bf16.mxu0 %v1856
    %2350 = vmatpush1.bf16.msra.mxu0 %v1855
    %2351 = vmatprep.subr.bf16.mxu0 %v1864
    %2352 = vmatpush1.bf16.msra.mxu0 %v1863
    %2353 = vmatprep.subr.bf16.mxu0 %v1872
    %2354 = vmatpush1.bf16.msra.mxu0 %v1871
    %2355 = vmatprep.subr.bf16.mxu0 %v1880
    %2356 = vmatpush1.bf16.msra.mxu0 %v1879
    %2357 = vmatprep.subr.bf16.mxu0 %v1888
    %2358 = vmatpush1.bf16.msra.mxu0 %v1887
    %2359 = vmatprep.subr.bf16.mxu0 %v1896
    %2360 = vmatpush1.bf16.msra.mxu0 %v1895
    %2361 = vmatprep.subr.bf16.mxu0 %v1904
    %2362 = vmatpush1.bf16.msra.mxu0 %v1903
    %2363 = vmatprep.subr.bf16.mxu0 %v1912
    %2364 = vmatpush1.bf16.msra.mxu0 %v1911
    %2365 = vmatprep.subr.bf16.mxu0 %v1920
    %2366 = vmatpush1.bf16.msra.mxu0 %v1919
    %2367 = vmatprep.subr.bf16.mxu0 %v1928
    %2368 = vmatpush1.bf16.msra.mxu0 %v1927
    %2369 = vmatprep.subr.bf16.mxu0 %v1936
    %2370 = vmatpush1.bf16.msra.mxu0 %v1935
    %2371 = vmatprep.subr.bf16.mxu0 %v1944
    %2372 = vmatpush1.bf16.msra.mxu0 %v1943
    %2373 = vmatprep.subr.bf16.mxu0 %v1952
    %2374 = vmatpush1.bf16.msra.mxu0 %v1951
    %2375 = vmatprep.mubr.bf16.mxu0 %v762
    %2376 = vmatmul.mubr.bf16.gmra.mrb[0].mxu0 %v761
    %v2377 = vpop.f32.mrb[0].mxu0
    %v2378 = vadd.f32 %v1026, %v2377
    %v2379 = vpop.f32.mrb[0].mxu0
    %v2380 = vadd.f32 %v1030, %v2379
    %v2381 = vpop.f32.mrb[0].mxu0
    %v2382 = vpop.f32.mrb[0].mxu0
    %2383 = vdwg.mxu0
    %2384 = vmatprep.subr.bf16.mxu0 %v1960
    %2385 = vmatpush1.bf16.msra.mxu0 %v1959
    %2386 = vmatprep.subr.bf16.mxu0 %v1968
    %2387 = vmatpush1.bf16.msra.mxu0 %v1967
    %2388 = vmatprep.subr.bf16.mxu0 %v1976
    %2389 = vmatpush1.bf16.msra.mxu0 %v1975
    %2390 = vmatprep.subr.bf16.mxu0 %v1984
    %2391 = vmatpush1.bf16.msra.mxu0 %v1983
    %2392 = vmatprep.subr.bf16.mxu0 %v1992
    %2393 = vmatpush1.bf16.msra.mxu0 %v1991
    %2394 = vmatprep.subr.bf16.mxu0 %v2000
    %2395 = vmatpush1.bf16.msra.mxu0 %v1999
    %2396 = vmatprep.subr.bf16.mxu0 %v2008
    %2397 = vmatpush1.bf16.msra.mxu0 %v2007
    %2398 = vmatprep.subr.bf16.mxu0 %v2016
    %2399 = vmatpush1.bf16.msra.mxu0 %v2015
    %2400 = vmatprep.subr.bf16.mxu0 %v2024
    %2401 = vmatpush1.bf16.msra.mxu0 %v2023
    %2402 = vmatprep.subr.bf16.mxu0 %v2032
    %2403 = vmatpush1.bf16.msra.mxu0 %v2031
    %2404 = vmatprep.subr.bf16.mxu0 %v2040
    %2405 = vmatpush1.bf16.msra.mxu0 %v2039
    %2406 = vmatprep.subr.bf16.mxu0 %v2048
    %2407 = vmatpush1.bf16.msra.mxu0 %v2047
    %2408 = vmatprep.subr.bf16.mxu0 %v2056
    %2409 = vmatpush1.bf16.msra.mxu0 %v2055
    %2410 = vmatprep.subr.bf16.mxu0 %v2064
    %2411 = vmatpush1.bf16.msra.mxu0 %v2063
    %2412 = vmatprep.subr.bf16.mxu0 %v2072
    %2413 = vmatpush1.bf16.msra.mxu0 %v2071
    %2414 = vmatprep.subr.bf16.mxu0 %v2080
    %2415 = vmatpush1.bf16.msra.mxu0 %v2079
    %2416 = vmatprep.mubr.bf16.mxu0 %v764
    %2417 = vmatmul.mubr.bf16.gmra.mrb[0].mxu0 %v763
    %v2418 = vpop.f32.mrb[0].mxu0
    %v2419 = vadd.f32 %v2378, %v2418
    %v2420 = vpop.f32.mrb[0].mxu0
    %v2421 = vadd.f32 %v2380, %v2420
    %v2422 = vpop.f32.mrb[0].mxu0
    %v2423 = vpop.f32.mrb[0].mxu0
    %2424 = vdwg.mxu0
    %2425 = vmatprep.subr.bf16.mxu0 %v1834
    %2426 = vmatpush1.bf16.msra.mxu0 %v1833
    %2427 = vmatprep.subr.bf16.mxu0 %v1842
    %2428 = vmatpush1.bf16.msra.mxu0 %v1841
    %2429 = vmatprep.subr.bf16.mxu0 %v1850
    %2430 = vmatpush1.bf16.msra.mxu0 %v1849
    %2431 = vmatprep.subr.bf16.mxu0 %v1858
    %2432 = vmatpush1.bf16.msra.mxu0 %v1857
    %2433 = vmatprep.subr.bf16.mxu0 %v1866
    %2434 = vmatpush1.bf16.msra.mxu0 %v1865
    %2435 = vmatprep.subr.bf16.mxu0 %v1874
    %2436 = vmatpush1.bf16.msra.mxu0 %v1873
    %2437 = vmatprep.subr.bf16.mxu0 %v1882
    %2438 = vmatpush1.bf16.msra.mxu0 %v1881
    %2439 = vmatprep.subr.bf16.mxu0 %v1890
    %2440 = vmatpush1.bf16.msra.mxu0 %v1889
    %2441 = vmatprep.subr.bf16.mxu0 %v1898
    %2442 = vmatpush1.bf16.msra.mxu0 %v1897
    %2443 = vmatprep.subr.bf16.mxu0 %v1906
    %2444 = vmatpush1.bf16.msra.mxu0 %v1905
    %2445 = vmatprep.subr.bf16.mxu0 %v1914
    %2446 = vmatpush1.bf16.msra.mxu0 %v1913
    %2447 = vmatprep.subr.bf16.mxu0 %v1922
    %2448 = vmatpush1.bf16.msra.mxu0 %v1921
    %2449 = vmatprep.subr.bf16.mxu0 %v1930
    %2450 = vmatpush1.bf16.msra.mxu0 %v1929
    %2451 = vmatprep.subr.bf16.mxu0 %v1938
    %2452 = vmatpush1.bf16.msra.mxu0 %v1937
    %2453 = vmatprep.subr.bf16.mxu0 %v1946
    %2454 = vmatpush1.bf16.msra.mxu0 %v1945
    %2455 = vmatprep.subr.bf16.mxu0 %v1954
    %2456 = vmatpush1.bf16.msra.mxu0 %v1953
    %2457 = vmatprep.mubr.bf16.mxu0 %v762
    %2458 = vmatmul.mubr.bf16.gmra.mrb[0].mxu0 %v761
    %v2459 = vpop.f32.mrb[0].mxu0
    %v2460 = vadd.f32 %v1034, %v2459
    %v2461 = vpop.f32.mrb[0].mxu0
    %v2462 = vadd.f32 %v1038, %v2461
    %v2463 = vpop.f32.mrb[0].mxu0
    %v2464 = vpop.f32.mrb[0].mxu0
    %2465 = vdwg.mxu0
    %2466 = vmatprep.subr.bf16.mxu0 %v1962
    %2467 = vmatpush1.bf16.msra.mxu0 %v1961
    %2468 = vmatprep.subr.bf16.mxu0 %v1970
    %2469 = vmatpush1.bf16.msra.mxu0 %v1969
    %2470 = vmatprep.subr.bf16.mxu0 %v1978
    %2471 = vmatpush1.bf16.msra.mxu0 %v1977
    %2472 = vmatprep.subr.bf16.mxu0 %v1986
    %2473 = vmatpush1.bf16.msra.mxu0 %v1985
    %2474 = vmatprep.subr.bf16.mxu0 %v1994
    %2475 = vmatpush1.bf16.msra.mxu0 %v1993
    %2476 = vmatprep.subr.bf16.mxu0 %v2002
    %2477 = vmatpush1.bf16.msra.mxu0 %v2001
    %2478 = vmatprep.subr.bf16.mxu0 %v2010
    %2479 = vmatpush1.bf16.msra.mxu0 %v2009
    %2480 = vmatprep.subr.bf16.mxu0 %v2018
    %2481 = vmatpush1.bf16.msra.mxu0 %v2017
    %2482 = vmatprep.subr.bf16.mxu0 %v2026
    %2483 = vmatpush1.bf16.msra.mxu0 %v2025
    %2484 = vmatprep.subr.bf16.mxu0 %v2034
    %2485 = vmatpush1.bf16.msra.mxu0 %v2033
    %2486 = vmatprep.subr.bf16.mxu0 %v2042
    %2487 = vmatpush1.bf16.msra.mxu0 %v2041
    %2488 = vmatprep.subr.bf16.mxu0 %v2050
    %2489 = vmatpush1.bf16.msra.mxu0 %v2049
    %2490 = vmatprep.subr.bf16.mxu0 %v2058
    %2491 = vmatpush1.bf16.msra.mxu0 %v2057
    %2492 = vmatprep.subr.bf16.mxu0 %v2066
    %2493 = vmatpush1.bf16.msra.mxu0 %v2065
    %2494 = vmatprep.subr.bf16.mxu0 %v2074
    %2495 = vmatpush1.bf16.msra.mxu0 %v2073
    %2496 = vmatprep.subr.bf16.mxu0 %v2082
    %2497 = vmatpush1.bf16.msra.mxu0 %v2081
    %2498 = vmatprep.mubr.bf16.mxu0 %v764
    %2499 = vmatmul.mubr.bf16.gmra.mrb[0].mxu0 %v763
    %v2500 = vpop.f32.mrb[0].mxu0
    %v2501 = vadd.f32 %v2460, %v2500
    %v2502 = vpop.f32.mrb[0].mxu0
    %v2503 = vadd.f32 %v2462, %v2502
    %v2504 = vpop.f32.mrb[0].mxu0
    %v2505 = vpop.f32.mrb[0].mxu0
    %2506 = vdwg.mxu0
    %2507 = vmatprep.subr.bf16.mxu0 %v1836
    %2508 = vmatpush1.bf16.msra.mxu0 %v1835
    %2509 = vmatprep.subr.bf16.mxu0 %v1844
    %2510 = vmatpush1.bf16.msra.mxu0 %v1843
    %2511 = vmatprep.subr.bf16.mxu0 %v1852
    %2512 = vmatpush1.bf16.msra.mxu0 %v1851
    %2513 = vmatprep.subr.bf16.mxu0 %v1860
    %2514 = vmatpush1.bf16.msra.mxu0 %v1859
    %2515 = vmatprep.subr.bf16.mxu0 %v1868
    %2516 = vmatpush1.bf16.msra.mxu0 %v1867
    %2517 = vmatprep.subr.bf16.mxu0 %v1876
    %2518 = vmatpush1.bf16.msra.mxu0 %v1875
    %2519 = vmatprep.subr.bf16.mxu0 %v1884
    %2520 = vmatpush1.bf16.msra.mxu0 %v1883
    %2521 = vmatprep.subr.bf16.mxu0 %v1892
    %2522 = vmatpush1.bf16.msra.mxu0 %v1891
    %2523 = vmatprep.subr.bf16.mxu0 %v1900
    %2524 = vmatpush1.bf16.msra.mxu0 %v1899
    %2525 = vmatprep.subr.bf16.mxu0 %v1908
    %2526 = vmatpush1.bf16.msra.mxu0 %v1907
    %2527 = vmatprep.subr.bf16.mxu0 %v1916
    %2528 = vmatpush1.bf16.msra.mxu0 %v1915
    %2529 = vmatprep.subr.bf16.mxu0 %v1924
    %2530 = vmatpush1.bf16.msra.mxu0 %v1923
    %2531 = vmatprep.subr.bf16.mxu0 %v1932
    %2532 = vmatpush1.bf16.msra.mxu0 %v1931
    %2533 = vmatprep.subr.bf16.mxu0 %v1940
    %2534 = vmatpush1.bf16.msra.mxu0 %v1939
    %2535 = vmatprep.subr.bf16.mxu0 %v1948
    %2536 = vmatpush1.bf16.msra.mxu0 %v1947
    %2537 = vmatprep.subr.bf16.mxu0 %v1956
    %2538 = vmatpush1.bf16.msra.mxu0 %v1955
    %2539 = vmatprep.mubr.bf16.mxu0 %v762
    %2540 = vmatmul.mubr.bf16.gmra.mrb[0].mxu0 %v761
    %v2541 = vpop.f32.mrb[0].mxu0
    %v2542 = vadd.f32 %v1042, %v2541
    %v2543 = vpop.f32.mrb[0].mxu0
    %v2544 = vadd.f32 %v1046, %v2543
    %v2545 = vpop.f32.mrb[0].mxu0
    %v2546 = vpop.f32.mrb[0].mxu0
    %2547 = vdwg.mxu0
    %2548 = vmatprep.subr.bf16.mxu0 %v1964
    %2549 = vmatpush1.bf16.msra.mxu0 %v1963
    %2550 = vmatprep.subr.bf16.mxu0 %v1972
    %2551 = vmatpush1.bf16.msra.mxu0 %v1971
    %2552 = vmatprep.subr.bf16.mxu0 %v1980
    %2553 = vmatpush1.bf16.msra.mxu0 %v1979
    %2554 = vmatprep.subr.bf16.mxu0 %v1988
    %2555 = vmatpush1.bf16.msra.mxu0 %v1987
    %2556 = vmatprep.subr.bf16.mxu0 %v1996
    %2557 = vmatpush1.bf16.msra.mxu0 %v1995
    %2558 = vmatprep.subr.bf16.mxu0 %v2004
    %2559 = vmatpush1.bf16.msra.mxu0 %v2003
    %2560 = vmatprep.subr.bf16.mxu0 %v2012
    %2561 = vmatpush1.bf16.msra.mxu0 %v2011
    %2562 = vmatprep.subr.bf16.mxu0 %v2020
    %2563 = vmatpush1.bf16.msra.mxu0 %v2019
    %2564 = vmatprep.subr.bf16.mxu0 %v2028
    %2565 = vmatpush1.bf16.msra.mxu0 %v2027
    %2566 = vmatprep.subr.bf16.mxu0 %v2036
    %2567 = vmatpush1.bf16.msra.mxu0 %v2035
    %2568 = vmatprep.subr.bf16.mxu0 %v2044
    %2569 = vmatpush1.bf16.msra.mxu0 %v2043
    %2570 = vmatprep.subr.bf16.mxu0 %v2052
    %2571 = vmatpush1.bf16.msra.mxu0 %v2051
    %2572 = vmatprep.subr.bf16.mxu0 %v2060
    %2573 = vmatpush1.bf16.msra.mxu0 %v2059
    %2574 = vmatprep.subr.bf16.mxu0 %v2068
    %2575 = vmatpush1.bf16.msra.mxu0 %v2067
    %2576 = vmatprep.subr.bf16.mxu0 %v2076
    %2577 = vmatpush1.bf16.msra.mxu0 %v2075
    %2578 = vmatprep.subr.bf16.mxu0 %v2084
    %2579 = vmatpush1.bf16.msra.mxu0 %v2083
    %2580 = vmatprep.mubr.bf16.mxu0 %v764
    %2581 = vmatmul.mubr.bf16.gmra.mrb[0].mxu0 %v763
    %v2582 = vpop.f32.mrb[0].mxu0
    %v2583 = vadd.f32 %v2542, %v2582
    %v2584 = vpop.f32.mrb[0].mxu0
    %v2585 = vadd.f32 %v2544, %v2584
    %v2586 = vpop.f32.mrb[0].mxu0
    %v2587 = vpop.f32.mrb[0].mxu0
    %2588 = vdwg.mxu0
    %2589 = vmatprep.subr.bf16.mxu0 %v1838
    %2590 = vmatpush1.bf16.msra.mxu0 %v1837
    %2591 = vmatprep.subr.bf16.mxu0 %v1846
    %2592 = vmatpush1.bf16.msra.mxu0 %v1845
    %2593 = vmatprep.subr.bf16.mxu0 %v1854
    %2594 = vmatpush1.bf16.msra.mxu0 %v1853
    %2595 = vmatprep.subr.bf16.mxu0 %v1862
    %2596 = vmatpush1.bf16.msra.mxu0 %v1861
    %2597 = vmatprep.subr.bf16.mxu0 %v1870
    %2598 = vmatpush1.bf16.msra.mxu0 %v1869
    %2599 = vmatprep.subr.bf16.mxu0 %v1878
    %2600 = vmatpush1.bf16.msra.mxu0 %v1877
    %2601 = vmatprep.subr.bf16.mxu0 %v1886
    %2602 = vmatpush1.bf16.msra.mxu0 %v1885
    %2603 = vmatprep.subr.bf16.mxu0 %v1894
    %2604 = vmatpush1.bf16.msra.mxu0 %v1893
    %2605 = vmatprep.subr.bf16.mxu0 %v1902
    %2606 = vmatpush1.bf16.msra.mxu0 %v1901
    %2607 = vmatprep.subr.bf16.mxu0 %v1910
    %2608 = vmatpush1.bf16.msra.mxu0 %v1909
    %2609 = vmatprep.subr.bf16.mxu0 %v1918
    %2610 = vmatpush1.bf16.msra.mxu0 %v1917
    %2611 = vmatprep.subr.bf16.mxu0 %v1926
    %2612 = vmatpush1.bf16.msra.mxu0 %v1925
    %2613 = vmatprep.subr.bf16.mxu0 %v1934
    %2614 = vmatpush1.bf16.msra.mxu0 %v1933
    %2615 = vmatprep.subr.bf16.mxu0 %v1942
    %2616 = vmatpush1.bf16.msra.mxu0 %v1941
    %2617 = vmatprep.subr.bf16.mxu0 %v1950
    %2618 = vmatpush1.bf16.msra.mxu0 %v1949
    %2619 = vmatprep.subr.bf16.mxu0 %v1958
    %2620 = vmatpush1.bf16.msra.mxu0 %v1957
    %2621 = vmatprep.mubr.bf16.mxu0 %v762
    %2622 = vmatmul.mubr.bf16.gmra.mrb[0].mxu0 %v761
    %v2623 = vpop.f32.mrb[0].mxu0
    %v2624 = vadd.f32 %v1050, %v2623
    %v2625 = vpop.f32.mrb[0].mxu0
    %v2626 = vadd.f32 %v1054, %v2625
    %v2627 = vpop.f32.mrb[0].mxu0
    %v2628 = vpop.f32.mrb[0].mxu0
    %2629 = vdwg.mxu0
    %2630 = vmatprep.subr.bf16.mxu0 %v1966
    %2631 = vmatpush1.bf16.msra.mxu0 %v1965
    %2632 = vmatprep.subr.bf16.mxu0 %v1974
    %2633 = vmatpush1.bf16.msra.mxu0 %v1973
    %2634 = vmatprep.subr.bf16.mxu0 %v1982
    %2635 = vmatpush1.bf16.msra.mxu0 %v1981
    %2636 = vmatprep.subr.bf16.mxu0 %v1990
    %2637 = vmatpush1.bf16.msra.mxu0 %v1989
    %2638 = vmatprep.subr.bf16.mxu0 %v1998
    %2639 = vmatpush1.bf16.msra.mxu0 %v1997
    %2640 = vmatprep.subr.bf16.mxu0 %v2006
    %2641 = vmatpush1.bf16.msra.mxu0 %v2005
    %2642 = vmatprep.subr.bf16.mxu0 %v2014
    %2643 = vmatpush1.bf16.msra.mxu0 %v2013
    %2644 = vmatprep.subr.bf16.mxu0 %v2022
    %2645 = vmatpush1.bf16.msra.mxu0 %v2021
    %2646 = vmatprep.subr.bf16.mxu0 %v2030
    %2647 = vmatpush1.bf16.msra.mxu0 %v2029
    %2648 = vmatprep.subr.bf16.mxu0 %v2038
    %2649 = vmatpush1.bf16.msra.mxu0 %v2037
    %2650 = vmatprep.subr.bf16.mxu0 %v2046
    %2651 = vmatpush1.bf16.msra.mxu0 %v2045
    %2652 = vmatprep.subr.bf16.mxu0 %v2054
    %2653 = vmatpush1.bf16.msra.mxu0 %v2053
    %2654 = vmatprep.subr.bf16.mxu0 %v2062
    %2655 = vmatpush1.bf16.msra.mxu0 %v2061
    %2656 = vmatprep.subr.bf16.mxu0 %v2070
    %2657 = vmatpush1.bf16.msra.mxu0 %v2069
    %2658 = vmatprep.subr.bf16.mxu0 %v2078
    %2659 = vmatpush1.bf16.msra.mxu0 %v2077
    %2660 = vmatprep.subr.bf16.mxu0 %v2086
    %2661 = vmatpush1.bf16.msra.mxu0 %v2085
    %2662 = vmatprep.mubr.bf16.mxu0 %v764
    %2663 = vmatmul.mubr.bf16.gmra.mrb[0].mxu0 %v763
    %v2664 = vpop.f32.mrb[0].mxu0
    %v2665 = vadd.f32 %v2624, %v2664
    %v2666 = vpop.f32.mrb[0].mxu0
    %v2667 = vadd.f32 %v2626, %v2666
    %v2668 = vpop.f32.mrb[0].mxu0
    %v2669 = vpop.f32.mrb[0].mxu0
    %2670 = vdwg.mxu0
    %vm2671 = vcmp.gt.f32.partialorder %v2419, 0.0
    %vm2672 = vcmp.gt.f32.partialorder %v2421, 0.0
    %vm2673 = vcmp.gt.f32.partialorder %v2501, 0.0
    %vm2674 = vcmp.gt.f32.partialorder %v2503, 0.0
    %vm2675 = vcmp.gt.f32.partialorder %v2583, 0.0
    %vm2676 = vcmp.gt.f32.partialorder %v2585, 0.0
    %vm2677 = vcmp.gt.f32.partialorder %v2665, 0.0
    %vm2678 = vcmp.gt.f32.partialorder %v2667, 0.0
    %v2679 = vmul.f32 %v2419, 0.2
    %v2680 = vmul.f32 %v2421, 0.2
    %v2681 = vmul.f32 %v2501, 0.2
    %v2682 = vmul.f32 %v2503, 0.2
    %v2683 = vmul.f32 %v2583, 0.2
    %v2684 = vmul.f32 %v2585, 0.2
    %v2685 = vmul.f32 %v2665, 0.2
    %v2686 = vmul.f32 %v2667, 0.2
    %v2687 = vsel %vm2671, %v2419, %v2679
    %v2688 = vsel %vm2672, %v2421, %v2680
    %v2689 = vsel %vm2673, %v2501, %v2681
    %v2690 = vsel %vm2674, %v2503, %v2682
    %v2691 = vsel %vm2675, %v2583, %v2683
    %v2692 = vsel %vm2676, %v2585, %v2684
    %v2693 = vsel %vm2677, %v2665, %v2685
    %v2694 = vsel %vm2678, %v2667, %v2686
    %v2695 = vpack.c.bf16 %v2687, %v2687
    %v2696 = vpack.c.bf16 %v2688, %v2688
    %v2697 = vpack.c.bf16 %v2689, %v2689
    %v2698 = vpack.c.bf16 %v2690, %v2690
    %v2699 = vpack.c.bf16 %v2691, %v2691
    %v2700 = vpack.c.bf16 %v2692, %v2692
    %v2701 = vpack.c.bf16 %v2693, %v2693
    %v2702 = vpack.c.bf16 %v2694, %v2694
    %v2711 = vunpack.c.l.b16 %v2695
    %v2712 = vunpack.c.l.b16 %v2696
    %v2713 = vunpack.c.l.b16 %v2697
    %v2714 = vunpack.c.l.b16 %v2698
    %v2715 = vunpack.c.l.b16 %v2699
    %v2716 = vunpack.c.l.b16 %v2700
    %v2717 = vunpack.c.l.b16 %v2701
    %v2718 = vunpack.c.l.b16 %v2702
    %v2719 = vpack.c.b16 %v2712, %v2711
    %v2720 = vpack.c.b16 %v2714, %v2713
    %v2721 = vpack.c.b16 %v2716, %v2715
    %v2722 = vpack.c.b16 %v2718, %v2717
    %2727 = vst [vmem:[%s7] sm:$0xff] %v2719
    %2728 = vst [vmem:[%s7 + $0x8] sm:$0xff] %v2720
    %2729 = vst [vmem:[%s7 + $0x10] sm:$0xff] %v2721
    %2730 = vst [vmem:[%s7 + $0x18] sm:$0xff] %v2722
    // Predicated region
    $region54: #{generator_forward.2} parent=1 // pred_check
      _
    $region55: #{generator_forward.2} parent=1 // pred_check_branch
      %2732 = sbr.rel (0) target = $region57
    $region56: #{generator_forward.2} parent=1 // pred_region
      _
    $region57: #{generator_forward.2} parent=1 // pred_fallthru
      _
    // Predicated region
    $region58: #{generator_forward.2} parent=1 // pred_check
      _
    $region59: #{generator_forward.2} parent=1 // pred_check_branch
      %2734 = sbr.rel (0) target = $region61
    $region60: #{generator_forward.2} parent=1 // pred_region
      _
    $region61: #{generator_forward.2} parent=1 // pred_fallthru
      _
    %2735 = vsyncpa [#allocation3], 1
    %2736 = vsyncpa [#allocation5], 1
    %2737 = vsyncpa [#allocation8], 1
    %2738 = vsyncpa [#allocation11], 1

</llo_original>
